<compile_context>
chip_gen: v5e
topology: v5e:2x2
jax: 0.10.0
libtpu: 0.0.40
codegen_flags: <defaults>
</compile_context>

<pallas_src>
import jax
import jax.numpy as jnp
from jax import lax
from jax.experimental import pallas as pl
from jax.experimental.pallas import tpu as pltpu

H = W = 8
HW = H * W                  # 64 rows per sample frame (row = i*8 + j)
TBI = 2                     # samples per inner compute chunk
CHUNK = TBI * HW            # 128-row compute slab (keeps live values ~16 vregs)
SUBLANE = 8                 # feature-store / block alignment quantum
GROUP = SUBLANE // TBI      # chunks per aligned (8, 128) feature store


# ------------------------------ kernel helpers ----------------------------- #

def _shift_rows(a, s):
    # result[r] = a[r + s]; wrapped rows only ever feed invalid conv/pool outputs.
    if s == 0:
        return a
    return pltpu.roll(a, shift=a.shape[0] - s, axis=0)


def _im2col_3x3(x):
    # x: (R, Cin) slab of 8x8 frames -> (R, 9*Cin) patches with
    # lane index (di*3 + dj)*Cin + c  ==  x[r + di*8 + dj, c].
    xc = jnp.concatenate([x, _shift_rows(x, 1), _shift_rows(x, 2)], axis=-1)
    return jnp.concatenate([xc, _shift_rows(xc, W), _shift_rows(xc, 2 * W)],
                           axis=-1)


def _maxpool2x2_s1(a):
    # separable 2x2/stride-1 max pool: 2 rolls + 2 maxes
    m = jnp.maximum(a, _shift_rows(a, 1))
    return jnp.maximum(m, _shift_rows(m, W))


# --------------------------------- kernel ---------------------------------- #

def simple_score_kernel(x_ref, t_ref, w1_ref, w2_ref, fw_ref, aux_ref,
                        o_ref, feat_ref):
    tb = t_ref.shape[0]                 # samples in this block (static)
    n_groups = tb // SUBLANE            # 8 samples (4 chunks) per group

    # hoisted, loop-invariant weight / bias / constant loads
    w1 = w1_ref[...]                    # (27, 8)   conv1 im2col weight
    w2 = w2_ref[...]                    # (72, 16)  conv2 im2col weight
    b1 = aux_ref[0:1, 0:8]              # (1, 8)
    b2 = aux_ref[1:2, 0:16]             # (1, 16)
    lane_pad = jnp.zeros((SUBLANE, 64), jnp.float32)   # hoisted (no per-iter bcast)

    def conv_tower(x):
        # x: (CHUNK, Cin) -> (TBI, 64) pooled features (pos-major: pos*16 + c)
        a1 = jnp.maximum(
            jnp.dot(_im2col_3x3(x), w1,
                    preferred_element_type=jnp.float32) + b1, 0.0)   # 6x6 valid
        p1 = _maxpool2x2_s1(a1)                                      # 5x5 valid
        a2 = jnp.maximum(
            jnp.dot(_im2col_3x3(p1), w2,
                    preferred_element_type=jnp.float32) + b2, 0.0)   # 3x3 valid
        p2 = _maxpool2x2_s1(a2)                                      # 2x2 valid
        # pack the 4 valid positions (frame rows 0,1,8,9) onto lanes: row k*64
        # holds all 64 features of sample k, pos-major (pos = i*2 + j).
        g = jnp.concatenate([p2, _shift_rows(p2, 1)], axis=-1)       # (CHUNK, 32)
        g = jnp.concatenate([g, _shift_rows(g, W)], axis=-1)         # (CHUNK, 64)
        # static sublane slices (rows k*64) replace the old selection matmul
        rows = [g[k * HW:k * HW + 1, :] for k in range(TBI)]
        return jnp.concatenate(rows, axis=0)                         # (TBI, 64)

    def group_body(gi, carry):
        r0 = pl.multiple_of(gi * (GROUP * CHUNK), GROUP * CHUNK)
        feats = []
        for s in range(GROUP):          # unrolled: cross-chunk LLO visibility
            xs = x_ref[pl.ds(pl.multiple_of(r0 + s * CHUNK, CHUNK), CHUNK), :]
            feats.append(conv_tower(xs))
        feat = jnp.concatenate(feats, axis=0)                        # (8, 64)
        feat = jnp.concatenate([feat, lane_pad], axis=-1)            # (8, 128)
        # aligned, lane-dense unmasked store
        feat_ref[pl.ds(pl.multiple_of(gi * SUBLANE, SUBLANE), SUBLANE), :] = feat
        return carry

    lax.fori_loop(0, n_groups, group_body, 0)

    # ---- batched FC head: real GEMMs with M = tb ---- #
    feat = feat_ref[...]                                   # (tb, 128), lanes 64: zero
    wt, bf1 = aux_ref[2:3, :], aux_ref[3:4, :]
    bf2, bf3 = aux_ref[4:5, :], aux_ref[5:6, :]
    z = jnp.dot(feat, fw_ref[0:128, :], preferred_element_type=jnp.float32)
    z = jnp.maximum(z + t_ref[...] * wt + bf1, 0.0)        # relu(fc1), t col fused
    z = jnp.maximum(jnp.dot(z, fw_ref[128:256, :],
                            preferred_element_type=jnp.float32) + bf2, 0.0)
    o_ref[...] = jnp.dot(z, fw_ref[256:384, :],
                         preferred_element_type=jnp.float32) + bf3   # (tb, 128)


# --------------------------------- wrapper --------------------------------- #

def _round_up(a, m):
    return ((a + m - 1) // m) * m


def simple_score_pallas(x_nchw, t, kp, tile_b=128):
    B, C, Hh, Ww = x_nchw.shape
    assert (Hh, Ww) == (H, W)
    assert 9 * C <= 128, "im2col patch must fit in one lane tile"
    x_k = jnp.transpose(x_nchw, (0, 2, 3, 1)).reshape(B * HW, C).astype(jnp.float32)
    t_k = t.reshape(B, 1).astype(jnp.float32)

    # Right-size the block: tb is a multiple of 8 (sublane-aligned blocks), sized
    # to the padded batch (no padding up to a fixed 256), with >= 2 grid steps
    # whenever possible so the "parallel" axis can shard over v7x's two TCs.
    bp0 = _round_up(B, SUBLANE)
    min_steps = 2 if bp0 >= 2 * SUBLANE else 1
    n_steps = max(pl.cdiv(bp0, max(tile_b, SUBLANE)), min_steps)
    tb = _round_up(pl.cdiv(bp0, n_steps), SUBLANE)
    bp = n_steps * tb
    assert tb % TBI == 0 and tb % SUBLANE == 0
    if bp != B:
        x_k = jnp.pad(x_k, ((0, (bp - B) * HW), (0, 0)))
        t_k = jnp.pad(t_k, ((0, bp - B), (0, 0)))

    w1, w2, fw, aux = kp["w1"], kp["w2"], kp["fw"], kp["aux"]

    out = pl.pallas_call(
        simple_score_kernel,
        out_shape=jax.ShapeDtypeStruct((bp, 128), jnp.float32),
        grid=(bp // tb,),
        in_specs=[
            pl.BlockSpec((tb * HW, C), lambda b: (b, 0)),      # x slab
            pl.BlockSpec((tb, 1), lambda b: (b, 0)),           # t
            pl.BlockSpec(w1.shape, lambda b: (0, 0)),          # conv1 weight
            pl.BlockSpec(w2.shape, lambda b: (0, 0)),          # conv2 weight
            pl.BlockSpec(fw.shape, lambda b: (0, 0)),          # packed FC weights
            pl.BlockSpec(aux.shape, lambda b: (0, 0)),         # packed biases / wt
        ],
        out_specs=pl.BlockSpec((tb, 128), lambda b: (b, 0)),   # lane-dense store
        scratch_shapes=[pltpu.VMEM((tb, 128), jnp.float32)],   # feature scratch
        compiler_params=pltpu.CompilerParams(
            dimension_semantics=("parallel",)),                # megacore sharding
    )(x_k, t_k, w1, w2, fw, aux)
    return out[:B, :64].reshape(B, 1, 8, 8)


# --------------------- parameters + pure-JAX reference --------------------- #

def init_params(key, n_channels=3):
    ks = jax.random.split(key, 10)
    rnd = lambda k, shape, s: s * jax.random.normal(k, shape, jnp.float32)
    c1w = rnd(ks[0], (8, n_channels, 3, 3), 0.2)
    c1b = rnd(ks[1], (8,), 0.1)
    c2w = rnd(ks[2], (16, 8, 3, 3), 0.1)
    c2b = rnd(ks[3], (16,), 0.1)
    f1w = rnd(ks[4], (128, 16 * 2 * 2 + 1), 0.1)
    f1b = rnd(ks[5], (128,), 0.1)
    f2w = rnd(ks[6], (128, 128), 0.05)
    f2b = rnd(ks[7], (128,), 0.05)
    f3w = rnd(ks[8], (64, 128), 0.05)
    f3b = rnd(ks[9], (64,), 0.05)
    torch_p = dict(c1w=c1w, c1b=c1b, c2w=c2w, c2b=c2b,
                   f1w=f1w, f1b=f1b, f2w=f2w, f2b=f2b, f3w=f3w, f3b=f3b)

    # kernel-side layouts
    w1 = jnp.transpose(c1w, (2, 3, 1, 0)).reshape(9 * n_channels, 8)   # (27, 8)
    w2 = jnp.transpose(c2w, (2, 3, 1, 0)).reshape(9 * 8, 16)           # (72, 16)
    # fc1 weight rows permuted so row index = pos*16 + c  (torch flatten = c*4+pos)
    wf1 = jnp.transpose(f1w[:, :64].reshape(128, 16, 4), (2, 1, 0)).reshape(64, 128)
    fw = jnp.zeros((384, 128), jnp.float32)
    fw = fw.at[0:64, :].set(wf1)                 # rows 64:128 zero (feat pad lanes)
    fw = fw.at[128:256, :].set(f2w.T)
    fw = fw.at[256:384, :64].set(f3w.T)          # fc3 zero-padded 64 -> 128 lanes
    aux = jnp.zeros((8, 128), jnp.float32)
    aux = aux.at[0, :8].set(c1b)                 # conv1 bias
    aux = aux.at[1, :16].set(c2b)                # conv2 bias
    aux = aux.at[2, :].set(f1w[:, 64])           # fc1 t-column
    aux = aux.at[3, :].set(f1b)                  # fc1 bias
    aux = aux.at[4, :].set(f2b)                  # fc2 bias
    aux = aux.at[5, :64].set(f3b)                # fc3 bias (zero padded)
    kp = dict(w1=w1, w2=w2, fw=fw, aux=aux)
    return torch_p, kp


def reference_forward(x, t, p):
    dn = ("NCHW", "OIHW", "NCHW")
    y = lax.conv_general_dilated(x, p["c1w"], (1, 1), "VALID", dimension_numbers=dn)
    y = jnp.maximum(y + p["c1b"][None, :, None, None], 0.0)
    y = lax.reduce_window(y, -jnp.inf, lax.max, (1, 1, 2, 2), (1, 1, 1, 1), "VALID")
    y = lax.conv_general_dilated(y, p["c2w"], (1, 1), "VALID", dimension_numbers=dn)
    y = jnp.maximum(y + p["c2b"][None, :, None, None], 0.0)
    y = lax.reduce_window(y, -jnp.inf, lax.max, (1, 1, 2, 2), (1, 1, 1, 1), "VALID")
    flat = y.reshape(y.shape[0], -1)
    flat = jnp.concatenate([flat, t.reshape(-1, 1)], axis=-1)
    h = jnp.maximum(flat @ p["f1w"].T + p["f1b"], 0.0)
    h = jnp.maximum(h @ p["f2w"].T + p["f2b"], 0.0)
    h = h @ p["f3w"].T + p["f3b"]
    return h.reshape(-1, 1, 8, 8)


if __name__ == "__main__":
    key = jax.random.PRNGKey(0)
    kx, kt, kparam = jax.random.split(key, 3)
    B, n_channels = 20, 3
    x = jax.random.normal(kx, (B, n_channels, 8, 8), jnp.float32)
    t = jax.random.uniform(kt, (B,), jnp.float32)

    torch_p, kp = init_params(kparam, n_channels)
    ref = jax.block_until_ready(reference_forward(x, t, torch_p))

    # default path: right-sized tb=16, 2 grid steps (megacore-friendly)
    out1 = jax.block_until_ready(simple_score_pallas(x, t, kp))
    # small-tile path: tb=8, 3 grid steps (exercises multi-step grid)
    out2 = jax.block_until_ready(simple_score_pallas(x, t, kp, tile_b=8))

    assert out1.shape == (B, 1, 8, 8) and out2.shape == (B, 1, 8, 8)
    err1 = float(jnp.max(jnp.abs(out1 - ref)))
    err2 = float(jnp.max(jnp.abs(out2 - ref)))
    if max(err1, err2) > 2e-3:
        raise AssertionError(
            f"Pallas kernel mismatch vs reference: err(default)={err1}, err(tile8)={err2}")
    print("KERNEL_OK")
</pallas_src>

<mosaic_0001>
module attributes {stable_mosaic.version = 11 : i64} {
  func.func @simple_score_kernel(%arg0: i32, %arg1: memref<1024x3xf32, #tpu.memory_space<vmem>>, %arg2: memref<16x1xf32, #tpu.memory_space<vmem>>, %arg3: memref<27x8xf32, #tpu.memory_space<vmem>>, %arg4: memref<72x16xf32, #tpu.memory_space<vmem>>, %arg5: memref<384x128xf32, #tpu.memory_space<vmem>>, %arg6: memref<8x128xf32, #tpu.memory_space<vmem>>, %arg7: memref<16x128xf32, #tpu.memory_space<vmem>>, %arg8: memref<16x128xf32, #tpu.memory_space<vmem>>) attributes {dimension_semantics = [#tpu.dimension_semantics<parallel>], iteration_bounds = array<i64: 2>, scalar_prefetch = 0 : i64, scratch_operands = 1 : i64, tpu.core_type = #tpu.core_type<tc>, window_params = [{transform_indices = @transform_0, window_bounds = array<i64: 1024, 3>}, {transform_indices = @transform_1, window_bounds = array<i64: 16, 1>}, {pipeline_mode = #tpu.pipeline_mode<synchronous>, transform_indices = @transform_2, window_bounds = array<i64: 27, 8>}, {pipeline_mode = #tpu.pipeline_mode<synchronous>, transform_indices = @transform_3, window_bounds = array<i64: 72, 16>}, {pipeline_mode = #tpu.pipeline_mode<synchronous>, transform_indices = @transform_4, window_bounds = array<i64: 384, 128>}, {pipeline_mode = #tpu.pipeline_mode<synchronous>, transform_indices = @transform_5, window_bounds = array<i64: 8, 128>}, {transform_indices = @transform_6, window_bounds = array<i64: 16, 128>}]} {
    %c0 = arith.constant 0 : index
    %c0_0 = arith.constant 0 : index
    %0 = vector.load %arg3[%c0, %c0_0] : memref<27x8xf32, #tpu.memory_space<vmem>>, vector<27x8xf32>
    %c0_1 = arith.constant 0 : index
    %c0_2 = arith.constant 0 : index
    %1 = vector.load %arg4[%c0_1, %c0_2] : memref<72x16xf32, #tpu.memory_space<vmem>>, vector<72x16xf32>
    %c0_3 = arith.constant 0 : index
    %c0_4 = arith.constant 0 : index
    %2 = vector.load %arg6[%c0_3, %c0_4] : memref<8x128xf32, #tpu.memory_space<vmem>>, vector<1x8xf32>
    %c1 = arith.constant 1 : index
    %c0_5 = arith.constant 0 : index
    %3 = vector.load %arg6[%c1, %c0_5] : memref<8x128xf32, #tpu.memory_space<vmem>>, vector<1x16xf32>
    %cst = arith.constant 0.000000e+00 : f32
    %4 = vector.broadcast %cst : f32 to vector<8x64xf32>
    %c0_i32 = arith.constant 0 : i32
    %c2_i32 = arith.constant 2 : i32
    %5 = arith.addi %c0_i32, %c2_i32 : i32
    %c1_i32 = arith.constant 1 : i32
    scf.for %arg9 = %c0_i32 to %5 step %c1_i32  : i32 {
      %c512_i32 = arith.constant 512 : i32
      %33 = arith.muli %arg9, %c512_i32 : i32
      %34 = tpu.assume_multiple %33, 512 : i32
      %c0_i32_26 = arith.constant 0 : i32
      %35 = arith.addi %34, %c0_i32_26 : i32
      %36 = tpu.assume_multiple %35, 128 : i32
      %37 = arith.index_cast %36 : i32 to index
      %c0_27 = arith.constant 0 : index
      %38 = vector.load %arg1[%37, %c0_27] : memref<1024x3xf32, #tpu.memory_space<vmem>>, vector<128x3xf32>
      %c127_i32 = arith.constant 127 : i32
      %39 = tpu.dynamic_rotate %38 by %c127_i32 dim 0 : vector<128x3xf32>, i32 -> vector<128x3xf32>
      %c126_i32 = arith.constant 126 : i32
      %40 = tpu.dynamic_rotate %38 by %c126_i32 dim 0 : vector<128x3xf32>, i32 -> vector<128x3xf32>
      %41 = tpu.concatenate %38, %39, %40 in 1 : vector<128x3xf32>, vector<128x3xf32>, vector<128x3xf32> -> vector<128x9xf32>
      %c120_i32 = arith.constant 120 : i32
      %42 = tpu.dynamic_rotate %41 by %c120_i32 dim 0 : vector<128x9xf32>, i32 -> vector<128x9xf32>
      %c112_i32 = arith.constant 112 : i32
      %43 = tpu.dynamic_rotate %41 by %c112_i32 dim 0 : vector<128x9xf32>, i32 -> vector<128x9xf32>
      %44 = tpu.concatenate %41, %42, %43 in 1 : vector<128x9xf32>, vector<128x9xf32>, vector<128x9xf32> -> vector<128x27xf32>
      %cst_28 = arith.constant dense<0.000000e+00> : vector<128x8xf32>
      %45 = tpu.matmul %44, %0, %cst_28 {dimension_numbers = #tpu.dot_dimension_numbers<[1], [0], [0], [1], [0, 0, 1, 1], [], []>} : vector<128x27xf32>, vector<27x8xf32>, vector<128x8xf32> -> vector<128x8xf32>
      %46 = vector.broadcast %2 : vector<1x8xf32> to vector<128x8xf32>
      %47 = arith.addf %45, %46 : vector<128x8xf32>
      %cst_29 = arith.constant 0.000000e+00 : f32
      %48 = vector.broadcast %cst_29 : f32 to vector<128x8xf32>
      %49 = arith.maximumf %47, %48 : vector<128x8xf32>
      %c127_i32_30 = arith.constant 127 : i32
      %50 = tpu.dynamic_rotate %49 by %c127_i32_30 dim 0 : vector<128x8xf32>, i32 -> vector<128x8xf32>
      %51 = arith.maximumf %49, %50 : vector<128x8xf32>
      %c120_i32_31 = arith.constant 120 : i32
      %52 = tpu.dynamic_rotate %51 by %c120_i32_31 dim 0 : vector<128x8xf32>, i32 -> vector<128x8xf32>
      %53 = arith.maximumf %51, %52 : vector<128x8xf32>
      %c127_i32_32 = arith.constant 127 : i32
      %54 = tpu.dynamic_rotate %53 by %c127_i32_32 dim 0 : vector<128x8xf32>, i32 -> vector<128x8xf32>
      %c126_i32_33 = arith.constant 126 : i32
      %55 = tpu.dynamic_rotate %53 by %c126_i32_33 dim 0 : vector<128x8xf32>, i32 -> vector<128x8xf32>
      %56 = tpu.concatenate %53, %54, %55 in 1 : vector<128x8xf32>, vector<128x8xf32>, vector<128x8xf32> -> vector<128x24xf32>
      %c120_i32_34 = arith.constant 120 : i32
      %57 = tpu.dynamic_rotate %56 by %c120_i32_34 dim 0 : vector<128x24xf32>, i32 -> vector<128x24xf32>
      %c112_i32_35 = arith.constant 112 : i32
      %58 = tpu.dynamic_rotate %56 by %c112_i32_35 dim 0 : vector<128x24xf32>, i32 -> vector<128x24xf32>
      %59 = tpu.concatenate %56, %57, %58 in 1 : vector<128x24xf32>, vector<128x24xf32>, vector<128x24xf32> -> vector<128x72xf32>
      %cst_36 = arith.constant dense<0.000000e+00> : vector<128x16xf32>
      %60 = tpu.matmul %59, %1, %cst_36 {dimension_numbers = #tpu.dot_dimension_numbers<[1], [0], [0], [1], [0, 0, 1, 1], [], []>} : vector<128x72xf32>, vector<72x16xf32>, vector<128x16xf32> -> vector<128x16xf32>
      %61 = vector.broadcast %3 : vector<1x16xf32> to vector<128x16xf32>
      %62 = arith.addf %60, %61 : vector<128x16xf32>
      %cst_37 = arith.constant 0.000000e+00 : f32
      %63 = vector.broadcast %cst_37 : f32 to vector<128x16xf32>
      %64 = arith.maximumf %62, %63 : vector<128x16xf32>
      %c127_i32_38 = arith.constant 127 : i32
      %65 = tpu.dynamic_rotate %64 by %c127_i32_38 dim 0 : vector<128x16xf32>, i32 -> vector<128x16xf32>
      %66 = arith.maximumf %64, %65 : vector<128x16xf32>
      %c120_i32_39 = arith.constant 120 : i32
      %67 = tpu.dynamic_rotate %66 by %c120_i32_39 dim 0 : vector<128x16xf32>, i32 -> vector<128x16xf32>
      %68 = arith.maximumf %66, %67 : vector<128x16xf32>
      %c127_i32_40 = arith.constant 127 : i32
      %69 = tpu.dynamic_rotate %68 by %c127_i32_40 dim 0 : vector<128x16xf32>, i32 -> vector<128x16xf32>
      %70 = tpu.concatenate %68, %69 in 1 : vector<128x16xf32>, vector<128x16xf32> -> vector<128x32xf32>
      %c120_i32_41 = arith.constant 120 : i32
      %71 = tpu.dynamic_rotate %70 by %c120_i32_41 dim 0 : vector<128x32xf32>, i32 -> vector<128x32xf32>
      %72 = tpu.concatenate %70, %71 in 1 : vector<128x32xf32>, vector<128x32xf32> -> vector<128x64xf32>
      %73 = vector.extract_strided_slice %72 {offsets = [0, 0], sizes = [1, 64], strides = [1, 1]} : vector<128x64xf32> to vector<1x64xf32>
      %74 = vector.extract_strided_slice %72 {offsets = [64, 0], sizes = [1, 64], strides = [1, 1]} : vector<128x64xf32> to vector<1x64xf32>
      %75 = tpu.concatenate %73, %74 in 0 : vector<1x64xf32>, vector<1x64xf32> -> vector<2x64xf32>
      %c128_i32 = arith.constant 128 : i32
      %76 = arith.addi %34, %c128_i32 : i32
      %77 = tpu.assume_multiple %76, 128 : i32
      %78 = arith.index_cast %77 : i32 to index
      %c0_42 = arith.constant 0 : index
      %79 = vector.load %arg1[%78, %c0_42] : memref<1024x3xf32, #tpu.memory_space<vmem>>, vector<128x3xf32>
      %c127_i32_43 = arith.constant 127 : i32
      %80 = tpu.dynamic_rotate %79 by %c127_i32_43 dim 0 : vector<128x3xf32>, i32 -> vector<128x3xf32>
      %c126_i32_44 = arith.constant 126 : i32
      %81 = tpu.dynamic_rotate %79 by %c126_i32_44 dim 0 : vector<128x3xf32>, i32 -> vector<128x3xf32>
      %82 = tpu.concatenate %79, %80, %81 in 1 : vector<128x3xf32>, vector<128x3xf32>, vector<128x3xf32> -> vector<128x9xf32>
      %c120_i32_45 = arith.constant 120 : i32
      %83 = tpu.dynamic_rotate %82 by %c120_i32_45 dim 0 : vector<128x9xf32>, i32 -> vector<128x9xf32>
      %c112_i32_46 = arith.constant 112 : i32
      %84 = tpu.dynamic_rotate %82 by %c112_i32_46 dim 0 : vector<128x9xf32>, i32 -> vector<128x9xf32>
      %85 = tpu.concatenate %82, %83, %84 in 1 : vector<128x9xf32>, vector<128x9xf32>, vector<128x9xf32> -> vector<128x27xf32>
      %cst_47 = arith.constant dense<0.000000e+00> : vector<128x8xf32>
      %86 = tpu.matmul %85, %0, %cst_47 {dimension_numbers = #tpu.dot_dimension_numbers<[1], [0], [0], [1], [0, 0, 1, 1], [], []>} : vector<128x27xf32>, vector<27x8xf32>, vector<128x8xf32> -> vector<128x8xf32>
      %87 = vector.broadcast %2 : vector<1x8xf32> to vector<128x8xf32>
      %88 = arith.addf %86, %87 : vector<128x8xf32>
      %cst_48 = arith.constant 0.000000e+00 : f32
      %89 = vector.broadcast %cst_48 : f32 to vector<128x8xf32>
      %90 = arith.maximumf %88, %89 : vector<128x8xf32>
      %c127_i32_49 = arith.constant 127 : i32
      %91 = tpu.dynamic_rotate %90 by %c127_i32_49 dim 0 : vector<128x8xf32>, i32 -> vector<128x8xf32>
      %92 = arith.maximumf %90, %91 : vector<128x8xf32>
      %c120_i32_50 = arith.constant 120 : i32
      %93 = tpu.dynamic_rotate %92 by %c120_i32_50 dim 0 : vector<128x8xf32>, i32 -> vector<128x8xf32>
      %94 = arith.maximumf %92, %93 : vector<128x8xf32>
      %c127_i32_51 = arith.constant 127 : i32
      %95 = tpu.dynamic_rotate %94 by %c127_i32_51 dim 0 : vector<128x8xf32>, i32 -> vector<128x8xf32>
      %c126_i32_52 = arith.constant 126 : i32
      %96 = tpu.dynamic_rotate %94 by %c126_i32_52 dim 0 : vector<128x8xf32>, i32 -> vector<128x8xf32>
      %97 = tpu.concatenate %94, %95, %96 in 1 : vector<128x8xf32>, vector<128x8xf32>, vector<128x8xf32> -> vector<128x24xf32>
      %c120_i32_53 = arith.constant 120 : i32
      %98 = tpu.dynamic_rotate %97 by %c120_i32_53 dim 0 : vector<128x24xf32>, i32 -> vector<128x24xf32>
      %c112_i32_54 = arith.constant 112 : i32
      %99 = tpu.dynamic_rotate %97 by %c112_i32_54 dim 0 : vector<128x24xf32>, i32 -> vector<128x24xf32>
      %100 = tpu.concatenate %97, %98, %99 in 1 : vector<128x24xf32>, vector<128x24xf32>, vector<128x24xf32> -> vector<128x72xf32>
      %cst_55 = arith.constant dense<0.000000e+00> : vector<128x16xf32>
      %101 = tpu.matmul %100, %1, %cst_55 {dimension_numbers = #tpu.dot_dimension_numbers<[1], [0], [0], [1], [0, 0, 1, 1], [], []>} : vector<128x72xf32>, vector<72x16xf32>, vector<128x16xf32> -> vector<128x16xf32>
      %102 = vector.broadcast %3 : vector<1x16xf32> to vector<128x16xf32>
      %103 = arith.addf %101, %102 : vector<128x16xf32>
      %cst_56 = arith.constant 0.000000e+00 : f32
      %104 = vector.broadcast %cst_56 : f32 to vector<128x16xf32>
      %105 = arith.maximumf %103, %104 : vector<128x16xf32>
      %c127_i32_57 = arith.constant 127 : i32
      %106 = tpu.dynamic_rotate %105 by %c127_i32_57 dim 0 : vector<128x16xf32>, i32 -> vector<128x16xf32>
      %107 = arith.maximumf %105, %106 : vector<128x16xf32>
      %c120_i32_58 = arith.constant 120 : i32
      %108 = tpu.dynamic_rotate %107 by %c120_i32_58 dim 0 : vector<128x16xf32>, i32 -> vector<128x16xf32>
      %109 = arith.maximumf %107, %108 : vector<128x16xf32>
      %c127_i32_59 = arith.constant 127 : i32
      %110 = tpu.dynamic_rotate %109 by %c127_i32_59 dim 0 : vector<128x16xf32>, i32 -> vector<128x16xf32>
      %111 = tpu.concatenate %109, %110 in 1 : vector<128x16xf32>, vector<128x16xf32> -> vector<128x32xf32>
      %c120_i32_60 = arith.constant 120 : i32
      %112 = tpu.dynamic_rotate %111 by %c120_i32_60 dim 0 : vector<128x32xf32>, i32 -> vector<128x32xf32>
      %113 = tpu.concatenate %111, %112 in 1 : vector<128x32xf32>, vector<128x32xf32> -> vector<128x64xf32>
      %114 = vector.extract_strided_slice %113 {offsets = [0, 0], sizes = [1, 64], strides = [1, 1]} : vector<128x64xf32> to vector<1x64xf32>
      %115 = vector.extract_strided_slice %113 {offsets = [64, 0], sizes = [1, 64], strides = [1, 1]} : vector<128x64xf32> to vector<1x64xf32>
      %116 = tpu.concatenate %114, %115 in 0 : vector<1x64xf32>, vector<1x64xf32> -> vector<2x64xf32>
      %c256_i32 = arith.constant 256 : i32
      %117 = arith.addi %34, %c256_i32 : i32
      %118 = tpu.assume_multiple %117, 128 : i32
      %119 = arith.index_cast %118 : i32 to index
      %c0_61 = arith.constant 0 : index
      %120 = vector.load %arg1[%119, %c0_61] : memref<1024x3xf32, #tpu.memory_space<vmem>>, vector<128x3xf32>
      %c127_i32_62 = arith.constant 127 : i32
      %121 = tpu.dynamic_rotate %120 by %c127_i32_62 dim 0 : vector<128x3xf32>, i32 -> vector<128x3xf32>
      %c126_i32_63 = arith.constant 126 : i32
      %122 = tpu.dynamic_rotate %120 by %c126_i32_63 dim 0 : vector<128x3xf32>, i32 -> vector<128x3xf32>
      %123 = tpu.concatenate %120, %121, %122 in 1 : vector<128x3xf32>, vector<128x3xf32>, vector<128x3xf32> -> vector<128x9xf32>
      %c120_i32_64 = arith.constant 120 : i32
      %124 = tpu.dynamic_rotate %123 by %c120_i32_64 dim 0 : vector<128x9xf32>, i32 -> vector<128x9xf32>
      %c112_i32_65 = arith.constant 112 : i32
      %125 = tpu.dynamic_rotate %123 by %c112_i32_65 dim 0 : vector<128x9xf32>, i32 -> vector<128x9xf32>
      %126 = tpu.concatenate %123, %124, %125 in 1 : vector<128x9xf32>, vector<128x9xf32>, vector<128x9xf32> -> vector<128x27xf32>
      %cst_66 = arith.constant dense<0.000000e+00> : vector<128x8xf32>
      %127 = tpu.matmul %126, %0, %cst_66 {dimension_numbers = #tpu.dot_dimension_numbers<[1], [0], [0], [1], [0, 0, 1, 1], [], []>} : vector<128x27xf32>, vector<27x8xf32>, vector<128x8xf32> -> vector<128x8xf32>
      %128 = vector.broadcast %2 : vector<1x8xf32> to vector<128x8xf32>
      %129 = arith.addf %127, %128 : vector<128x8xf32>
      %cst_67 = arith.constant 0.000000e+00 : f32
      %130 = vector.broadcast %cst_67 : f32 to vector<128x8xf32>
      %131 = arith.maximumf %129, %130 : vector<128x8xf32>
      %c127_i32_68 = arith.constant 127 : i32
      %132 = tpu.dynamic_rotate %131 by %c127_i32_68 dim 0 : vector<128x8xf32>, i32 -> vector<128x8xf32>
      %133 = arith.maximumf %131, %132 : vector<128x8xf32>
      %c120_i32_69 = arith.constant 120 : i32
      %134 = tpu.dynamic_rotate %133 by %c120_i32_69 dim 0 : vector<128x8xf32>, i32 -> vector<128x8xf32>
      %135 = arith.maximumf %133, %134 : vector<128x8xf32>
      %c127_i32_70 = arith.constant 127 : i32
      %136 = tpu.dynamic_rotate %135 by %c127_i32_70 dim 0 : vector<128x8xf32>, i32 -> vector<128x8xf32>
      %c126_i32_71 = arith.constant 126 : i32
      %137 = tpu.dynamic_rotate %135 by %c126_i32_71 dim 0 : vector<128x8xf32>, i32 -> vector<128x8xf32>
      %138 = tpu.concatenate %135, %136, %137 in 1 : vector<128x8xf32>, vector<128x8xf32>, vector<128x8xf32> -> vector<128x24xf32>
      %c120_i32_72 = arith.constant 120 : i32
      %139 = tpu.dynamic_rotate %138 by %c120_i32_72 dim 0 : vector<128x24xf32>, i32 -> vector<128x24xf32>
      %c112_i32_73 = arith.constant 112 : i32
      %140 = tpu.dynamic_rotate %138 by %c112_i32_73 dim 0 : vector<128x24xf32>, i32 -> vector<128x24xf32>
      %141 = tpu.concatenate %138, %139, %140 in 1 : vector<128x24xf32>, vector<128x24xf32>, vector<128x24xf32> -> vector<128x72xf32>
      %cst_74 = arith.constant dense<0.000000e+00> : vector<128x16xf32>
      %142 = tpu.matmul %141, %1, %cst_74 {dimension_numbers = #tpu.dot_dimension_numbers<[1], [0], [0], [1], [0, 0, 1, 1], [], []>} : vector<128x72xf32>, vector<72x16xf32>, vector<128x16xf32> -> vector<128x16xf32>
      %143 = vector.broadcast %3 : vector<1x16xf32> to vector<128x16xf32>
      %144 = arith.addf %142, %143 : vector<128x16xf32>
      %cst_75 = arith.constant 0.000000e+00 : f32
      %145 = vector.broadcast %cst_75 : f32 to vector<128x16xf32>
      %146 = arith.maximumf %144, %145 : vector<128x16xf32>
      %c127_i32_76 = arith.constant 127 : i32
      %147 = tpu.dynamic_rotate %146 by %c127_i32_76 dim 0 : vector<128x16xf32>, i32 -> vector<128x16xf32>
      %148 = arith.maximumf %146, %147 : vector<128x16xf32>
      %c120_i32_77 = arith.constant 120 : i32
      %149 = tpu.dynamic_rotate %148 by %c120_i32_77 dim 0 : vector<128x16xf32>, i32 -> vector<128x16xf32>
      %150 = arith.maximumf %148, %149 : vector<128x16xf32>
      %c127_i32_78 = arith.constant 127 : i32
      %151 = tpu.dynamic_rotate %150 by %c127_i32_78 dim 0 : vector<128x16xf32>, i32 -> vector<128x16xf32>
      %152 = tpu.concatenate %150, %151 in 1 : vector<128x16xf32>, vector<128x16xf32> -> vector<128x32xf32>
      %c120_i32_79 = arith.constant 120 : i32
      %153 = tpu.dynamic_rotate %152 by %c120_i32_79 dim 0 : vector<128x32xf32>, i32 -> vector<128x32xf32>
      %154 = tpu.concatenate %152, %153 in 1 : vector<128x32xf32>, vector<128x32xf32> -> vector<128x64xf32>
      %155 = vector.extract_strided_slice %154 {offsets = [0, 0], sizes = [1, 64], strides = [1, 1]} : vector<128x64xf32> to vector<1x64xf32>
      %156 = vector.extract_strided_slice %154 {offsets = [64, 0], sizes = [1, 64], strides = [1, 1]} : vector<128x64xf32> to vector<1x64xf32>
      %157 = tpu.concatenate %155, %156 in 0 : vector<1x64xf32>, vector<1x64xf32> -> vector<2x64xf32>
      %c384_i32 = arith.constant 384 : i32
      %158 = arith.addi %34, %c384_i32 : i32
      %159 = tpu.assume_multiple %158, 128 : i32
      %160 = arith.index_cast %159 : i32 to index
      %c0_80 = arith.constant 0 : index
      %161 = vector.load %arg1[%160, %c0_80] : memref<1024x3xf32, #tpu.memory_space<vmem>>, vector<128x3xf32>
      %c127_i32_81 = arith.constant 127 : i32
      %162 = tpu.dynamic_rotate %161 by %c127_i32_81 dim 0 : vector<128x3xf32>, i32 -> vector<128x3xf32>
      %c126_i32_82 = arith.constant 126 : i32
      %163 = tpu.dynamic_rotate %161 by %c126_i32_82 dim 0 : vector<128x3xf32>, i32 -> vector<128x3xf32>
      %164 = tpu.concatenate %161, %162, %163 in 1 : vector<128x3xf32>, vector<128x3xf32>, vector<128x3xf32> -> vector<128x9xf32>
      %c120_i32_83 = arith.constant 120 : i32
      %165 = tpu.dynamic_rotate %164 by %c120_i32_83 dim 0 : vector<128x9xf32>, i32 -> vector<128x9xf32>
      %c112_i32_84 = arith.constant 112 : i32
      %166 = tpu.dynamic_rotate %164 by %c112_i32_84 dim 0 : vector<128x9xf32>, i32 -> vector<128x9xf32>
      %167 = tpu.concatenate %164, %165, %166 in 1 : vector<128x9xf32>, vector<128x9xf32>, vector<128x9xf32> -> vector<128x27xf32>
      %cst_85 = arith.constant dense<0.000000e+00> : vector<128x8xf32>
      %168 = tpu.matmul %167, %0, %cst_85 {dimension_numbers = #tpu.dot_dimension_numbers<[1], [0], [0], [1], [0, 0, 1, 1], [], []>} : vector<128x27xf32>, vector<27x8xf32>, vector<128x8xf32> -> vector<128x8xf32>
      %169 = vector.broadcast %2 : vector<1x8xf32> to vector<128x8xf32>
      %170 = arith.addf %168, %169 : vector<128x8xf32>
      %cst_86 = arith.constant 0.000000e+00 : f32
      %171 = vector.broadcast %cst_86 : f32 to vector<128x8xf32>
      %172 = arith.maximumf %170, %171 : vector<128x8xf32>
      %c127_i32_87 = arith.constant 127 : i32
      %173 = tpu.dynamic_rotate %172 by %c127_i32_87 dim 0 : vector<128x8xf32>, i32 -> vector<128x8xf32>
      %174 = arith.maximumf %172, %173 : vector<128x8xf32>
      %c120_i32_88 = arith.constant 120 : i32
      %175 = tpu.dynamic_rotate %174 by %c120_i32_88 dim 0 : vector<128x8xf32>, i32 -> vector<128x8xf32>
      %176 = arith.maximumf %174, %175 : vector<128x8xf32>
      %c127_i32_89 = arith.constant 127 : i32
      %177 = tpu.dynamic_rotate %176 by %c127_i32_89 dim 0 : vector<128x8xf32>, i32 -> vector<128x8xf32>
      %c126_i32_90 = arith.constant 126 : i32
      %178 = tpu.dynamic_rotate %176 by %c126_i32_90 dim 0 : vector<128x8xf32>, i32 -> vector<128x8xf32>
      %179 = tpu.concatenate %176, %177, %178 in 1 : vector<128x8xf32>, vector<128x8xf32>, vector<128x8xf32> -> vector<128x24xf32>
      %c120_i32_91 = arith.constant 120 : i32
      %180 = tpu.dynamic_rotate %179 by %c120_i32_91 dim 0 : vector<128x24xf32>, i32 -> vector<128x24xf32>
      %c112_i32_92 = arith.constant 112 : i32
      %181 = tpu.dynamic_rotate %179 by %c112_i32_92 dim 0 : vector<128x24xf32>, i32 -> vector<128x24xf32>
      %182 = tpu.concatenate %179, %180, %181 in 1 : vector<128x24xf32>, vector<128x24xf32>, vector<128x24xf32> -> vector<128x72xf32>
      %cst_93 = arith.constant dense<0.000000e+00> : vector<128x16xf32>
      %183 = tpu.matmul %182, %1, %cst_93 {dimension_numbers = #tpu.dot_dimension_numbers<[1], [0], [0], [1], [0, 0, 1, 1], [], []>} : vector<128x72xf32>, vector<72x16xf32>, vector<128x16xf32> -> vector<128x16xf32>
      %184 = vector.broadcast %3 : vector<1x16xf32> to vector<128x16xf32>
      %185 = arith.addf %183, %184 : vector<128x16xf32>
      %cst_94 = arith.constant 0.000000e+00 : f32
      %186 = vector.broadcast %cst_94 : f32 to vector<128x16xf32>
      %187 = arith.maximumf %185, %186 : vector<128x16xf32>
      %c127_i32_95 = arith.constant 127 : i32
      %188 = tpu.dynamic_rotate %187 by %c127_i32_95 dim 0 : vector<128x16xf32>, i32 -> vector<128x16xf32>
      %189 = arith.maximumf %187, %188 : vector<128x16xf32>
      %c120_i32_96 = arith.constant 120 : i32
      %190 = tpu.dynamic_rotate %189 by %c120_i32_96 dim 0 : vector<128x16xf32>, i32 -> vector<128x16xf32>
      %191 = arith.maximumf %189, %190 : vector<128x16xf32>
      %c127_i32_97 = arith.constant 127 : i32
      %192 = tpu.dynamic_rotate %191 by %c127_i32_97 dim 0 : vector<128x16xf32>, i32 -> vector<128x16xf32>
      %193 = tpu.concatenate %191, %192 in 1 : vector<128x16xf32>, vector<128x16xf32> -> vector<128x32xf32>
      %c120_i32_98 = arith.constant 120 : i32
      %194 = tpu.dynamic_rotate %193 by %c120_i32_98 dim 0 : vector<128x32xf32>, i32 -> vector<128x32xf32>
      %195 = tpu.concatenate %193, %194 in 1 : vector<128x32xf32>, vector<128x32xf32> -> vector<128x64xf32>
      %196 = vector.extract_strided_slice %195 {offsets = [0, 0], sizes = [1, 64], strides = [1, 1]} : vector<128x64xf32> to vector<1x64xf32>
      %197 = vector.extract_strided_slice %195 {offsets = [64, 0], sizes = [1, 64], strides = [1, 1]} : vector<128x64xf32> to vector<1x64xf32>
      %198 = tpu.concatenate %196, %197 in 0 : vector<1x64xf32>, vector<1x64xf32> -> vector<2x64xf32>
      %199 = tpu.concatenate %75, %116, %157, %198 in 0 : vector<2x64xf32>, vector<2x64xf32>, vector<2x64xf32>, vector<2x64xf32> -> vector<8x64xf32>
      %200 = tpu.concatenate %199, %4 in 1 : vector<8x64xf32>, vector<8x64xf32> -> vector<8x128xf32>
      %c8_i32 = arith.constant 8 : i32
      %201 = arith.muli %arg9, %c8_i32 : i32
      %202 = tpu.assume_multiple %201, 8 : i32
      %203 = arith.index_cast %202 : i32 to index
      %c0_99 = arith.constant 0 : index
      %204 = vector.load %arg8[%203, %c0_99] : memref<16x128xf32, #tpu.memory_space<vmem>>, vector<8x128xf32>
      tpu.vector_store %arg8[%203, %c0_99], %200 {strides = array<i32>} : memref<16x128xf32, #tpu.memory_space<vmem>>, vector<8x128xf32>,
    }
    %c2_i32_6 = arith.constant 2 : i32
    %c0_7 = arith.constant 0 : index
    %c0_8 = arith.constant 0 : index
    %6 = vector.load %arg8[%c0_7, %c0_8] : memref<16x128xf32, #tpu.memory_space<vmem>>, vector<16x128xf32>
    %c2 = arith.constant 2 : index
    %c0_9 = arith.constant 0 : index
    %7 = vector.load %arg6[%c2, %c0_9] : memref<8x128xf32, #tpu.memory_space<vmem>>, vector<1x128xf32>
    %c3 = arith.constant 3 : index
    %c0_10 = arith.constant 0 : index
    %8 = vector.load %arg6[%c3, %c0_10] : memref<8x128xf32, #tpu.memory_space<vmem>>, vector<1x128xf32>
    %c4 = arith.constant 4 : index
    %c0_11 = arith.constant 0 : index
    %9 = vector.load %arg6[%c4, %c0_11] : memref<8x128xf32, #tpu.memory_space<vmem>>, vector<1x128xf32>
    %c5 = arith.constant 5 : index
    %c0_12 = arith.constant 0 : index
    %10 = vector.load %arg6[%c5, %c0_12] : memref<8x128xf32, #tpu.memory_space<vmem>>, vector<1x128xf32>
    %c0_13 = arith.constant 0 : index
    %c0_14 = arith.constant 0 : index
    %11 = vector.load %arg5[%c0_13, %c0_14] : memref<384x128xf32, #tpu.memory_space<vmem>>, vector<128x128xf32>
    %cst_15 = arith.constant dense<0.000000e+00> : vector<16x128xf32>
    %12 = tpu.matmul %6, %11, %cst_15 {dimension_numbers = #tpu.dot_dimension_numbers<[1], [0], [0], [1], [0, 0, 1, 1], [], []>} : vector<16x128xf32>, vector<128x128xf32>, vector<16x128xf32> -> vector<16x128xf32>
    %c0_16 = arith.constant 0 : index
    %c0_17 = arith.constant 0 : index
    %13 = vector.load %arg2[%c0_16, %c0_17] : memref<16x1xf32, #tpu.memory_space<vmem>>, vector<16x1xf32>
    %14 = vector.broadcast %13 : vector<16x1xf32> to vector<16x128xf32>
    %15 = vector.broadcast %7 : vector<1x128xf32> to vector<16x128xf32>
    %16 = arith.mulf %14, %15 : vector<16x128xf32>
    %17 = arith.addf %12, %16 : vector<16x128xf32>
    %18 = vector.broadcast %8 : vector<1x128xf32> to vector<16x128xf32>
    %19 = arith.addf %17, %18 : vector<16x128xf32>
    %cst_18 = arith.constant 0.000000e+00 : f32
    %20 = vector.broadcast %cst_18 : f32 to vector<16x128xf32>
    %21 = arith.maximumf %19, %20 : vector<16x128xf32>
    %c128 = arith.constant 128 : index
    %c0_19 = arith.constant 0 : index
    %22 = vector.load %arg5[%c128, %c0_19] : memref<384x128xf32, #tpu.memory_space<vmem>>, vector<128x128xf32>
    %cst_20 = arith.constant dense<0.000000e+00> : vector<16x128xf32>
    %23 = tpu.matmul %21, %22, %cst_20 {dimension_numbers = #tpu.dot_dimension_numbers<[1], [0], [0], [1], [0, 0, 1, 1], [], []>} : vector<16x128xf32>, vector<128x128xf32>, vector<16x128xf32> -> vector<16x128xf32>
    %24 = vector.broadcast %9 : vector<1x128xf32> to vector<16x128xf32>
    %25 = arith.addf %23, %24 : vector<16x128xf32>
    %cst_21 = arith.constant 0.000000e+00 : f32
    %26 = vector.broadcast %cst_21 : f32 to vector<16x128xf32>
    %27 = arith.maximumf %25, %26 : vector<16x128xf32>
    %c256 = arith.constant 256 : index
    %c0_22 = arith.constant 0 : index
    %28 = vector.load %arg5[%c256, %c0_22] : memref<384x128xf32, #tpu.memory_space<vmem>>, vector<128x128xf32>
    %cst_23 = arith.constant dense<0.000000e+00> : vector<16x128xf32>
    %29 = tpu.matmul %27, %28, %cst_23 {dimension_numbers = #tpu.dot_dimension_numbers<[1], [0], [0], [1], [0, 0, 1, 1], [], []>} : vector<16x128xf32>, vector<128x128xf32>, vector<16x128xf32> -> vector<16x128xf32>
    %30 = vector.broadcast %10 : vector<1x128xf32> to vector<16x128xf32>
    %31 = arith.addf %29, %30 : vector<16x128xf32>
    %c0_24 = arith.constant 0 : index
    %c0_25 = arith.constant 0 : index
    %32 = vector.load %arg7[%c0_24, %c0_25] : memref<16x128xf32, #tpu.memory_space<vmem>>, vector<16x128xf32>
    tpu.vector_store %arg7[%c0_24, %c0_25], %31 {strides = array<i32>} : memref<16x128xf32, #tpu.memory_space<vmem>>, vector<16x128xf32>,
    return
  }
  func.func @transform_0(%arg0: i32) -> (i32, i32) {
    %c0_i32 = arith.constant 0 : i32
    %c0_i32_0 = arith.constant 0 : i32
    return %arg0, %c0_i32 : i32, i32
  }
  func.func @transform_1(%arg0: i32) -> (i32, i32) {
    %c0_i32 = arith.constant 0 : i32
    %c0_i32_0 = arith.constant 0 : i32
    return %arg0, %c0_i32 : i32, i32
  }
  func.func @transform_2(%arg0: i32) -> (i32, i32) {
    %c0_i32 = arith.constant 0 : i32
    %c0_i32_0 = arith.constant 0 : i32
    %c0_i32_1 = arith.constant 0 : i32
    return %c0_i32, %c0_i32_0 : i32, i32
  }
  func.func @transform_3(%arg0: i32) -> (i32, i32) {
    %c0_i32 = arith.constant 0 : i32
    %c0_i32_0 = arith.constant 0 : i32
    %c0_i32_1 = arith.constant 0 : i32
    return %c0_i32, %c0_i32_0 : i32, i32
  }
  func.func @transform_4(%arg0: i32) -> (i32, i32) {
    %c0_i32 = arith.constant 0 : i32
    %c0_i32_0 = arith.constant 0 : i32
    %c0_i32_1 = arith.constant 0 : i32
    return %c0_i32, %c0_i32_0 : i32, i32
  }
  func.func @transform_5(%arg0: i32) -> (i32, i32) {
    %c0_i32 = arith.constant 0 : i32
    %c0_i32_0 = arith.constant 0 : i32
    %c0_i32_1 = arith.constant 0 : i32
    return %c0_i32, %c0_i32_0 : i32, i32
  }
  func.func @transform_6(%arg0: i32) -> (i32, i32) {
    %c0_i32 = arith.constant 0 : i32
    %c0_i32_0 = arith.constant 0 : i32
    return %arg0, %c0_i32 : i32, i32
  }
}

</mosaic_0001>

<llo_original>
// kernel: tpu_custom_call.1
$region0: #{tpu_custom_call.1}
  #allocation0 [shape = 'u32[]', space=smem, size = 0x4, offset = 0x4, fixed_abs, tag = 'smem constant byte address 0x4 - core index']
  #allocation1 [shape = 'u32[72,128]{1,0:T(1,128)}', space=vmem, size = 0x9000, scoped, tag = 'internal scratch']
  #allocation2 [shape = 'f32[16,128]{1,0:T(8,128)}', space=vmem, size = 0x2000, scoped, tag = 'scratch operand']
  %s0 = inlined_call_operand.vmem [shape: f32[2048,3], index: 0, kind: input, shape index: {}]
  %s1 = inlined_call_operand.vmem [shape: f32[32,1], index: 1, kind: input, shape index: {}]
  %s2 = inlined_call_operand.vmem [shape: f32[27,8], index: 2, kind: input, shape index: {}]
  %s3 = inlined_call_operand.vmem [shape: f32[72,16], index: 3, kind: input, shape index: {}]
  %s4 = inlined_call_operand.vmem [shape: f32[384,128], index: 4, kind: input, shape index: {}]
  %s5 = inlined_call_operand.vmem [shape: f32[8,128], index: 5, kind: input, shape index: {}]
  %s6 = inlined_call_operand.hbm [shape: f32[32,128], index: 6, kind: output, shape index: {}]
  %s7 = sld [smem:[#allocation0]]
  $region64: #{tpu_custom_call.1} parent=0
    _
  %s9 = ssub.s32 1, %s7
  %s10 = scalar_select 0, %s9, %s7
  $region1: #{tpu_custom_call.1} parent=0
    #allocation3 [shape = 'u8[16384]{0}', space=vmem, size = 0x4000, scoped, tag = 'output window, operand 0']
    #allocation4 [shape = 's32[2]{0}', space=sflag, size = 0x8, scoped, tag = 'scoped memory for tpu_custom_call.1']
    %11 = vsyncpa [#allocation4], 0
    %s12 = scalar_lea.sflag [#allocation4], 1
    %13 = vsyncpa %s12, 0
    loop: start=0, step=1, limit=4
    $region2: #{tpu_custom_call.1} parent=1 // loop_pre_header
      _
    $region3: #{tpu_custom_call.1} parent=1 // loop_header
      %s15 = sphi 0, %s19
      %p16 = scmp.ge.s32.totalorder %s15, 4
      %s25 = sphi 0, %s27
      %s28 = sphi 0, %s25
      %s29 = sphi 0, %s28
      %s45 = sphi 0, %s29
      %s51 = sphi 0, %s53
      %s54 = sphi 0, %s51
      %s55 = sphi 0, %s54
      %s71 = sphi 0, %s55
      %s75 = sphi 0, %s75
      %s77 = sphi 0, %s75
      %s78 = sphi 0, %s77
      %s92 = sphi 0, %s78
      %s96 = sphi 0, %s96
      %s98 = sphi 0, %s96
      %s99 = sphi 0, %s98
      %s113 = sphi 0, %s99
      %s117 = sphi 0, %s117
      %s119 = sphi 0, %s117
      %s120 = sphi 0, %s119
      %s134 = sphi 0, %s120
      %s138 = sphi 0, %s138
      %s140 = sphi 0, %s138
      %s141 = sphi 0, %s140
      %s155 = sphi 0, %s141
      %s161 = sphi 0, %s163
      %s164 = sphi 0, %s161
      %s165 = sphi 0, %s164
      %s181 = sphi 0, %s165
    $region4: #{tpu_custom_call.1} parent=1 // loop_header_branch
      %18 = sbr.rel (%p16) target = $region8
    $region5: #{tpu_custom_call.1} parent=1 // loop_body
      %s20 = ssub.s32 %s15, 1
      %s21 = ssub.s32 %s15, 2
      %s22 = sadd.s32 %s15, 1
      %s23 = ssub.s32 %s15, %s22
      %p24 = scmp.eq.s32.totalorder %s23, 0
      %s26 = sadd.s32 %s25, 1
      %s27 = scalar_select %p24, %s25, %s26
      %p30 = pneg %p24
      %p31 = scmp.eq.s32.totalorder %s15, 1
      %p32 = por %p30, %p31
      %p33 = scmp.ne.s32.totalorder %s25, %s28
      %p34 = scmp.eq.s32.totalorder %s15, 0
      %p35 = por %p33, %p34
      %p36 = scmp.ne.s32.totalorder %s25, %s28
      %p37 = scmp.eq.s32.totalorder %s20, 1
      %p38 = por %p36, %p37
      %p39 = scmp.ne.s32.totalorder %s28, %s29
      %p40 = scmp.eq.s32.totalorder %s20, 0
      %p41 = por %p39, %p40
      %p42 = scmp.ne.s32.totalorder %s28, %s29
      %p43 = scmp.eq.s32.totalorder %s21, 1
      %p44 = por %p42, %p43
      %p46 = scmp.ne.s32.totalorder %s29, %s45
      %p47 = scmp.eq.s32.totalorder %s21, 0
      %p48 = por %p46, %p47
      %s49 = ssub.s32 %s15, %s22
      %p50 = scmp.eq.s32.totalorder %s49, 0
      %s52 = sadd.s32 %s51, 1
      %s53 = scalar_select %p50, %s51, %s52
      %p56 = pneg %p50
      %p57 = scmp.eq.s32.totalorder %s15, 1
      %p58 = por %p56, %p57
      %p59 = scmp.ne.s32.totalorder %s51, %s54
      %p60 = scmp.eq.s32.totalorder %s15, 0
      %p61 = por %p59, %p60
      %p62 = scmp.ne.s32.totalorder %s51, %s54
      %p63 = scmp.eq.s32.totalorder %s20, 1
      %p64 = por %p62, %p63
      %p65 = scmp.ne.s32.totalorder %s54, %s55
      %p66 = scmp.eq.s32.totalorder %s20, 0
      %p67 = por %p65, %p66
      %p68 = scmp.ne.s32.totalorder %s54, %s55
      %p69 = scmp.eq.s32.totalorder %s21, 1
      %p70 = por %p68, %p69
      %p72 = scmp.ne.s32.totalorder %s55, %s71
      %p73 = scmp.eq.s32.totalorder %s21, 0
      %p74 = por %p72, %p73
      %s76 = sadd.s32 %s75, 1
      %p79 = scmp.eq.s32.totalorder %s15, 1
      %p80 = scmp.ne.s32.totalorder %s75, %s77
      %p81 = scmp.eq.s32.totalorder %s15, 0
      %p82 = por %p80, %p81
      %p83 = scmp.ne.s32.totalorder %s75, %s77
      %p84 = scmp.eq.s32.totalorder %s20, 1
      %p85 = por %p83, %p84
      %p86 = scmp.ne.s32.totalorder %s77, %s78
      %p87 = scmp.eq.s32.totalorder %s20, 0
      %p88 = por %p86, %p87
      %p89 = scmp.ne.s32.totalorder %s77, %s78
      %p90 = scmp.eq.s32.totalorder %s21, 1
      %p91 = por %p89, %p90
      %p93 = scmp.ne.s32.totalorder %s78, %s92
      %p94 = scmp.eq.s32.totalorder %s21, 0
      %p95 = por %p93, %p94
      %s97 = sadd.s32 %s96, 1
      %p100 = scmp.eq.s32.totalorder %s15, 1
      %p101 = scmp.ne.s32.totalorder %s96, %s98
      %p102 = scmp.eq.s32.totalorder %s15, 0
      %p103 = por %p101, %p102
      %p104 = scmp.ne.s32.totalorder %s96, %s98
      %p105 = scmp.eq.s32.totalorder %s20, 1
      %p106 = por %p104, %p105
      %p107 = scmp.ne.s32.totalorder %s98, %s99
      %p108 = scmp.eq.s32.totalorder %s20, 0
      %p109 = por %p107, %p108
      %p110 = scmp.ne.s32.totalorder %s98, %s99
      %p111 = scmp.eq.s32.totalorder %s21, 1
      %p112 = por %p110, %p111
      %p114 = scmp.ne.s32.totalorder %s99, %s113
      %p115 = scmp.eq.s32.totalorder %s21, 0
      %p116 = por %p114, %p115
      %s118 = sadd.s32 %s117, 1
      %p121 = scmp.eq.s32.totalorder %s15, 1
      %p122 = scmp.ne.s32.totalorder %s117, %s119
      %p123 = scmp.eq.s32.totalorder %s15, 0
      %p124 = por %p122, %p123
      %p125 = scmp.ne.s32.totalorder %s117, %s119
      %p126 = scmp.eq.s32.totalorder %s20, 1
      %p127 = por %p125, %p126
      %p128 = scmp.ne.s32.totalorder %s119, %s120
      %p129 = scmp.eq.s32.totalorder %s20, 0
      %p130 = por %p128, %p129
      %p131 = scmp.ne.s32.totalorder %s119, %s120
      %p132 = scmp.eq.s32.totalorder %s21, 1
      %p133 = por %p131, %p132
      %p135 = scmp.ne.s32.totalorder %s120, %s134
      %p136 = scmp.eq.s32.totalorder %s21, 0
      %p137 = por %p135, %p136
      %s139 = sadd.s32 %s138, 1
      %p142 = scmp.eq.s32.totalorder %s15, 1
      %p143 = scmp.ne.s32.totalorder %s138, %s140
      %p144 = scmp.eq.s32.totalorder %s15, 0
      %p145 = por %p143, %p144
      %p146 = scmp.ne.s32.totalorder %s138, %s140
      %p147 = scmp.eq.s32.totalorder %s20, 1
      %p148 = por %p146, %p147
      %p149 = scmp.ne.s32.totalorder %s140, %s141
      %p150 = scmp.eq.s32.totalorder %s20, 0
      %p151 = por %p149, %p150
      %p152 = scmp.ne.s32.totalorder %s140, %s141
      %p153 = scmp.eq.s32.totalorder %s21, 1
      %p154 = por %p152, %p153
      %p156 = scmp.ne.s32.totalorder %s141, %s155
      %p157 = scmp.eq.s32.totalorder %s21, 0
      %p158 = por %p156, %p157
      %s159 = ssub.s32 %s15, %s22
      %p160 = scmp.eq.s32.totalorder %s159, 0
      %s162 = sadd.s32 %s161, 1
      %s163 = scalar_select %p160, %s161, %s162
      %p166 = pneg %p160
      %p167 = scmp.eq.s32.totalorder %s15, 1
      %p168 = por %p166, %p167
      %p169 = scmp.ne.s32.totalorder %s161, %s164
      %p170 = scmp.eq.s32.totalorder %s15, 0
      %p171 = por %p169, %p170
      %p172 = scmp.ne.s32.totalorder %s161, %s164
      %p173 = scmp.eq.s32.totalorder %s20, 1
      %p174 = por %p172, %p173
      %p175 = scmp.ne.s32.totalorder %s164, %s165
      %p176 = scmp.eq.s32.totalorder %s20, 0
      %p177 = por %p175, %p176
      %p178 = scmp.ne.s32.totalorder %s164, %s165
      %p179 = scmp.eq.s32.totalorder %s21, 1
      %p180 = por %p178, %p179
      %p182 = scmp.ne.s32.totalorder %s165, %s181
      %p183 = scmp.eq.s32.totalorder %s21, 0
      %p184 = por %p182, %p183
      %p185 = scmp.le.s32.totalorder 1, %s15
      %p186 = scmp.lt.s32.totalorder %s15, 3
      %p187 = pnand %p185, %p186
      %p188 = pneg %p187
      // Predicated region
      $region9: #{tpu_custom_call.1} parent=5 // pred_check
        _
      $region10: #{tpu_custom_call.1} parent=5 // pred_check_branch
        %190 = sbr.rel (%p187) target = $region12
      $region11: #{tpu_custom_call.1} parent=5 // pred_region
        %s191 = ssub.s32 %s15, 1
        // Predicated region
        $region13: #{tpu_custom_call.1} parent=11 // pred_check
          %p192 = pneg %p88
        $region14: #{tpu_custom_call.1} parent=11 // pred_check_branch
          %194 = sbr.rel (%p192) target = $region16
        $region15: #{tpu_custom_call.1} parent=11 // pred_region
          _
        $region16: #{tpu_custom_call.1} parent=11 // pred_fallthru
          _
        // Predicated region
        $region17: #{tpu_custom_call.1} parent=11 // pred_check
          %p195 = pneg %p109
        $region18: #{tpu_custom_call.1} parent=11 // pred_check_branch
          %197 = sbr.rel (%p195) target = $region20
        $region19: #{tpu_custom_call.1} parent=11 // pred_region
          _
        $region20: #{tpu_custom_call.1} parent=11 // pred_fallthru
          _
        // Predicated region
        $region21: #{tpu_custom_call.1} parent=11 // pred_check
          %p198 = pneg %p130
        $region22: #{tpu_custom_call.1} parent=11 // pred_check_branch
          %200 = sbr.rel (%p198) target = $region24
        $region23: #{tpu_custom_call.1} parent=11 // pred_region
          _
        $region24: #{tpu_custom_call.1} parent=11 // pred_fallthru
          _
        // Predicated region
        $region25: #{tpu_custom_call.1} parent=11 // pred_check
          %p201 = pneg %p151
        $region26: #{tpu_custom_call.1} parent=11 // pred_check_branch
          %203 = sbr.rel (%p201) target = $region28
        $region27: #{tpu_custom_call.1} parent=11 // pred_region
          _
        $region28: #{tpu_custom_call.1} parent=11 // pred_fallthru
          _
      $region12: #{tpu_custom_call.1} parent=5 // pred_fallthru
        _
      %p204 = scmp.lt.s32.totalorder %s15, 2
      // Predicated region
      $region29: #{tpu_custom_call.1} parent=5 // pred_check
        %p205 = pneg %p204
      $region30: #{tpu_custom_call.1} parent=5 // pred_check_branch
        %207 = sbr.rel (%p205) target = $region32
      $region31: #{tpu_custom_call.1} parent=5 // pred_region
        // Predicated region
        $region33: #{tpu_custom_call.1} parent=31 // pred_check
          %p208 = pneg %p35
        $region34: #{tpu_custom_call.1} parent=31 // pred_check_branch
          %210 = sbr.rel (%p208) target = $region36
        $region35: #{tpu_custom_call.1} parent=31 // pred_region
          %s211 = smul.u32 128, %s15
          %p212 = scmp.lt.s32.totalorder %s211, 255
          %s213 = scalar_select %p212, %s211, 255
          %s214 = smul.addr %s213, 8
          %s215 = scalar_lea.vmem %s0, %s214
          %s216 = smul.u32 128, %s15
        $region36: #{tpu_custom_call.1} parent=31 // pred_fallthru
          _
        // Predicated region
        $region37: #{tpu_custom_call.1} parent=31 // pred_check
          %p217 = pneg %p61
        $region38: #{tpu_custom_call.1} parent=31 // pred_check_branch
          %219 = sbr.rel (%p217) target = $region40
        $region39: #{tpu_custom_call.1} parent=31 // pred_region
          %s220 = smul.u32 2, %s15
          %p221 = scmp.lt.s32.totalorder %s220, 3
          %s222 = scalar_select %p221, %s220, 3
          %s223 = smul.addr %s222, 8
          %s224 = scalar_lea.vmem %s1, %s223
          %s225 = smul.u32 2, %s15
        $region40: #{tpu_custom_call.1} parent=31 // pred_fallthru
          _
      $region32: #{tpu_custom_call.1} parent=5 // pred_fallthru
        _
      %p226 = scmp.le.s32.totalorder 1, %s15
      %p227 = scmp.lt.s32.totalorder %s15, 3
      %p228 = pnand %p226, %p227
      %p229 = pneg %p228
      // Predicated region
      $region41: #{tpu_custom_call.1} parent=5 // pred_check
        _
      $region42: #{tpu_custom_call.1} parent=5 // pred_check_branch
        %231 = sbr.rel (%p228) target = $region44
      $region43: #{tpu_custom_call.1} parent=5 // pred_region
        %s232 = ssub.s32 %s15, 1
        %s233 = smul.u32 128, %s20
        %p234 = scmp.lt.s32.totalorder %s233, 255
        %s235 = scalar_select %p234, %s233, 255
        %s236 = smul.addr %s235, 8
        %s237 = scalar_lea.vmem %s0, %s236
        %p238 = pneg %p41
        %p239 = pneg %p38
        %s240 = smul.u32 2, %s20
        %p241 = scmp.lt.s32.totalorder %s240, 3
        %s242 = scalar_select %p241, %s240, 3
        %s243 = smul.addr %s242, 8
        %s244 = scalar_lea.vmem %s1, %s243
        %p245 = pneg %p67
        %p246 = pneg %p64
        %p247 = pneg %p88
        %p248 = pneg %p85
        %p249 = pneg %p109
        %p250 = pneg %p106
        %p251 = pneg %p130
        %p252 = pneg %p127
        %p253 = pneg %p151
        %p254 = pneg %p148
        %p255 = pneg %p177
        %p256 = pneg %p174
        %s257 = sand.u32 %s164, 1
        %s258 = scalar_lea.sflag [#allocation4], %s257
        %s259 = sand.u32 %s164, 1
        %s260 = smul.addr %s259, 16
        %s261 = scalar_lea.vmem [#allocation3], %s260
        %s262 = smul.u32 128, %s20
        %p263 = scmp.lt.s32.totalorder %s262, 255
        %s264 = scalar_select %p263, %s262, 255
        %s265 = smul.addr %s264, 8
        %s266 = scalar_lea.vmem %s0, %s265
        %s267 = smul.u32 128, %s20
        %s268 = smul.u32 2, %s20
        %p269 = scmp.lt.s32.totalorder %s268, 3
        %s270 = scalar_select %p269, %s268, 3
        %s271 = smul.addr %s270, 8
        %s272 = scalar_lea.vmem %s1, %s271
        %s273 = smul.u32 2, %s20
        %s274 = smul.u32 2, %s20
        %v275 = vld [vmem:[%s2] sm:$0xff]
        %v276 = vld [vmem:[%s2 + $0x8] sm:$0xff]
        %v277 = vld [vmem:[%s2 + $0x10] sm:$0xff]
        %v278 = vld [vmem:[%s2 + $0x18] sm:$0x7]
        %v279 = vld [vmem:[%s3] sm:$0xff]
        %v280 = vld [vmem:[%s3 + $0x8] sm:$0xff]
        %v281 = vld [vmem:[%s3 + $0x10] sm:$0xff]
        %v282 = vld [vmem:[%s3 + $0x18] sm:$0xff]
        %v283 = vld [vmem:[%s3 + $0x20] sm:$0xff]
        %v284 = vld [vmem:[%s3 + $0x28] sm:$0xff]
        %v285 = vld [vmem:[%s3 + $0x30] sm:$0xff]
        %v286 = vld [vmem:[%s3 + $0x38] sm:$0xff]
        %v287 = vld [vmem:[%s3 + $0x40] sm:$0xff]
        %v288 = vld [vmem:[%s5] sm:$0x1]
        %v289 = vld [vmem:[%s5 + $0x1] sm:$0x1]
        loop: start=0, step=1, limit=2
        $region45: #{tpu_custom_call.1} parent=43 // loop_pre_header
          _
        $region46: #{tpu_custom_call.1} parent=43 // loop_header
          %s291 = sphi 0, %s295
          %p292 = scmp.ge.s32.totalorder %s291, 2
        $region47: #{tpu_custom_call.1} parent=43 // loop_header_branch
          %294 = sbr.rel (%p292) target = $region51
        $region48: #{tpu_custom_call.1} parent=43 // loop_body
          %s296 = smul.u32 %s291, 512
          %s297 = scalar_lea.vmem %s266, %s296
          %v298 = vld [vmem:[%s297] sm:$0xff]
          %v299 = vld [vmem:[%s297 + $0x8] sm:$0xff]
          %v300 = vld [vmem:[%s297 + $0x10] sm:$0xff]
          %v301 = vld [vmem:[%s297 + $0x18] sm:$0xff]
          %v302 = vld [vmem:[%s297 + $0x20] sm:$0xff]
          %v303 = vld [vmem:[%s297 + $0x28] sm:$0xff]
          %v304 = vld [vmem:[%s297 + $0x30] sm:$0xff]
          %v305 = vld [vmem:[%s297 + $0x38] sm:$0xff]
          %v306 = vld [vmem:[%s297 + $0x40] sm:$0xff]
          %v307 = vld [vmem:[%s297 + $0x48] sm:$0xff]
          %v308 = vld [vmem:[%s297 + $0x50] sm:$0xff]
          %v309 = vld [vmem:[%s297 + $0x58] sm:$0xff]
          %v310 = vld [vmem:[%s297 + $0x60] sm:$0xff]
          %v311 = vld [vmem:[%s297 + $0x68] sm:$0xff]
          %v312 = vld [vmem:[%s297 + $0x70] sm:$0xff]
          %v313 = vld [vmem:[%s297 + $0x78] sm:$0xff]
          %v314 = vrot.slane %v298, 1
          %v315 = vrot.slane %v299, 1
          %v316 = vrot.slane %v300, 1
          %v317 = vrot.slane %v301, 1
          %v318 = vrot.slane %v302, 1
          %v319 = vrot.slane %v303, 1
          %v320 = vrot.slane %v304, 1
          %v321 = vrot.slane %v305, 1
          %v322 = vrot.slane %v306, 1
          %v323 = vrot.slane %v307, 1
          %v324 = vrot.slane %v308, 1
          %v325 = vrot.slane %v309, 1
          %v326 = vrot.slane %v310, 1
          %v327 = vrot.slane %v311, 1
          %v328 = vrot.slane %v312, 1
          %v329 = vrot.slane %v313, 1
          %v330 = vlaneseq
          %v331 = vshrl.u32 %v330, 7
          %vm332 = vcmp.lt.s32.totalorder %v331, 7
          %v333 = vsel %vm332, %v328, %v329
          %v334 = vsel %vm332, %v327, %v328
          %v335 = vsel %vm332, %v326, %v327
          %v336 = vsel %vm332, %v325, %v326
          %v337 = vsel %vm332, %v324, %v325
          %v338 = vsel %vm332, %v323, %v324
          %v339 = vsel %vm332, %v322, %v323
          %v340 = vsel %vm332, %v321, %v322
          %v341 = vsel %vm332, %v320, %v321
          %v342 = vsel %vm332, %v319, %v320
          %v343 = vsel %vm332, %v318, %v319
          %v344 = vsel %vm332, %v317, %v318
          %v345 = vsel %vm332, %v316, %v317
          %v346 = vsel %vm332, %v315, %v316
          %v347 = vsel %vm332, %v314, %v315
          %v348 = vsel %vm332, %v329, %v314
          %v349 = vrot.slane %v298, 2
          %v350 = vrot.slane %v299, 2
          %v351 = vrot.slane %v300, 2
          %v352 = vrot.slane %v301, 2
          %v353 = vrot.slane %v302, 2
          %v354 = vrot.slane %v303, 2
          %v355 = vrot.slane %v304, 2
          %v356 = vrot.slane %v305, 2
          %v357 = vrot.slane %v306, 2
          %v358 = vrot.slane %v307, 2
          %v359 = vrot.slane %v308, 2
          %v360 = vrot.slane %v309, 2
          %v361 = vrot.slane %v310, 2
          %v362 = vrot.slane %v311, 2
          %v363 = vrot.slane %v312, 2
          %v364 = vrot.slane %v313, 2
          %vm365 = vcmp.lt.s32.totalorder %v331, 6
          %v366 = vsel %vm365, %v363, %v364
          %v367 = vsel %vm365, %v362, %v363
          %v368 = vsel %vm365, %v361, %v362
          %v369 = vsel %vm365, %v360, %v361
          %v370 = vsel %vm365, %v359, %v360
          %v371 = vsel %vm365, %v358, %v359
          %v372 = vsel %vm365, %v357, %v358
          %v373 = vsel %vm365, %v356, %v357
          %v374 = vsel %vm365, %v355, %v356
          %v375 = vsel %vm365, %v354, %v355
          %v376 = vsel %vm365, %v353, %v354
          %v377 = vsel %vm365, %v352, %v353
          %v378 = vsel %vm365, %v351, %v352
          %v379 = vsel %vm365, %v350, %v351
          %v380 = vsel %vm365, %v349, %v350
          %v381 = vsel %vm365, %v364, %v349
          %398 = vrot.lane.b32.xlu0 %v347, 3
          %v399 = vpop.permute.xlu0 %398
          %400 = vrot.lane.b32.xlu0 %v346, 3
          %v401 = vpop.permute.xlu0 %400
          %402 = vrot.lane.b32.xlu0 %v345, 3
          %v403 = vpop.permute.xlu0 %402
          %404 = vrot.lane.b32.xlu0 %v344, 3
          %v405 = vpop.permute.xlu0 %404
          %406 = vrot.lane.b32.xlu0 %v343, 3
          %v407 = vpop.permute.xlu0 %406
          %408 = vrot.lane.b32.xlu0 %v342, 3
          %v409 = vpop.permute.xlu0 %408
          %410 = vrot.lane.b32.xlu0 %v341, 3
          %v411 = vpop.permute.xlu0 %410
          %412 = vrot.lane.b32.xlu0 %v340, 3
          %v413 = vpop.permute.xlu0 %412
          %414 = vrot.lane.b32.xlu0 %v339, 3
          %v415 = vpop.permute.xlu0 %414
          %416 = vrot.lane.b32.xlu0 %v338, 3
          %v417 = vpop.permute.xlu0 %416
          %418 = vrot.lane.b32.xlu0 %v337, 3
          %v419 = vpop.permute.xlu0 %418
          %420 = vrot.lane.b32.xlu0 %v336, 3
          %v421 = vpop.permute.xlu0 %420
          %422 = vrot.lane.b32.xlu0 %v335, 3
          %v423 = vpop.permute.xlu0 %422
          %424 = vrot.lane.b32.xlu0 %v334, 3
          %v425 = vpop.permute.xlu0 %424
          %426 = vrot.lane.b32.xlu0 %v333, 3
          %v427 = vpop.permute.xlu0 %426
          %428 = vrot.lane.b32.xlu0 %v348, 3
          %v429 = vpop.permute.xlu0 %428
          %462 = vrot.lane.b32.xlu0 %v380, 6
          %v463 = vpop.permute.xlu0 %462
          %464 = vrot.lane.b32.xlu0 %v379, 6
          %v465 = vpop.permute.xlu0 %464
          %466 = vrot.lane.b32.xlu0 %v378, 6
          %v467 = vpop.permute.xlu0 %466
          %468 = vrot.lane.b32.xlu0 %v377, 6
          %v469 = vpop.permute.xlu0 %468
          %470 = vrot.lane.b32.xlu0 %v376, 6
          %v471 = vpop.permute.xlu0 %470
          %472 = vrot.lane.b32.xlu0 %v375, 6
          %v473 = vpop.permute.xlu0 %472
          %474 = vrot.lane.b32.xlu0 %v374, 6
          %v475 = vpop.permute.xlu0 %474
          %476 = vrot.lane.b32.xlu0 %v373, 6
          %v477 = vpop.permute.xlu0 %476
          %478 = vrot.lane.b32.xlu0 %v372, 6
          %v479 = vpop.permute.xlu0 %478
          %480 = vrot.lane.b32.xlu0 %v371, 6
          %v481 = vpop.permute.xlu0 %480
          %482 = vrot.lane.b32.xlu0 %v370, 6
          %v483 = vpop.permute.xlu0 %482
          %484 = vrot.lane.b32.xlu0 %v369, 6
          %v485 = vpop.permute.xlu0 %484
          %486 = vrot.lane.b32.xlu0 %v368, 6
          %v487 = vpop.permute.xlu0 %486
          %488 = vrot.lane.b32.xlu0 %v367, 6
          %v489 = vpop.permute.xlu0 %488
          %490 = vrot.lane.b32.xlu0 %v366, 6
          %v491 = vpop.permute.xlu0 %490
          %492 = vrot.lane.b32.xlu0 %v381, 6
          %v493 = vpop.permute.xlu0 %492
          %vm510 = vcmask 23552
          %v511 = vsel %vm510, %v298, %v399
          %v512 = vsel %vm510, %v299, %v401
          %v513 = vsel %vm510, %v300, %v403
          %v514 = vsel %vm510, %v301, %v405
          %v515 = vsel %vm510, %v302, %v407
          %v516 = vsel %vm510, %v303, %v409
          %v517 = vsel %vm510, %v304, %v411
          %v518 = vsel %vm510, %v305, %v413
          %v519 = vsel %vm510, %v306, %v415
          %v520 = vsel %vm510, %v307, %v417
          %v521 = vsel %vm510, %v308, %v419
          %v522 = vsel %vm510, %v309, %v421
          %v523 = vsel %vm510, %v310, %v423
          %v524 = vsel %vm510, %v311, %v425
          %v525 = vsel %vm510, %v312, %v427
          %v526 = vsel %vm510, %v313, %v429
          %vm527 = vcmask 48128
          %v528 = vsel %vm527, %v511, %v463
          %v529 = vsel %vm527, %v512, %v465
          %v530 = vsel %vm527, %v513, %v467
          %v531 = vsel %vm527, %v514, %v469
          %v532 = vsel %vm527, %v515, %v471
          %v533 = vsel %vm527, %v516, %v473
          %v534 = vsel %vm527, %v517, %v475
          %v535 = vsel %vm527, %v518, %v477
          %v536 = vsel %vm527, %v519, %v479
          %v537 = vsel %vm527, %v520, %v481
          %v538 = vsel %vm527, %v521, %v483
          %v539 = vsel %vm527, %v522, %v485
          %v540 = vsel %vm527, %v523, %v487
          %v541 = vsel %vm527, %v524, %v489
          %v542 = vsel %vm527, %v525, %v491
          %v543 = vsel %vm527, %v526, %v493
          %560 = vrot.lane.b32.xlu0 %v529, 9
          %v561 = vpop.permute.xlu0 %560
          %562 = vrot.lane.b32.xlu0 %v530, 9
          %v563 = vpop.permute.xlu0 %562
          %564 = vrot.lane.b32.xlu0 %v531, 9
          %v565 = vpop.permute.xlu0 %564
          %566 = vrot.lane.b32.xlu0 %v532, 9
          %v567 = vpop.permute.xlu0 %566
          %568 = vrot.lane.b32.xlu0 %v533, 9
          %v569 = vpop.permute.xlu0 %568
          %570 = vrot.lane.b32.xlu0 %v534, 9
          %v571 = vpop.permute.xlu0 %570
          %572 = vrot.lane.b32.xlu0 %v535, 9
          %v573 = vpop.permute.xlu0 %572
          %574 = vrot.lane.b32.xlu0 %v536, 9
          %v575 = vpop.permute.xlu0 %574
          %576 = vrot.lane.b32.xlu0 %v537, 9
          %v577 = vpop.permute.xlu0 %576
          %578 = vrot.lane.b32.xlu0 %v538, 9
          %v579 = vpop.permute.xlu0 %578
          %580 = vrot.lane.b32.xlu0 %v539, 9
          %v581 = vpop.permute.xlu0 %580
          %582 = vrot.lane.b32.xlu0 %v540, 9
          %v583 = vpop.permute.xlu0 %582
          %584 = vrot.lane.b32.xlu0 %v541, 9
          %v585 = vpop.permute.xlu0 %584
          %586 = vrot.lane.b32.xlu0 %v542, 9
          %v587 = vpop.permute.xlu0 %586
          %588 = vrot.lane.b32.xlu0 %v543, 9
          %v589 = vpop.permute.xlu0 %588
          %590 = vrot.lane.b32.xlu0 %v528, 9
          %v591 = vpop.permute.xlu0 %590
          %608 = vrot.lane.b32.xlu0 %v530, 18
          %v609 = vpop.permute.xlu0 %608
          %610 = vrot.lane.b32.xlu0 %v531, 18
          %v611 = vpop.permute.xlu0 %610
          %612 = vrot.lane.b32.xlu0 %v532, 18
          %v613 = vpop.permute.xlu0 %612
          %614 = vrot.lane.b32.xlu0 %v533, 18
          %v615 = vpop.permute.xlu0 %614
          %616 = vrot.lane.b32.xlu0 %v534, 18
          %v617 = vpop.permute.xlu0 %616
          %618 = vrot.lane.b32.xlu0 %v535, 18
          %v619 = vpop.permute.xlu0 %618
          %620 = vrot.lane.b32.xlu0 %v536, 18
          %v621 = vpop.permute.xlu0 %620
          %622 = vrot.lane.b32.xlu0 %v537, 18
          %v623 = vpop.permute.xlu0 %622
          %624 = vrot.lane.b32.xlu0 %v538, 18
          %v625 = vpop.permute.xlu0 %624
          %626 = vrot.lane.b32.xlu0 %v539, 18
          %v627 = vpop.permute.xlu0 %626
          %628 = vrot.lane.b32.xlu0 %v540, 18
          %v629 = vpop.permute.xlu0 %628
          %630 = vrot.lane.b32.xlu0 %v541, 18
          %v631 = vpop.permute.xlu0 %630
          %632 = vrot.lane.b32.xlu0 %v542, 18
          %v633 = vpop.permute.xlu0 %632
          %634 = vrot.lane.b32.xlu0 %v543, 18
          %v635 = vpop.permute.xlu0 %634
          %636 = vrot.lane.b32.xlu0 %v528, 18
          %v637 = vpop.permute.xlu0 %636
          %638 = vrot.lane.b32.xlu0 %v529, 18
          %v639 = vpop.permute.xlu0 %638
          %vm656 = vcmask 72704
          %v657 = vsel %vm656, %v528, %v561
          %v658 = vsel %vm656, %v529, %v563
          %v659 = vsel %vm656, %v530, %v565
          %v660 = vsel %vm656, %v531, %v567
          %v661 = vsel %vm656, %v532, %v569
          %v662 = vsel %vm656, %v533, %v571
          %v663 = vsel %vm656, %v534, %v573
          %v664 = vsel %vm656, %v535, %v575
          %v665 = vsel %vm656, %v536, %v577
          %v666 = vsel %vm656, %v537, %v579
          %v667 = vsel %vm656, %v538, %v581
          %v668 = vsel %vm656, %v539, %v583
          %v669 = vsel %vm656, %v540, %v585
          %v670 = vsel %vm656, %v541, %v587
          %v671 = vsel %vm656, %v542, %v589
          %v672 = vsel %vm656, %v543, %v591
          %vm673 = vcmask 146432
          %v674 = vsel %vm673, %v657, %v609
          %v675 = vsel %vm673, %v658, %v611
          %v676 = vsel %vm673, %v659, %v613
          %v677 = vsel %vm673, %v660, %v615
          %v678 = vsel %vm673, %v661, %v617
          %v679 = vsel %vm673, %v662, %v619
          %v680 = vsel %vm673, %v663, %v621
          %v681 = vsel %vm673, %v664, %v623
          %v682 = vsel %vm673, %v665, %v625
          %v683 = vsel %vm673, %v666, %v627
          %v684 = vsel %vm673, %v667, %v629
          %v685 = vsel %vm673, %v668, %v631
          %v686 = vsel %vm673, %v669, %v633
          %v687 = vsel %vm673, %v670, %v635
          %v688 = vsel %vm673, %v671, %v637
          %v689 = vsel %vm673, %v672, %v639
          %v690 = vperm.slane %v288, 0
          %vm691 = vcmask 220160
          %v693 = vsel %vm691, %v674, 0
          %v696 = vsel %vm691, %v675, 0
          %v699 = vsel %vm691, %v676, 0
          %v702 = vsel %vm691, %v677, 0
          %v705 = vsel %vm691, %v678, 0
          %v708 = vsel %vm691, %v679, 0
          %v711 = vsel %vm691, %v680, 0
          %v714 = vsel %vm691, %v681, 0
          %v717 = vsel %vm691, %v682, 0
          %v720 = vsel %vm691, %v683, 0
          %v723 = vsel %vm691, %v684, 0
          %v726 = vsel %vm691, %v685, 0
          %v729 = vsel %vm691, %v686, 0
          %v732 = vsel %vm691, %v687, 0
          %v735 = vsel %vm691, %v688, 0
          %v738 = vsel %vm691, %v689, 0
          %vm740 = vcmask 1042432
          %v742 = vsel %vm740, %v278, 0
          %744 = vmatpush.msra.mxu0 0.0
          %745 = vmatpush.msra.mxu0 0.0
          %746 = vmatpush.msra.mxu0 0.0
          %747 = vmatpush.msra.mxu0 0.0
          %748 = vmatpush.msra.mxu0 0.0
          %749 = vmatpush.msra.mxu0 0.0
          %750 = vmatpush.msra.mxu0 0.0
          %751 = vmatpush.msra.mxu0 0.0
          %752 = vmatpush.msra.mxu0 0.0
          %753 = vmatpush.msra.mxu0 0.0
          %754 = vmatpush.msra.mxu0 0.0
          %755 = vmatpush.msra.mxu0 0.0
          %756 = vmatpush.msra.mxu0 %v742
          %757 = vmatpush.msra.mxu0 %v277
          %758 = vmatpush.msra.mxu0 %v276
          %759 = vmatpush.msra.mxu0 %v275
          %760 = vmatmul.f32.gmra.mxu0 %v693
          %v761 = vpop.f32.mrf.mxu0
          %v762 = vadd.f32 %v690, %v761
          %763 = vmatmul.f32.gmra.mxu0 %v696
          %v764 = vpop.f32.mrf.mxu0
          %v765 = vadd.f32 %v690, %v764
          %766 = vmatmul.f32.gmra.mxu0 %v699
          %v767 = vpop.f32.mrf.mxu0
          %v768 = vadd.f32 %v690, %v767
          %769 = vmatmul.f32.gmra.mxu0 %v702
          %v770 = vpop.f32.mrf.mxu0
          %v771 = vadd.f32 %v690, %v770
          %772 = vmatmul.f32.gmra.mxu0 %v705
          %v773 = vpop.f32.mrf.mxu0
          %v774 = vadd.f32 %v690, %v773
          %775 = vmatmul.f32.gmra.mxu0 %v708
          %v776 = vpop.f32.mrf.mxu0
          %v777 = vadd.f32 %v690, %v776
          %778 = vmatmul.f32.gmra.mxu0 %v711
          %v779 = vpop.f32.mrf.mxu0
          %v780 = vadd.f32 %v690, %v779
          %781 = vmatmul.f32.gmra.mxu0 %v714
          %v782 = vpop.f32.mrf.mxu0
          %v783 = vadd.f32 %v690, %v782
          %784 = vmatmul.f32.gmra.mxu0 %v717
          %v785 = vpop.f32.mrf.mxu0
          %v786 = vadd.f32 %v690, %v785
          %787 = vmatmul.f32.gmra.mxu0 %v720
          %v788 = vpop.f32.mrf.mxu0
          %v789 = vadd.f32 %v690, %v788
          %790 = vmatmul.f32.gmra.mxu0 %v723
          %v791 = vpop.f32.mrf.mxu0
          %v792 = vadd.f32 %v690, %v791
          %793 = vmatmul.f32.gmra.mxu0 %v726
          %v794 = vpop.f32.mrf.mxu0
          %v795 = vadd.f32 %v690, %v794
          %796 = vmatmul.f32.gmra.mxu0 %v729
          %v797 = vpop.f32.mrf.mxu0
          %v798 = vadd.f32 %v690, %v797
          %799 = vmatmul.f32.gmra.mxu0 %v732
          %v800 = vpop.f32.mrf.mxu0
          %v801 = vadd.f32 %v690, %v800
          %802 = vmatmul.f32.gmra.mxu0 %v735
          %v803 = vpop.f32.mrf.mxu0
          %v804 = vadd.f32 %v690, %v803
          %805 = vmatmul.f32.gmra.mxu0 %v738
          %v806 = vpop.f32.mrf.mxu0
          %v807 = vadd.f32 %v690, %v806
          %808 = vdwg.mxu0
          %v809 = vmax.f32 %v762, 0.0
          %v810 = vmax.f32 %v765, 0.0
          %v811 = vmax.f32 %v768, 0.0
          %v812 = vmax.f32 %v771, 0.0
          %v813 = vmax.f32 %v774, 0.0
          %v814 = vmax.f32 %v777, 0.0
          %v815 = vmax.f32 %v780, 0.0
          %v816 = vmax.f32 %v783, 0.0
          %v817 = vmax.f32 %v786, 0.0
          %v818 = vmax.f32 %v789, 0.0
          %v819 = vmax.f32 %v792, 0.0
          %v820 = vmax.f32 %v795, 0.0
          %v821 = vmax.f32 %v798, 0.0
          %v822 = vmax.f32 %v801, 0.0
          %v823 = vmax.f32 %v804, 0.0
          %v824 = vmax.f32 %v807, 0.0
          %v825 = vrot.slane %v809, 1
          %v826 = vrot.slane %v810, 1
          %v827 = vrot.slane %v811, 1
          %v828 = vrot.slane %v812, 1
          %v829 = vrot.slane %v813, 1
          %v830 = vrot.slane %v814, 1
          %v831 = vrot.slane %v815, 1
          %v832 = vrot.slane %v816, 1
          %v833 = vrot.slane %v817, 1
          %v834 = vrot.slane %v818, 1
          %v835 = vrot.slane %v819, 1
          %v836 = vrot.slane %v820, 1
          %v837 = vrot.slane %v821, 1
          %v838 = vrot.slane %v822, 1
          %v839 = vrot.slane %v823, 1
          %v840 = vrot.slane %v824, 1
          %v841 = vsel %vm332, %v839, %v840
          %v842 = vsel %vm332, %v838, %v839
          %v843 = vsel %vm332, %v837, %v838
          %v844 = vsel %vm332, %v836, %v837
          %v845 = vsel %vm332, %v835, %v836
          %v846 = vsel %vm332, %v834, %v835
          %v847 = vsel %vm332, %v833, %v834
          %v848 = vsel %vm332, %v832, %v833
          %v849 = vsel %vm332, %v831, %v832
          %v850 = vsel %vm332, %v830, %v831
          %v851 = vsel %vm332, %v829, %v830
          %v852 = vsel %vm332, %v828, %v829
          %v853 = vsel %vm332, %v827, %v828
          %v854 = vsel %vm332, %v826, %v827
          %v855 = vsel %vm332, %v825, %v826
          %v856 = vsel %vm332, %v840, %v825
          %v857 = vmax.f32 %v809, %v855
          %v858 = vmax.f32 %v810, %v854
          %v859 = vmax.f32 %v811, %v853
          %v860 = vmax.f32 %v812, %v852
          %v861 = vmax.f32 %v813, %v851
          %v862 = vmax.f32 %v814, %v850
          %v863 = vmax.f32 %v815, %v849
          %v864 = vmax.f32 %v816, %v848
          %v865 = vmax.f32 %v817, %v847
          %v866 = vmax.f32 %v818, %v846
          %v867 = vmax.f32 %v819, %v845
          %v868 = vmax.f32 %v820, %v844
          %v869 = vmax.f32 %v821, %v843
          %v870 = vmax.f32 %v822, %v842
          %v871 = vmax.f32 %v823, %v841
          %v872 = vmax.f32 %v824, %v856
          %v873 = vmax.f32 %v857, %v858
          %v874 = vmax.f32 %v858, %v859
          %v875 = vmax.f32 %v859, %v860
          %v876 = vmax.f32 %v860, %v861
          %v877 = vmax.f32 %v861, %v862
          %v878 = vmax.f32 %v862, %v863
          %v879 = vmax.f32 %v863, %v864
          %v880 = vmax.f32 %v864, %v865
          %v881 = vmax.f32 %v865, %v866
          %v882 = vmax.f32 %v866, %v867
          %v883 = vmax.f32 %v867, %v868
          %v884 = vmax.f32 %v868, %v869
          %v885 = vmax.f32 %v869, %v870
          %v886 = vmax.f32 %v870, %v871
          %v887 = vmax.f32 %v871, %v872
          %v888 = vmax.f32 %v872, %v857
          %v889 = vrot.slane %v873, 1
          %v890 = vrot.slane %v874, 1
          %v891 = vrot.slane %v875, 1
          %v892 = vrot.slane %v876, 1
          %v893 = vrot.slane %v877, 1
          %v894 = vrot.slane %v878, 1
          %v895 = vrot.slane %v879, 1
          %v896 = vrot.slane %v880, 1
          %v897 = vrot.slane %v881, 1
          %v898 = vrot.slane %v882, 1
          %v899 = vrot.slane %v883, 1
          %v900 = vrot.slane %v884, 1
          %v901 = vrot.slane %v885, 1
          %v902 = vrot.slane %v886, 1
          %v903 = vrot.slane %v887, 1
          %v904 = vrot.slane %v888, 1
          %v905 = vsel %vm332, %v903, %v904
          %v906 = vsel %vm332, %v902, %v903
          %v907 = vsel %vm332, %v901, %v902
          %v908 = vsel %vm332, %v900, %v901
          %v909 = vsel %vm332, %v899, %v900
          %v910 = vsel %vm332, %v898, %v899
          %v911 = vsel %vm332, %v897, %v898
          %v912 = vsel %vm332, %v896, %v897
          %v913 = vsel %vm332, %v895, %v896
          %v914 = vsel %vm332, %v894, %v895
          %v915 = vsel %vm332, %v893, %v894
          %v916 = vsel %vm332, %v892, %v893
          %v917 = vsel %vm332, %v891, %v892
          %v918 = vsel %vm332, %v890, %v891
          %v919 = vsel %vm332, %v889, %v890
          %v920 = vsel %vm332, %v904, %v889
          %v921 = vrot.slane %v873, 2
          %v922 = vrot.slane %v874, 2
          %v923 = vrot.slane %v875, 2
          %v924 = vrot.slane %v876, 2
          %v925 = vrot.slane %v877, 2
          %v926 = vrot.slane %v878, 2
          %v927 = vrot.slane %v879, 2
          %v928 = vrot.slane %v880, 2
          %v929 = vrot.slane %v881, 2
          %v930 = vrot.slane %v882, 2
          %v931 = vrot.slane %v883, 2
          %v932 = vrot.slane %v884, 2
          %v933 = vrot.slane %v885, 2
          %v934 = vrot.slane %v886, 2
          %v935 = vrot.slane %v887, 2
          %v936 = vrot.slane %v888, 2
          %v937 = vsel %vm365, %v935, %v936
          %v938 = vsel %vm365, %v934, %v935
          %v939 = vsel %vm365, %v933, %v934
          %v940 = vsel %vm365, %v932, %v933
          %v941 = vsel %vm365, %v931, %v932
          %v942 = vsel %vm365, %v930, %v931
          %v943 = vsel %vm365, %v929, %v930
          %v944 = vsel %vm365, %v928, %v929
          %v945 = vsel %vm365, %v927, %v928
          %v946 = vsel %vm365, %v926, %v927
          %v947 = vsel %vm365, %v925, %v926
          %v948 = vsel %vm365, %v924, %v925
          %v949 = vsel %vm365, %v923, %v924
          %v950 = vsel %vm365, %v922, %v923
          %v951 = vsel %vm365, %v921, %v922
          %v952 = vsel %vm365, %v936, %v921
          %969 = vrot.lane.b32.xlu0 %v919, 8
          %v970 = vpop.permute.xlu0 %969
          %971 = vrot.lane.b32.xlu0 %v918, 8
          %v972 = vpop.permute.xlu0 %971
          %973 = vrot.lane.b32.xlu0 %v917, 8
          %v974 = vpop.permute.xlu0 %973
          %975 = vrot.lane.b32.xlu0 %v916, 8
          %v976 = vpop.permute.xlu0 %975
          %977 = vrot.lane.b32.xlu0 %v915, 8
          %v978 = vpop.permute.xlu0 %977
          %979 = vrot.lane.b32.xlu0 %v914, 8
          %v980 = vpop.permute.xlu0 %979
          %981 = vrot.lane.b32.xlu0 %v913, 8
          %v982 = vpop.permute.xlu0 %981
          %983 = vrot.lane.b32.xlu0 %v912, 8
          %v984 = vpop.permute.xlu0 %983
          %985 = vrot.lane.b32.xlu0 %v911, 8
          %v986 = vpop.permute.xlu0 %985
          %987 = vrot.lane.b32.xlu0 %v910, 8
          %v988 = vpop.permute.xlu0 %987
          %989 = vrot.lane.b32.xlu0 %v909, 8
          %v990 = vpop.permute.xlu0 %989
          %991 = vrot.lane.b32.xlu0 %v908, 8
          %v992 = vpop.permute.xlu0 %991
          %993 = vrot.lane.b32.xlu0 %v907, 8
          %v994 = vpop.permute.xlu0 %993
          %995 = vrot.lane.b32.xlu0 %v906, 8
          %v996 = vpop.permute.xlu0 %995
          %997 = vrot.lane.b32.xlu0 %v905, 8
          %v998 = vpop.permute.xlu0 %997
          %999 = vrot.lane.b32.xlu0 %v920, 8
          %v1000 = vpop.permute.xlu0 %999
          %1033 = vrot.lane.b32.xlu0 %v951, 16
          %v1034 = vpop.permute.xlu0 %1033
          %1035 = vrot.lane.b32.xlu0 %v950, 16
          %v1036 = vpop.permute.xlu0 %1035
          %1037 = vrot.lane.b32.xlu0 %v949, 16
          %v1038 = vpop.permute.xlu0 %1037
          %1039 = vrot.lane.b32.xlu0 %v948, 16
          %v1040 = vpop.permute.xlu0 %1039
          %1041 = vrot.lane.b32.xlu0 %v947, 16
          %v1042 = vpop.permute.xlu0 %1041
          %1043 = vrot.lane.b32.xlu0 %v946, 16
          %v1044 = vpop.permute.xlu0 %1043
          %1045 = vrot.lane.b32.xlu0 %v945, 16
          %v1046 = vpop.permute.xlu0 %1045
          %1047 = vrot.lane.b32.xlu0 %v944, 16
          %v1048 = vpop.permute.xlu0 %1047
          %1049 = vrot.lane.b32.xlu0 %v943, 16
          %v1050 = vpop.permute.xlu0 %1049
          %1051 = vrot.lane.b32.xlu0 %v942, 16
          %v1052 = vpop.permute.xlu0 %1051
          %1053 = vrot.lane.b32.xlu0 %v941, 16
          %v1054 = vpop.permute.xlu0 %1053
          %1055 = vrot.lane.b32.xlu0 %v940, 16
          %v1056 = vpop.permute.xlu0 %1055
          %1057 = vrot.lane.b32.xlu0 %v939, 16
          %v1058 = vpop.permute.xlu0 %1057
          %1059 = vrot.lane.b32.xlu0 %v938, 16
          %v1060 = vpop.permute.xlu0 %1059
          %1061 = vrot.lane.b32.xlu0 %v937, 16
          %v1062 = vpop.permute.xlu0 %1061
          %1063 = vrot.lane.b32.xlu0 %v952, 16
          %v1064 = vpop.permute.xlu0 %1063
          %vm1081 = vcmask 64512
          %v1082 = vsel %vm1081, %v873, %v970
          %v1083 = vsel %vm1081, %v874, %v972
          %v1084 = vsel %vm1081, %v875, %v974
          %v1085 = vsel %vm1081, %v876, %v976
          %v1086 = vsel %vm1081, %v877, %v978
          %v1087 = vsel %vm1081, %v878, %v980
          %v1088 = vsel %vm1081, %v879, %v982
          %v1089 = vsel %vm1081, %v880, %v984
          %v1090 = vsel %vm1081, %v881, %v986
          %v1091 = vsel %vm1081, %v882, %v988
          %v1092 = vsel %vm1081, %v883, %v990
          %v1093 = vsel %vm1081, %v884, %v992
          %v1094 = vsel %vm1081, %v885, %v994
          %v1095 = vsel %vm1081, %v886, %v996
          %v1096 = vsel %vm1081, %v887, %v998
          %v1097 = vsel %vm1081, %v888, %v1000
          %vm1098 = vcmask 130048
          %v1099 = vsel %vm1098, %v1082, %v1034
          %v1100 = vsel %vm1098, %v1083, %v1036
          %v1101 = vsel %vm1098, %v1084, %v1038
          %v1102 = vsel %vm1098, %v1085, %v1040
          %v1103 = vsel %vm1098, %v1086, %v1042
          %v1104 = vsel %vm1098, %v1087, %v1044
          %v1105 = vsel %vm1098, %v1088, %v1046
          %v1106 = vsel %vm1098, %v1089, %v1048
          %v1107 = vsel %vm1098, %v1090, %v1050
          %v1108 = vsel %vm1098, %v1091, %v1052
          %v1109 = vsel %vm1098, %v1092, %v1054
          %v1110 = vsel %vm1098, %v1093, %v1056
          %v1111 = vsel %vm1098, %v1094, %v1058
          %v1112 = vsel %vm1098, %v1095, %v1060
          %v1113 = vsel %vm1098, %v1096, %v1062
          %v1114 = vsel %vm1098, %v1097, %v1064
          %1131 = vrot.lane.b32.xlu0 %v1100, 24
          %v1132 = vpop.permute.xlu0 %1131
          %1133 = vrot.lane.b32.xlu0 %v1101, 24
          %v1134 = vpop.permute.xlu0 %1133
          %1135 = vrot.lane.b32.xlu0 %v1102, 24
          %v1136 = vpop.permute.xlu0 %1135
          %1137 = vrot.lane.b32.xlu0 %v1103, 24
          %v1138 = vpop.permute.xlu0 %1137
          %1139 = vrot.lane.b32.xlu0 %v1104, 24
          %v1140 = vpop.permute.xlu0 %1139
          %1141 = vrot.lane.b32.xlu0 %v1105, 24
          %v1142 = vpop.permute.xlu0 %1141
          %1143 = vrot.lane.b32.xlu0 %v1106, 24
          %v1144 = vpop.permute.xlu0 %1143
          %1145 = vrot.lane.b32.xlu0 %v1107, 24
          %v1146 = vpop.permute.xlu0 %1145
          %1147 = vrot.lane.b32.xlu0 %v1108, 24
          %v1148 = vpop.permute.xlu0 %1147
          %1149 = vrot.lane.b32.xlu0 %v1109, 24
          %v1150 = vpop.permute.xlu0 %1149
          %1151 = vrot.lane.b32.xlu0 %v1110, 24
          %v1152 = vpop.permute.xlu0 %1151
          %1153 = vrot.lane.b32.xlu0 %v1111, 24
          %v1154 = vpop.permute.xlu0 %1153
          %1155 = vrot.lane.b32.xlu0 %v1112, 24
          %v1156 = vpop.permute.xlu0 %1155
          %1157 = vrot.lane.b32.xlu0 %v1113, 24
          %v1158 = vpop.permute.xlu0 %1157
          %1159 = vrot.lane.b32.xlu0 %v1114, 24
          %v1160 = vpop.permute.xlu0 %1159
          %1161 = vrot.lane.b32.xlu0 %v1099, 24
          %v1162 = vpop.permute.xlu0 %1161
          %1179 = vrot.lane.b32.xlu0 %v1101, 48
          %v1180 = vpop.permute.xlu0 %1179
          %1181 = vrot.lane.b32.xlu0 %v1102, 48
          %v1182 = vpop.permute.xlu0 %1181
          %1183 = vrot.lane.b32.xlu0 %v1103, 48
          %v1184 = vpop.permute.xlu0 %1183
          %1185 = vrot.lane.b32.xlu0 %v1104, 48
          %v1186 = vpop.permute.xlu0 %1185
          %1187 = vrot.lane.b32.xlu0 %v1105, 48
          %v1188 = vpop.permute.xlu0 %1187
          %1189 = vrot.lane.b32.xlu0 %v1106, 48
          %v1190 = vpop.permute.xlu0 %1189
          %1191 = vrot.lane.b32.xlu0 %v1107, 48
          %v1192 = vpop.permute.xlu0 %1191
          %1193 = vrot.lane.b32.xlu0 %v1108, 48
          %v1194 = vpop.permute.xlu0 %1193
          %1195 = vrot.lane.b32.xlu0 %v1109, 48
          %v1196 = vpop.permute.xlu0 %1195
          %1197 = vrot.lane.b32.xlu0 %v1110, 48
          %v1198 = vpop.permute.xlu0 %1197
          %1199 = vrot.lane.b32.xlu0 %v1111, 48
          %v1200 = vpop.permute.xlu0 %1199
          %1201 = vrot.lane.b32.xlu0 %v1112, 48
          %v1202 = vpop.permute.xlu0 %1201
          %1203 = vrot.lane.b32.xlu0 %v1113, 48
          %v1204 = vpop.permute.xlu0 %1203
          %1205 = vrot.lane.b32.xlu0 %v1114, 48
          %v1206 = vpop.permute.xlu0 %1205
          %1207 = vrot.lane.b32.xlu0 %v1099, 48
          %v1208 = vpop.permute.xlu0 %1207
          %1209 = vrot.lane.b32.xlu0 %v1100, 48
          %v1210 = vpop.permute.xlu0 %1209
          %vm1227 = vcmask 195584
          %v1228 = vsel %vm1227, %v1099, %v1132
          %v1229 = vsel %vm1227, %v1100, %v1134
          %v1230 = vsel %vm1227, %v1101, %v1136
          %v1231 = vsel %vm1227, %v1102, %v1138
          %v1232 = vsel %vm1227, %v1103, %v1140
          %v1233 = vsel %vm1227, %v1104, %v1142
          %v1234 = vsel %vm1227, %v1105, %v1144
          %v1235 = vsel %vm1227, %v1106, %v1146
          %v1236 = vsel %vm1227, %v1107, %v1148
          %v1237 = vsel %vm1227, %v1108, %v1150
          %v1238 = vsel %vm1227, %v1109, %v1152
          %v1239 = vsel %vm1227, %v1110, %v1154
          %v1240 = vsel %vm1227, %v1111, %v1156
          %v1241 = vsel %vm1227, %v1112, %v1158
          %v1242 = vsel %vm1227, %v1113, %v1160
          %v1243 = vsel %vm1227, %v1114, %v1162
          %vm1244 = vcmask 392192
          %v1245 = vsel %vm1244, %v1228, %v1180
          %v1246 = vsel %vm1244, %v1229, %v1182
          %v1247 = vsel %vm1244, %v1230, %v1184
          %v1248 = vsel %vm1244, %v1231, %v1186
          %v1249 = vsel %vm1244, %v1232, %v1188
          %v1250 = vsel %vm1244, %v1233, %v1190
          %v1251 = vsel %vm1244, %v1234, %v1192
          %v1252 = vsel %vm1244, %v1235, %v1194
          %v1253 = vsel %vm1244, %v1236, %v1196
          %v1254 = vsel %vm1244, %v1237, %v1198
          %v1255 = vsel %vm1244, %v1238, %v1200
          %v1256 = vsel %vm1244, %v1239, %v1202
          %v1257 = vsel %vm1244, %v1240, %v1204
          %v1258 = vsel %vm1244, %v1241, %v1206
          %v1259 = vsel %vm1244, %v1242, %v1208
          %v1260 = vsel %vm1244, %v1243, %v1210
          %v1261 = vperm.slane %v289, 0
          %vm1262 = vcmask 588800
          %v1264 = vsel %vm1262, %v1245, 0
          %v1267 = vsel %vm1262, %v1246, 0
          %v1270 = vsel %vm1262, %v1247, 0
          %v1273 = vsel %vm1262, %v1248, 0
          %v1276 = vsel %vm1262, %v1249, 0
          %v1279 = vsel %vm1262, %v1250, 0
          %v1282 = vsel %vm1262, %v1251, 0
          %v1285 = vsel %vm1262, %v1252, 0
          %v1288 = vsel %vm1262, %v1253, 0
          %v1291 = vsel %vm1262, %v1254, 0
          %v1294 = vsel %vm1262, %v1255, 0
          %v1297 = vsel %vm1262, %v1256, 0
          %v1300 = vsel %vm1262, %v1257, 0
          %v1303 = vsel %vm1262, %v1258, 0
          %v1306 = vsel %vm1262, %v1259, 0
          %v1309 = vsel %vm1262, %v1260, 0
          %1311 = vmatpush.msra.mxu0 0.0
          %1312 = vmatpush.msra.mxu0 0.0
          %1313 = vmatpush.msra.mxu0 0.0
          %1314 = vmatpush.msra.mxu0 0.0
          %1315 = vmatpush.msra.mxu0 0.0
          %1316 = vmatpush.msra.mxu0 0.0
          %1317 = vmatpush.msra.mxu0 0.0
          %1318 = vmatpush.msra.mxu0 %v287
          %1319 = vmatpush.msra.mxu0 %v286
          %1320 = vmatpush.msra.mxu0 %v285
          %1321 = vmatpush.msra.mxu0 %v284
          %1322 = vmatpush.msra.mxu0 %v283
          %1323 = vmatpush.msra.mxu0 %v282
          %1324 = vmatpush.msra.mxu0 %v281
          %1325 = vmatpush.msra.mxu0 %v280
          %1326 = vmatpush.msra.mxu0 %v279
          %1327 = vmatmul.f32.gmra.mxu0 %v1264
          %v1328 = vpop.f32.mrf.mxu0
          %v1329 = vadd.f32 %v1261, %v1328
          %1330 = vmatmul.f32.gmra.mxu0 %v1267
          %v1331 = vpop.f32.mrf.mxu0
          %v1332 = vadd.f32 %v1261, %v1331
          %1333 = vmatmul.f32.gmra.mxu0 %v1270
          %v1334 = vpop.f32.mrf.mxu0
          %v1335 = vadd.f32 %v1261, %v1334
          %1336 = vmatmul.f32.gmra.mxu0 %v1273
          %v1337 = vpop.f32.mrf.mxu0
          %v1338 = vadd.f32 %v1261, %v1337
          %1339 = vmatmul.f32.gmra.mxu0 %v1276
          %v1340 = vpop.f32.mrf.mxu0
          %v1341 = vadd.f32 %v1261, %v1340
          %1342 = vmatmul.f32.gmra.mxu0 %v1279
          %v1343 = vpop.f32.mrf.mxu0
          %1344 = vmatmul.f32.gmra.mxu0 %v1282
          %v1345 = vpop.f32.mrf.mxu0
          %1346 = vmatmul.f32.gmra.mxu0 %v1285
          %v1347 = vpop.f32.mrf.mxu0
          %1348 = vmatmul.f32.gmra.mxu0 %v1288
          %v1349 = vpop.f32.mrf.mxu0
          %v1350 = vadd.f32 %v1261, %v1349
          %1351 = vmatmul.f32.gmra.mxu0 %v1291
          %v1352 = vpop.f32.mrf.mxu0
          %v1353 = vadd.f32 %v1261, %v1352
          %1354 = vmatmul.f32.gmra.mxu0 %v1294
          %v1355 = vpop.f32.mrf.mxu0
          %v1356 = vadd.f32 %v1261, %v1355
          %1357 = vmatmul.f32.gmra.mxu0 %v1297
          %v1358 = vpop.f32.mrf.mxu0
          %v1359 = vadd.f32 %v1261, %v1358
          %1360 = vmatmul.f32.gmra.mxu0 %v1300
          %v1361 = vpop.f32.mrf.mxu0
          %v1362 = vadd.f32 %v1261, %v1361
          %1363 = vmatmul.f32.gmra.mxu0 %v1303
          %v1364 = vpop.f32.mrf.mxu0
          %1365 = vmatmul.f32.gmra.mxu0 %v1306
          %v1366 = vpop.f32.mrf.mxu0
          %1367 = vmatmul.f32.gmra.mxu0 %v1309
          %v1368 = vpop.f32.mrf.mxu0
          %1369 = vdwg.mxu0
          %v1370 = vmax.f32 %v1329, 0.0
          %v1371 = vmax.f32 %v1332, 0.0
          %v1372 = vmax.f32 %v1335, 0.0
          %v1373 = vmax.f32 %v1338, 0.0
          %v1374 = vmax.f32 %v1341, 0.0
          %v1375 = vmax.f32 %v1350, 0.0
          %v1376 = vmax.f32 %v1353, 0.0
          %v1377 = vmax.f32 %v1356, 0.0
          %v1378 = vmax.f32 %v1359, 0.0
          %v1379 = vmax.f32 %v1362, 0.0
          %v1380 = vrot.slane %v1370, 1
          %v1381 = vrot.slane %v1371, 1
          %v1382 = vrot.slane %v1372, 1
          %v1383 = vrot.slane %v1373, 1
          %v1384 = vrot.slane %v1374, 1
          %v1385 = vrot.slane %v1375, 1
          %v1386 = vrot.slane %v1376, 1
          %v1387 = vrot.slane %v1377, 1
          %v1388 = vrot.slane %v1378, 1
          %v1389 = vrot.slane %v1379, 1
          %v1390 = vsel %vm332, %v1388, %v1389
          %v1391 = vsel %vm332, %v1387, %v1388
          %v1392 = vsel %vm332, %v1386, %v1387
          %v1393 = vsel %vm332, %v1385, %v1386
          %v1394 = vsel %vm332, %v1383, %v1384
          %v1395 = vsel %vm332, %v1382, %v1383
          %v1396 = vsel %vm332, %v1381, %v1382
          %v1397 = vsel %vm332, %v1380, %v1381
          %v1398 = vmax.f32 %v1370, %v1397
          %v1399 = vmax.f32 %v1371, %v1396
          %v1400 = vmax.f32 %v1372, %v1395
          %v1401 = vmax.f32 %v1373, %v1394
          %v1402 = vmax.f32 %v1375, %v1393
          %v1403 = vmax.f32 %v1376, %v1392
          %v1404 = vmax.f32 %v1377, %v1391
          %v1405 = vmax.f32 %v1378, %v1390
          %v1406 = vmax.f32 %v1398, %v1399
          %v1407 = vmax.f32 %v1399, %v1400
          %v1408 = vmax.f32 %v1400, %v1401
          %v1409 = vmax.f32 %v1402, %v1403
          %v1410 = vmax.f32 %v1403, %v1404
          %v1411 = vmax.f32 %v1404, %v1405
          %v1412 = vrot.slane %v1406, 1
          %v1413 = vrot.slane %v1407, 1
          %v1414 = vrot.slane %v1408, 1
          %v1415 = vrot.slane %v1409, 1
          %v1416 = vrot.slane %v1410, 1
          %v1417 = vrot.slane %v1411, 1
          %v1418 = vsel %vm332, %v1416, %v1417
          %v1419 = vsel %vm332, %v1415, %v1416
          %v1420 = vsel %vm332, %v1413, %v1414
          %v1421 = vsel %vm332, %v1412, %v1413
          %1426 = vrot.lane.b32.xlu0 %v1421, 16
          %v1427 = vpop.permute.xlu0 %1426
          %1428 = vrot.lane.b32.xlu0 %v1420, 16
          %v1429 = vpop.permute.xlu0 %1428
          %1430 = vrot.lane.b32.xlu0 %v1419, 16
          %v1431 = vpop.permute.xlu0 %1430
          %1432 = vrot.lane.b32.xlu0 %v1418, 16
          %v1433 = vpop.permute.xlu0 %1432
          %v1438 = vsel %vm1098, %v1406, %v1427
          %v1439 = vsel %vm1098, %v1407, %v1429
          %v1440 = vsel %vm1098, %v1409, %v1431
          %v1441 = vsel %vm1098, %v1410, %v1433
          %1444 = vrot.lane.b32.xlu0 %v1439, 32
          %v1445 = vpop.permute.xlu0 %1444
          %1446 = vrot.lane.b32.xlu0 %v1441, 32
          %v1447 = vpop.permute.xlu0 %1446
          %vm1450 = vcmask 261120
          %v1451 = vsel %vm1450, %v1438, %v1445
          %v1452 = vsel %vm1450, %v1440, %v1447
          %v1454 = vrot.slane %v1452, 7
          %vm1456 = vcmask 1040384
          %v1457 = vsel %vm1456, %v1451, %v1454
          %s1458 = sadd.s32 %s296, 128
          %s1459 = scalar_lea.vmem %s266, %s1458
          %v1460 = vld [vmem:[%s1459] sm:$0xff]
          %v1461 = vld [vmem:[%s1459 + $0x8] sm:$0xff]
          %v1462 = vld [vmem:[%s1459 + $0x10] sm:$0xff]
          %v1463 = vld [vmem:[%s1459 + $0x18] sm:$0xff]
          %v1464 = vld [vmem:[%s1459 + $0x20] sm:$0xff]
          %v1465 = vld [vmem:[%s1459 + $0x28] sm:$0xff]
          %v1466 = vld [vmem:[%s1459 + $0x30] sm:$0xff]
          %v1467 = vld [vmem:[%s1459 + $0x38] sm:$0xff]
          %v1468 = vld [vmem:[%s1459 + $0x40] sm:$0xff]
          %v1469 = vld [vmem:[%s1459 + $0x48] sm:$0xff]
          %v1470 = vld [vmem:[%s1459 + $0x50] sm:$0xff]
          %v1471 = vld [vmem:[%s1459 + $0x58] sm:$0xff]
          %v1472 = vld [vmem:[%s1459 + $0x60] sm:$0xff]
          %v1473 = vld [vmem:[%s1459 + $0x68] sm:$0xff]
          %v1474 = vld [vmem:[%s1459 + $0x70] sm:$0xff]
          %v1475 = vld [vmem:[%s1459 + $0x78] sm:$0xff]
          %v1476 = vrot.slane %v1460, 1
          %v1477 = vrot.slane %v1461, 1
          %v1478 = vrot.slane %v1462, 1
          %v1479 = vrot.slane %v1463, 1
          %v1480 = vrot.slane %v1464, 1
          %v1481 = vrot.slane %v1465, 1
          %v1482 = vrot.slane %v1466, 1
          %v1483 = vrot.slane %v1467, 1
          %v1484 = vrot.slane %v1468, 1
          %v1485 = vrot.slane %v1469, 1
          %v1486 = vrot.slane %v1470, 1
          %v1487 = vrot.slane %v1471, 1
          %v1488 = vrot.slane %v1472, 1
          %v1489 = vrot.slane %v1473, 1
          %v1490 = vrot.slane %v1474, 1
          %v1491 = vrot.slane %v1475, 1
          %v1492 = vsel %vm332, %v1490, %v1491
          %v1493 = vsel %vm332, %v1489, %v1490
          %v1494 = vsel %vm332, %v1488, %v1489
          %v1495 = vsel %vm332, %v1487, %v1488
          %v1496 = vsel %vm332, %v1486, %v1487
          %v1497 = vsel %vm332, %v1485, %v1486
          %v1498 = vsel %vm332, %v1484, %v1485
          %v1499 = vsel %vm332, %v1483, %v1484
          %v1500 = vsel %vm332, %v1482, %v1483
          %v1501 = vsel %vm332, %v1481, %v1482
          %v1502 = vsel %vm332, %v1480, %v1481
          %v1503 = vsel %vm332, %v1479, %v1480
          %v1504 = vsel %vm332, %v1478, %v1479
          %v1505 = vsel %vm332, %v1477, %v1478
          %v1506 = vsel %vm332, %v1476, %v1477
          %v1507 = vsel %vm332, %v1491, %v1476
          %v1508 = vrot.slane %v1460, 2
          %v1509 = vrot.slane %v1461, 2
          %v1510 = vrot.slane %v1462, 2
          %v1511 = vrot.slane %v1463, 2
          %v1512 = vrot.slane %v1464, 2
          %v1513 = vrot.slane %v1465, 2
          %v1514 = vrot.slane %v1466, 2
          %v1515 = vrot.slane %v1467, 2
          %v1516 = vrot.slane %v1468, 2
          %v1517 = vrot.slane %v1469, 2
          %v1518 = vrot.slane %v1470, 2
          %v1519 = vrot.slane %v1471, 2
          %v1520 = vrot.slane %v1472, 2
          %v1521 = vrot.slane %v1473, 2
          %v1522 = vrot.slane %v1474, 2
          %v1523 = vrot.slane %v1475, 2
          %v1524 = vsel %vm365, %v1522, %v1523
          %v1525 = vsel %vm365, %v1521, %v1522
          %v1526 = vsel %vm365, %v1520, %v1521
          %v1527 = vsel %vm365, %v1519, %v1520
          %v1528 = vsel %vm365, %v1518, %v1519
          %v1529 = vsel %vm365, %v1517, %v1518
          %v1530 = vsel %vm365, %v1516, %v1517
          %v1531 = vsel %vm365, %v1515, %v1516
          %v1532 = vsel %vm365, %v1514, %v1515
          %v1533 = vsel %vm365, %v1513, %v1514
          %v1534 = vsel %vm365, %v1512, %v1513
          %v1535 = vsel %vm365, %v1511, %v1512
          %v1536 = vsel %vm365, %v1510, %v1511
          %v1537 = vsel %vm365, %v1509, %v1510
          %v1538 = vsel %vm365, %v1508, %v1509
          %v1539 = vsel %vm365, %v1523, %v1508
          %1556 = vrot.lane.b32.xlu0 %v1506, 3
          %v1557 = vpop.permute.xlu0 %1556
          %1558 = vrot.lane.b32.xlu0 %v1505, 3
          %v1559 = vpop.permute.xlu0 %1558
          %1560 = vrot.lane.b32.xlu0 %v1504, 3
          %v1561 = vpop.permute.xlu0 %1560
          %1562 = vrot.lane.b32.xlu0 %v1503, 3
          %v1563 = vpop.permute.xlu0 %1562
          %1564 = vrot.lane.b32.xlu0 %v1502, 3
          %v1565 = vpop.permute.xlu0 %1564
          %1566 = vrot.lane.b32.xlu0 %v1501, 3
          %v1567 = vpop.permute.xlu0 %1566
          %1568 = vrot.lane.b32.xlu0 %v1500, 3
          %v1569 = vpop.permute.xlu0 %1568
          %1570 = vrot.lane.b32.xlu0 %v1499, 3
          %v1571 = vpop.permute.xlu0 %1570
          %1572 = vrot.lane.b32.xlu0 %v1498, 3
          %v1573 = vpop.permute.xlu0 %1572
          %1574 = vrot.lane.b32.xlu0 %v1497, 3
          %v1575 = vpop.permute.xlu0 %1574
          %1576 = vrot.lane.b32.xlu0 %v1496, 3
          %v1577 = vpop.permute.xlu0 %1576
          %1578 = vrot.lane.b32.xlu0 %v1495, 3
          %v1579 = vpop.permute.xlu0 %1578
          %1580 = vrot.lane.b32.xlu0 %v1494, 3
          %v1581 = vpop.permute.xlu0 %1580
          %1582 = vrot.lane.b32.xlu0 %v1493, 3
          %v1583 = vpop.permute.xlu0 %1582
          %1584 = vrot.lane.b32.xlu0 %v1492, 3
          %v1585 = vpop.permute.xlu0 %1584
          %1586 = vrot.lane.b32.xlu0 %v1507, 3
          %v1587 = vpop.permute.xlu0 %1586
          %1620 = vrot.lane.b32.xlu0 %v1538, 6
          %v1621 = vpop.permute.xlu0 %1620
          %1622 = vrot.lane.b32.xlu0 %v1537, 6
          %v1623 = vpop.permute.xlu0 %1622
          %1624 = vrot.lane.b32.xlu0 %v1536, 6
          %v1625 = vpop.permute.xlu0 %1624
          %1626 = vrot.lane.b32.xlu0 %v1535, 6
          %v1627 = vpop.permute.xlu0 %1626
          %1628 = vrot.lane.b32.xlu0 %v1534, 6
          %v1629 = vpop.permute.xlu0 %1628
          %1630 = vrot.lane.b32.xlu0 %v1533, 6
          %v1631 = vpop.permute.xlu0 %1630
          %1632 = vrot.lane.b32.xlu0 %v1532, 6
          %v1633 = vpop.permute.xlu0 %1632
          %1634 = vrot.lane.b32.xlu0 %v1531, 6
          %v1635 = vpop.permute.xlu0 %1634
          %1636 = vrot.lane.b32.xlu0 %v1530, 6
          %v1637 = vpop.permute.xlu0 %1636
          %1638 = vrot.lane.b32.xlu0 %v1529, 6
          %v1639 = vpop.permute.xlu0 %1638
          %1640 = vrot.lane.b32.xlu0 %v1528, 6
          %v1641 = vpop.permute.xlu0 %1640
          %1642 = vrot.lane.b32.xlu0 %v1527, 6
          %v1643 = vpop.permute.xlu0 %1642
          %1644 = vrot.lane.b32.xlu0 %v1526, 6
          %v1645 = vpop.permute.xlu0 %1644
          %1646 = vrot.lane.b32.xlu0 %v1525, 6
          %v1647 = vpop.permute.xlu0 %1646
          %1648 = vrot.lane.b32.xlu0 %v1524, 6
          %v1649 = vpop.permute.xlu0 %1648
          %1650 = vrot.lane.b32.xlu0 %v1539, 6
          %v1651 = vpop.permute.xlu0 %1650
          %v1668 = vsel %vm510, %v1460, %v1557
          %v1669 = vsel %vm510, %v1461, %v1559
          %v1670 = vsel %vm510, %v1462, %v1561
          %v1671 = vsel %vm510, %v1463, %v1563
          %v1672 = vsel %vm510, %v1464, %v1565
          %v1673 = vsel %vm510, %v1465, %v1567
          %v1674 = vsel %vm510, %v1466, %v1569
          %v1675 = vsel %vm510, %v1467, %v1571
          %v1676 = vsel %vm510, %v1468, %v1573
          %v1677 = vsel %vm510, %v1469, %v1575
          %v1678 = vsel %vm510, %v1470, %v1577
          %v1679 = vsel %vm510, %v1471, %v1579
          %v1680 = vsel %vm510, %v1472, %v1581
          %v1681 = vsel %vm510, %v1473, %v1583
          %v1682 = vsel %vm510, %v1474, %v1585
          %v1683 = vsel %vm510, %v1475, %v1587
          %v1684 = vsel %vm527, %v1668, %v1621
          %v1685 = vsel %vm527, %v1669, %v1623
          %v1686 = vsel %vm527, %v1670, %v1625
          %v1687 = vsel %vm527, %v1671, %v1627
          %v1688 = vsel %vm527, %v1672, %v1629
          %v1689 = vsel %vm527, %v1673, %v1631
          %v1690 = vsel %vm527, %v1674, %v1633
          %v1691 = vsel %vm527, %v1675, %v1635
          %v1692 = vsel %vm527, %v1676, %v1637
          %v1693 = vsel %vm527, %v1677, %v1639
          %v1694 = vsel %vm527, %v1678, %v1641
          %v1695 = vsel %vm527, %v1679, %v1643
          %v1696 = vsel %vm527, %v1680, %v1645
          %v1697 = vsel %vm527, %v1681, %v1647
          %v1698 = vsel %vm527, %v1682, %v1649
          %v1699 = vsel %vm527, %v1683, %v1651
          %1716 = vrot.lane.b32.xlu0 %v1685, 9
          %v1717 = vpop.permute.xlu0 %1716
          %1718 = vrot.lane.b32.xlu0 %v1686, 9
          %v1719 = vpop.permute.xlu0 %1718
          %1720 = vrot.lane.b32.xlu0 %v1687, 9
          %v1721 = vpop.permute.xlu0 %1720
          %1722 = vrot.lane.b32.xlu0 %v1688, 9
          %v1723 = vpop.permute.xlu0 %1722
          %1724 = vrot.lane.b32.xlu0 %v1689, 9
          %v1725 = vpop.permute.xlu0 %1724
          %1726 = vrot.lane.b32.xlu0 %v1690, 9
          %v1727 = vpop.permute.xlu0 %1726
          %1728 = vrot.lane.b32.xlu0 %v1691, 9
          %v1729 = vpop.permute.xlu0 %1728
          %1730 = vrot.lane.b32.xlu0 %v1692, 9
          %v1731 = vpop.permute.xlu0 %1730
          %1732 = vrot.lane.b32.xlu0 %v1693, 9
          %v1733 = vpop.permute.xlu0 %1732
          %1734 = vrot.lane.b32.xlu0 %v1694, 9
          %v1735 = vpop.permute.xlu0 %1734
          %1736 = vrot.lane.b32.xlu0 %v1695, 9
          %v1737 = vpop.permute.xlu0 %1736
          %1738 = vrot.lane.b32.xlu0 %v1696, 9
          %v1739 = vpop.permute.xlu0 %1738
          %1740 = vrot.lane.b32.xlu0 %v1697, 9
          %v1741 = vpop.permute.xlu0 %1740
          %1742 = vrot.lane.b32.xlu0 %v1698, 9
          %v1743 = vpop.permute.xlu0 %1742
          %1744 = vrot.lane.b32.xlu0 %v1699, 9
          %v1745 = vpop.permute.xlu0 %1744
          %1746 = vrot.lane.b32.xlu0 %v1684, 9
          %v1747 = vpop.permute.xlu0 %1746
          %1764 = vrot.lane.b32.xlu0 %v1686, 18
          %v1765 = vpop.permute.xlu0 %1764
          %1766 = vrot.lane.b32.xlu0 %v1687, 18
          %v1767 = vpop.permute.xlu0 %1766
          %1768 = vrot.lane.b32.xlu0 %v1688, 18
          %v1769 = vpop.permute.xlu0 %1768
          %1770 = vrot.lane.b32.xlu0 %v1689, 18
          %v1771 = vpop.permute.xlu0 %1770
          %1772 = vrot.lane.b32.xlu0 %v1690, 18
          %v1773 = vpop.permute.xlu0 %1772
          %1774 = vrot.lane.b32.xlu0 %v1691, 18
          %v1775 = vpop.permute.xlu0 %1774
          %1776 = vrot.lane.b32.xlu0 %v1692, 18
          %v1777 = vpop.permute.xlu0 %1776
          %1778 = vrot.lane.b32.xlu0 %v1693, 18
          %v1779 = vpop.permute.xlu0 %1778
          %1780 = vrot.lane.b32.xlu0 %v1694, 18
          %v1781 = vpop.permute.xlu0 %1780
          %1782 = vrot.lane.b32.xlu0 %v1695, 18
          %v1783 = vpop.permute.xlu0 %1782
          %1784 = vrot.lane.b32.xlu0 %v1696, 18
          %v1785 = vpop.permute.xlu0 %1784
          %1786 = vrot.lane.b32.xlu0 %v1697, 18
          %v1787 = vpop.permute.xlu0 %1786
          %1788 = vrot.lane.b32.xlu0 %v1698, 18
          %v1789 = vpop.permute.xlu0 %1788
          %1790 = vrot.lane.b32.xlu0 %v1699, 18
          %v1791 = vpop.permute.xlu0 %1790
          %1792 = vrot.lane.b32.xlu0 %v1684, 18
          %v1793 = vpop.permute.xlu0 %1792
          %1794 = vrot.lane.b32.xlu0 %v1685, 18
          %v1795 = vpop.permute.xlu0 %1794
          %v1812 = vsel %vm656, %v1684, %v1717
          %v1813 = vsel %vm656, %v1685, %v1719
          %v1814 = vsel %vm656, %v1686, %v1721
          %v1815 = vsel %vm656, %v1687, %v1723
          %v1816 = vsel %vm656, %v1688, %v1725
          %v1817 = vsel %vm656, %v1689, %v1727
          %v1818 = vsel %vm656, %v1690, %v1729
          %v1819 = vsel %vm656, %v1691, %v1731
          %v1820 = vsel %vm656, %v1692, %v1733
          %v1821 = vsel %vm656, %v1693, %v1735
          %v1822 = vsel %vm656, %v1694, %v1737
          %v1823 = vsel %vm656, %v1695, %v1739
          %v1824 = vsel %vm656, %v1696, %v1741
          %v1825 = vsel %vm656, %v1697, %v1743
          %v1826 = vsel %vm656, %v1698, %v1745
          %v1827 = vsel %vm656, %v1699, %v1747
          %v1828 = vsel %vm673, %v1812, %v1765
          %v1829 = vsel %vm673, %v1813, %v1767
          %v1830 = vsel %vm673, %v1814, %v1769
          %v1831 = vsel %vm673, %v1815, %v1771
          %v1832 = vsel %vm673, %v1816, %v1773
          %v1833 = vsel %vm673, %v1817, %v1775
          %v1834 = vsel %vm673, %v1818, %v1777
          %v1835 = vsel %vm673, %v1819, %v1779
          %v1836 = vsel %vm673, %v1820, %v1781
          %v1837 = vsel %vm673, %v1821, %v1783
          %v1838 = vsel %vm673, %v1822, %v1785
          %v1839 = vsel %vm673, %v1823, %v1787
          %v1840 = vsel %vm673, %v1824, %v1789
          %v1841 = vsel %vm673, %v1825, %v1791
          %v1842 = vsel %vm673, %v1826, %v1793
          %v1843 = vsel %vm673, %v1827, %v1795
          %v1845 = vsel %vm691, %v1828, 0
          %v1848 = vsel %vm691, %v1829, 0
          %v1851 = vsel %vm691, %v1830, 0
          %v1854 = vsel %vm691, %v1831, 0
          %v1857 = vsel %vm691, %v1832, 0
          %v1860 = vsel %vm691, %v1833, 0
          %v1863 = vsel %vm691, %v1834, 0
          %v1866 = vsel %vm691, %v1835, 0
          %v1869 = vsel %vm691, %v1836, 0
          %v1872 = vsel %vm691, %v1837, 0
          %v1875 = vsel %vm691, %v1838, 0
          %v1878 = vsel %vm691, %v1839, 0
          %v1881 = vsel %vm691, %v1840, 0
          %v1884 = vsel %vm691, %v1841, 0
          %v1887 = vsel %vm691, %v1842, 0
          %v1890 = vsel %vm691, %v1843, 0
          %1892 = vmatpush.msra.mxu0 0.0
          %1893 = vmatpush.msra.mxu0 0.0
          %1894 = vmatpush.msra.mxu0 0.0
          %1895 = vmatpush.msra.mxu0 0.0
          %1896 = vmatpush.msra.mxu0 0.0
          %1897 = vmatpush.msra.mxu0 0.0
          %1898 = vmatpush.msra.mxu0 0.0
          %1899 = vmatpush.msra.mxu0 0.0
          %1900 = vmatpush.msra.mxu0 0.0
          %1901 = vmatpush.msra.mxu0 0.0
          %1902 = vmatpush.msra.mxu0 0.0
          %1903 = vmatpush.msra.mxu0 0.0
          %1904 = vmatpush.msra.mxu0 %v742
          %1905 = vmatpush.msra.mxu0 %v277
          %1906 = vmatpush.msra.mxu0 %v276
          %1907 = vmatpush.msra.mxu0 %v275
          %1908 = vmatmul.f32.gmra.mxu0 %v1845
          %v1909 = vpop.f32.mrf.mxu0
          %v1910 = vadd.f32 %v690, %v1909
          %1911 = vmatmul.f32.gmra.mxu0 %v1848
          %v1912 = vpop.f32.mrf.mxu0
          %v1913 = vadd.f32 %v690, %v1912
          %1914 = vmatmul.f32.gmra.mxu0 %v1851
          %v1915 = vpop.f32.mrf.mxu0
          %v1916 = vadd.f32 %v690, %v1915
          %1917 = vmatmul.f32.gmra.mxu0 %v1854
          %v1918 = vpop.f32.mrf.mxu0
          %v1919 = vadd.f32 %v690, %v1918
          %1920 = vmatmul.f32.gmra.mxu0 %v1857
          %v1921 = vpop.f32.mrf.mxu0
          %v1922 = vadd.f32 %v690, %v1921
          %1923 = vmatmul.f32.gmra.mxu0 %v1860
          %v1924 = vpop.f32.mrf.mxu0
          %v1925 = vadd.f32 %v690, %v1924
          %1926 = vmatmul.f32.gmra.mxu0 %v1863
          %v1927 = vpop.f32.mrf.mxu0
          %v1928 = vadd.f32 %v690, %v1927
          %1929 = vmatmul.f32.gmra.mxu0 %v1866
          %v1930 = vpop.f32.mrf.mxu0
          %v1931 = vadd.f32 %v690, %v1930
          %1932 = vmatmul.f32.gmra.mxu0 %v1869
          %v1933 = vpop.f32.mrf.mxu0
          %v1934 = vadd.f32 %v690, %v1933
          %1935 = vmatmul.f32.gmra.mxu0 %v1872
          %v1936 = vpop.f32.mrf.mxu0
          %v1937 = vadd.f32 %v690, %v1936
          %1938 = vmatmul.f32.gmra.mxu0 %v1875
          %v1939 = vpop.f32.mrf.mxu0
          %v1940 = vadd.f32 %v690, %v1939
          %1941 = vmatmul.f32.gmra.mxu0 %v1878
          %v1942 = vpop.f32.mrf.mxu0
          %v1943 = vadd.f32 %v690, %v1942
          %1944 = vmatmul.f32.gmra.mxu0 %v1881
          %v1945 = vpop.f32.mrf.mxu0
          %v1946 = vadd.f32 %v690, %v1945
          %1947 = vmatmul.f32.gmra.mxu0 %v1884
          %v1948 = vpop.f32.mrf.mxu0
          %v1949 = vadd.f32 %v690, %v1948
          %1950 = vmatmul.f32.gmra.mxu0 %v1887
          %v1951 = vpop.f32.mrf.mxu0
          %v1952 = vadd.f32 %v690, %v1951
          %1953 = vmatmul.f32.gmra.mxu0 %v1890
          %v1954 = vpop.f32.mrf.mxu0
          %v1955 = vadd.f32 %v690, %v1954
          %1956 = vdwg.mxu0
          %v1957 = vmax.f32 %v1910, 0.0
          %v1958 = vmax.f32 %v1913, 0.0
          %v1959 = vmax.f32 %v1916, 0.0
          %v1960 = vmax.f32 %v1919, 0.0
          %v1961 = vmax.f32 %v1922, 0.0
          %v1962 = vmax.f32 %v1925, 0.0
          %v1963 = vmax.f32 %v1928, 0.0
          %v1964 = vmax.f32 %v1931, 0.0
          %v1965 = vmax.f32 %v1934, 0.0
          %v1966 = vmax.f32 %v1937, 0.0
          %v1967 = vmax.f32 %v1940, 0.0
          %v1968 = vmax.f32 %v1943, 0.0
          %v1969 = vmax.f32 %v1946, 0.0
          %v1970 = vmax.f32 %v1949, 0.0
          %v1971 = vmax.f32 %v1952, 0.0
          %v1972 = vmax.f32 %v1955, 0.0
          %v1973 = vrot.slane %v1957, 1
          %v1974 = vrot.slane %v1958, 1
          %v1975 = vrot.slane %v1959, 1
          %v1976 = vrot.slane %v1960, 1
          %v1977 = vrot.slane %v1961, 1
          %v1978 = vrot.slane %v1962, 1
          %v1979 = vrot.slane %v1963, 1
          %v1980 = vrot.slane %v1964, 1
          %v1981 = vrot.slane %v1965, 1
          %v1982 = vrot.slane %v1966, 1
          %v1983 = vrot.slane %v1967, 1
          %v1984 = vrot.slane %v1968, 1
          %v1985 = vrot.slane %v1969, 1
          %v1986 = vrot.slane %v1970, 1
          %v1987 = vrot.slane %v1971, 1
          %v1988 = vrot.slane %v1972, 1
          %v1989 = vsel %vm332, %v1987, %v1988
          %v1990 = vsel %vm332, %v1986, %v1987
          %v1991 = vsel %vm332, %v1985, %v1986
          %v1992 = vsel %vm332, %v1984, %v1985
          %v1993 = vsel %vm332, %v1983, %v1984
          %v1994 = vsel %vm332, %v1982, %v1983
          %v1995 = vsel %vm332, %v1981, %v1982
          %v1996 = vsel %vm332, %v1980, %v1981
          %v1997 = vsel %vm332, %v1979, %v1980
          %v1998 = vsel %vm332, %v1978, %v1979
          %v1999 = vsel %vm332, %v1977, %v1978
          %v2000 = vsel %vm332, %v1976, %v1977
          %v2001 = vsel %vm332, %v1975, %v1976
          %v2002 = vsel %vm332, %v1974, %v1975
          %v2003 = vsel %vm332, %v1973, %v1974
          %v2004 = vsel %vm332, %v1988, %v1973
          %v2005 = vmax.f32 %v1957, %v2003
          %v2006 = vmax.f32 %v1958, %v2002
          %v2007 = vmax.f32 %v1959, %v2001
          %v2008 = vmax.f32 %v1960, %v2000
          %v2009 = vmax.f32 %v1961, %v1999
          %v2010 = vmax.f32 %v1962, %v1998
          %v2011 = vmax.f32 %v1963, %v1997
          %v2012 = vmax.f32 %v1964, %v1996
          %v2013 = vmax.f32 %v1965, %v1995
          %v2014 = vmax.f32 %v1966, %v1994
          %v2015 = vmax.f32 %v1967, %v1993
          %v2016 = vmax.f32 %v1968, %v1992
          %v2017 = vmax.f32 %v1969, %v1991
          %v2018 = vmax.f32 %v1970, %v1990
          %v2019 = vmax.f32 %v1971, %v1989
          %v2020 = vmax.f32 %v1972, %v2004
          %v2021 = vmax.f32 %v2005, %v2006
          %v2022 = vmax.f32 %v2006, %v2007
          %v2023 = vmax.f32 %v2007, %v2008
          %v2024 = vmax.f32 %v2008, %v2009
          %v2025 = vmax.f32 %v2009, %v2010
          %v2026 = vmax.f32 %v2010, %v2011
          %v2027 = vmax.f32 %v2011, %v2012
          %v2028 = vmax.f32 %v2012, %v2013
          %v2029 = vmax.f32 %v2013, %v2014
          %v2030 = vmax.f32 %v2014, %v2015
          %v2031 = vmax.f32 %v2015, %v2016
          %v2032 = vmax.f32 %v2016, %v2017
          %v2033 = vmax.f32 %v2017, %v2018
          %v2034 = vmax.f32 %v2018, %v2019
          %v2035 = vmax.f32 %v2019, %v2020
          %v2036 = vmax.f32 %v2020, %v2005
          %v2037 = vrot.slane %v2021, 1
          %v2038 = vrot.slane %v2022, 1
          %v2039 = vrot.slane %v2023, 1
          %v2040 = vrot.slane %v2024, 1
          %v2041 = vrot.slane %v2025, 1
          %v2042 = vrot.slane %v2026, 1
          %v2043 = vrot.slane %v2027, 1
          %v2044 = vrot.slane %v2028, 1
          %v2045 = vrot.slane %v2029, 1
          %v2046 = vrot.slane %v2030, 1
          %v2047 = vrot.slane %v2031, 1
          %v2048 = vrot.slane %v2032, 1
          %v2049 = vrot.slane %v2033, 1
          %v2050 = vrot.slane %v2034, 1
          %v2051 = vrot.slane %v2035, 1
          %v2052 = vrot.slane %v2036, 1
          %v2053 = vsel %vm332, %v2051, %v2052
          %v2054 = vsel %vm332, %v2050, %v2051
          %v2055 = vsel %vm332, %v2049, %v2050
          %v2056 = vsel %vm332, %v2048, %v2049
          %v2057 = vsel %vm332, %v2047, %v2048
          %v2058 = vsel %vm332, %v2046, %v2047
          %v2059 = vsel %vm332, %v2045, %v2046
          %v2060 = vsel %vm332, %v2044, %v2045
          %v2061 = vsel %vm332, %v2043, %v2044
          %v2062 = vsel %vm332, %v2042, %v2043
          %v2063 = vsel %vm332, %v2041, %v2042
          %v2064 = vsel %vm332, %v2040, %v2041
          %v2065 = vsel %vm332, %v2039, %v2040
          %v2066 = vsel %vm332, %v2038, %v2039
          %v2067 = vsel %vm332, %v2037, %v2038
          %v2068 = vsel %vm332, %v2052, %v2037
          %v2069 = vrot.slane %v2021, 2
          %v2070 = vrot.slane %v2022, 2
          %v2071 = vrot.slane %v2023, 2
          %v2072 = vrot.slane %v2024, 2
          %v2073 = vrot.slane %v2025, 2
          %v2074 = vrot.slane %v2026, 2
          %v2075 = vrot.slane %v2027, 2
          %v2076 = vrot.slane %v2028, 2
          %v2077 = vrot.slane %v2029, 2
          %v2078 = vrot.slane %v2030, 2
          %v2079 = vrot.slane %v2031, 2
          %v2080 = vrot.slane %v2032, 2
          %v2081 = vrot.slane %v2033, 2
          %v2082 = vrot.slane %v2034, 2
          %v2083 = vrot.slane %v2035, 2
          %v2084 = vrot.slane %v2036, 2
          %v2085 = vsel %vm365, %v2083, %v2084
          %v2086 = vsel %vm365, %v2082, %v2083
          %v2087 = vsel %vm365, %v2081, %v2082
          %v2088 = vsel %vm365, %v2080, %v2081
          %v2089 = vsel %vm365, %v2079, %v2080
          %v2090 = vsel %vm365, %v2078, %v2079
          %v2091 = vsel %vm365, %v2077, %v2078
          %v2092 = vsel %vm365, %v2076, %v2077
          %v2093 = vsel %vm365, %v2075, %v2076
          %v2094 = vsel %vm365, %v2074, %v2075
          %v2095 = vsel %vm365, %v2073, %v2074
          %v2096 = vsel %vm365, %v2072, %v2073
          %v2097 = vsel %vm365, %v2071, %v2072
          %v2098 = vsel %vm365, %v2070, %v2071
          %v2099 = vsel %vm365, %v2069, %v2070
          %v2100 = vsel %vm365, %v2084, %v2069
          %2117 = vrot.lane.b32.xlu0 %v2067, 8
          %v2118 = vpop.permute.xlu0 %2117
          %2119 = vrot.lane.b32.xlu0 %v2066, 8
          %v2120 = vpop.permute.xlu0 %2119
          %2121 = vrot.lane.b32.xlu0 %v2065, 8
          %v2122 = vpop.permute.xlu0 %2121
          %2123 = vrot.lane.b32.xlu0 %v2064, 8
          %v2124 = vpop.permute.xlu0 %2123
          %2125 = vrot.lane.b32.xlu0 %v2063, 8
          %v2126 = vpop.permute.xlu0 %2125
          %2127 = vrot.lane.b32.xlu0 %v2062, 8
          %v2128 = vpop.permute.xlu0 %2127
          %2129 = vrot.lane.b32.xlu0 %v2061, 8
          %v2130 = vpop.permute.xlu0 %2129
          %2131 = vrot.lane.b32.xlu0 %v2060, 8
          %v2132 = vpop.permute.xlu0 %2131
          %2133 = vrot.lane.b32.xlu0 %v2059, 8
          %v2134 = vpop.permute.xlu0 %2133
          %2135 = vrot.lane.b32.xlu0 %v2058, 8
          %v2136 = vpop.permute.xlu0 %2135
          %2137 = vrot.lane.b32.xlu0 %v2057, 8
          %v2138 = vpop.permute.xlu0 %2137
          %2139 = vrot.lane.b32.xlu0 %v2056, 8
          %v2140 = vpop.permute.xlu0 %2139
          %2141 = vrot.lane.b32.xlu0 %v2055, 8
          %v2142 = vpop.permute.xlu0 %2141
          %2143 = vrot.lane.b32.xlu0 %v2054, 8
          %v2144 = vpop.permute.xlu0 %2143
          %2145 = vrot.lane.b32.xlu0 %v2053, 8
          %v2146 = vpop.permute.xlu0 %2145
          %2147 = vrot.lane.b32.xlu0 %v2068, 8
          %v2148 = vpop.permute.xlu0 %2147
          %2181 = vrot.lane.b32.xlu0 %v2099, 16
          %v2182 = vpop.permute.xlu0 %2181
          %2183 = vrot.lane.b32.xlu0 %v2098, 16
          %v2184 = vpop.permute.xlu0 %2183
          %2185 = vrot.lane.b32.xlu0 %v2097, 16
          %v2186 = vpop.permute.xlu0 %2185
          %2187 = vrot.lane.b32.xlu0 %v2096, 16
          %v2188 = vpop.permute.xlu0 %2187
          %2189 = vrot.lane.b32.xlu0 %v2095, 16
          %v2190 = vpop.permute.xlu0 %2189
          %2191 = vrot.lane.b32.xlu0 %v2094, 16
          %v2192 = vpop.permute.xlu0 %2191
          %2193 = vrot.lane.b32.xlu0 %v2093, 16
          %v2194 = vpop.permute.xlu0 %2193
          %2195 = vrot.lane.b32.xlu0 %v2092, 16
          %v2196 = vpop.permute.xlu0 %2195
          %2197 = vrot.lane.b32.xlu0 %v2091, 16
          %v2198 = vpop.permute.xlu0 %2197
          %2199 = vrot.lane.b32.xlu0 %v2090, 16
          %v2200 = vpop.permute.xlu0 %2199
          %2201 = vrot.lane.b32.xlu0 %v2089, 16
          %v2202 = vpop.permute.xlu0 %2201
          %2203 = vrot.lane.b32.xlu0 %v2088, 16
          %v2204 = vpop.permute.xlu0 %2203
          %2205 = vrot.lane.b32.xlu0 %v2087, 16
          %v2206 = vpop.permute.xlu0 %2205
          %2207 = vrot.lane.b32.xlu0 %v2086, 16
          %v2208 = vpop.permute.xlu0 %2207
          %2209 = vrot.lane.b32.xlu0 %v2085, 16
          %v2210 = vpop.permute.xlu0 %2209
          %2211 = vrot.lane.b32.xlu0 %v2100, 16
          %v2212 = vpop.permute.xlu0 %2211
          %v2229 = vsel %vm1081, %v2021, %v2118
          %v2230 = vsel %vm1081, %v2022, %v2120
          %v2231 = vsel %vm1081, %v2023, %v2122
          %v2232 = vsel %vm1081, %v2024, %v2124
          %v2233 = vsel %vm1081, %v2025, %v2126
          %v2234 = vsel %vm1081, %v2026, %v2128
          %v2235 = vsel %vm1081, %v2027, %v2130
          %v2236 = vsel %vm1081, %v2028, %v2132
          %v2237 = vsel %vm1081, %v2029, %v2134
          %v2238 = vsel %vm1081, %v2030, %v2136
          %v2239 = vsel %vm1081, %v2031, %v2138
          %v2240 = vsel %vm1081, %v2032, %v2140
          %v2241 = vsel %vm1081, %v2033, %v2142
          %v2242 = vsel %vm1081, %v2034, %v2144
          %v2243 = vsel %vm1081, %v2035, %v2146
          %v2244 = vsel %vm1081, %v2036, %v2148
          %v2245 = vsel %vm1098, %v2229, %v2182
          %v2246 = vsel %vm1098, %v2230, %v2184
          %v2247 = vsel %vm1098, %v2231, %v2186
          %v2248 = vsel %vm1098, %v2232, %v2188
          %v2249 = vsel %vm1098, %v2233, %v2190
          %v2250 = vsel %vm1098, %v2234, %v2192
          %v2251 = vsel %vm1098, %v2235, %v2194
          %v2252 = vsel %vm1098, %v2236, %v2196
          %v2253 = vsel %vm1098, %v2237, %v2198
          %v2254 = vsel %vm1098, %v2238, %v2200
          %v2255 = vsel %vm1098, %v2239, %v2202
          %v2256 = vsel %vm1098, %v2240, %v2204
          %v2257 = vsel %vm1098, %v2241, %v2206
          %v2258 = vsel %vm1098, %v2242, %v2208
          %v2259 = vsel %vm1098, %v2243, %v2210
          %v2260 = vsel %vm1098, %v2244, %v2212
          %2277 = vrot.lane.b32.xlu0 %v2246, 24
          %v2278 = vpop.permute.xlu0 %2277
          %2279 = vrot.lane.b32.xlu0 %v2247, 24
          %v2280 = vpop.permute.xlu0 %2279
          %2281 = vrot.lane.b32.xlu0 %v2248, 24
          %v2282 = vpop.permute.xlu0 %2281
          %2283 = vrot.lane.b32.xlu0 %v2249, 24
          %v2284 = vpop.permute.xlu0 %2283
          %2285 = vrot.lane.b32.xlu0 %v2250, 24
          %v2286 = vpop.permute.xlu0 %2285
          %2287 = vrot.lane.b32.xlu0 %v2251, 24
          %v2288 = vpop.permute.xlu0 %2287
          %2289 = vrot.lane.b32.xlu0 %v2252, 24
          %v2290 = vpop.permute.xlu0 %2289
          %2291 = vrot.lane.b32.xlu0 %v2253, 24
          %v2292 = vpop.permute.xlu0 %2291
          %2293 = vrot.lane.b32.xlu0 %v2254, 24
          %v2294 = vpop.permute.xlu0 %2293
          %2295 = vrot.lane.b32.xlu0 %v2255, 24
          %v2296 = vpop.permute.xlu0 %2295
          %2297 = vrot.lane.b32.xlu0 %v2256, 24
          %v2298 = vpop.permute.xlu0 %2297
          %2299 = vrot.lane.b32.xlu0 %v2257, 24
          %v2300 = vpop.permute.xlu0 %2299
          %2301 = vrot.lane.b32.xlu0 %v2258, 24
          %v2302 = vpop.permute.xlu0 %2301
          %2303 = vrot.lane.b32.xlu0 %v2259, 24
          %v2304 = vpop.permute.xlu0 %2303
          %2305 = vrot.lane.b32.xlu0 %v2260, 24
          %v2306 = vpop.permute.xlu0 %2305
          %2307 = vrot.lane.b32.xlu0 %v2245, 24
          %v2308 = vpop.permute.xlu0 %2307
          %2325 = vrot.lane.b32.xlu0 %v2247, 48
          %v2326 = vpop.permute.xlu0 %2325
          %2327 = vrot.lane.b32.xlu0 %v2248, 48
          %v2328 = vpop.permute.xlu0 %2327
          %2329 = vrot.lane.b32.xlu0 %v2249, 48
          %v2330 = vpop.permute.xlu0 %2329
          %2331 = vrot.lane.b32.xlu0 %v2250, 48
          %v2332 = vpop.permute.xlu0 %2331
          %2333 = vrot.lane.b32.xlu0 %v2251, 48
          %v2334 = vpop.permute.xlu0 %2333
          %2335 = vrot.lane.b32.xlu0 %v2252, 48
          %v2336 = vpop.permute.xlu0 %2335
          %2337 = vrot.lane.b32.xlu0 %v2253, 48
          %v2338 = vpop.permute.xlu0 %2337
          %2339 = vrot.lane.b32.xlu0 %v2254, 48
          %v2340 = vpop.permute.xlu0 %2339
          %2341 = vrot.lane.b32.xlu0 %v2255, 48
          %v2342 = vpop.permute.xlu0 %2341
          %2343 = vrot.lane.b32.xlu0 %v2256, 48
          %v2344 = vpop.permute.xlu0 %2343
          %2345 = vrot.lane.b32.xlu0 %v2257, 48
          %v2346 = vpop.permute.xlu0 %2345
          %2347 = vrot.lane.b32.xlu0 %v2258, 48
          %v2348 = vpop.permute.xlu0 %2347
          %2349 = vrot.lane.b32.xlu0 %v2259, 48
          %v2350 = vpop.permute.xlu0 %2349
          %2351 = vrot.lane.b32.xlu0 %v2260, 48
          %v2352 = vpop.permute.xlu0 %2351
          %2353 = vrot.lane.b32.xlu0 %v2245, 48
          %v2354 = vpop.permute.xlu0 %2353
          %2355 = vrot.lane.b32.xlu0 %v2246, 48
          %v2356 = vpop.permute.xlu0 %2355
          %v2373 = vsel %vm1227, %v2245, %v2278
          %v2374 = vsel %vm1227, %v2246, %v2280
          %v2375 = vsel %vm1227, %v2247, %v2282
          %v2376 = vsel %vm1227, %v2248, %v2284
          %v2377 = vsel %vm1227, %v2249, %v2286
          %v2378 = vsel %vm1227, %v2250, %v2288
          %v2379 = vsel %vm1227, %v2251, %v2290
          %v2380 = vsel %vm1227, %v2252, %v2292
          %v2381 = vsel %vm1227, %v2253, %v2294
          %v2382 = vsel %vm1227, %v2254, %v2296
          %v2383 = vsel %vm1227, %v2255, %v2298
          %v2384 = vsel %vm1227, %v2256, %v2300
          %v2385 = vsel %vm1227, %v2257, %v2302
          %v2386 = vsel %vm1227, %v2258, %v2304
          %v2387 = vsel %vm1227, %v2259, %v2306
          %v2388 = vsel %vm1227, %v2260, %v2308
          %v2389 = vsel %vm1244, %v2373, %v2326
          %v2390 = vsel %vm1244, %v2374, %v2328
          %v2391 = vsel %vm1244, %v2375, %v2330
          %v2392 = vsel %vm1244, %v2376, %v2332
          %v2393 = vsel %vm1244, %v2377, %v2334
          %v2394 = vsel %vm1244, %v2378, %v2336
          %v2395 = vsel %vm1244, %v2379, %v2338
          %v2396 = vsel %vm1244, %v2380, %v2340
          %v2397 = vsel %vm1244, %v2381, %v2342
          %v2398 = vsel %vm1244, %v2382, %v2344
          %v2399 = vsel %vm1244, %v2383, %v2346
          %v2400 = vsel %vm1244, %v2384, %v2348
          %v2401 = vsel %vm1244, %v2385, %v2350
          %v2402 = vsel %vm1244, %v2386, %v2352
          %v2403 = vsel %vm1244, %v2387, %v2354
          %v2404 = vsel %vm1244, %v2388, %v2356
          %v2406 = vsel %vm1262, %v2389, 0
          %v2409 = vsel %vm1262, %v2390, 0
          %v2412 = vsel %vm1262, %v2391, 0
          %v2415 = vsel %vm1262, %v2392, 0
          %v2418 = vsel %vm1262, %v2393, 0
          %v2421 = vsel %vm1262, %v2394, 0
          %v2424 = vsel %vm1262, %v2395, 0
          %v2427 = vsel %vm1262, %v2396, 0
          %v2430 = vsel %vm1262, %v2397, 0
          %v2433 = vsel %vm1262, %v2398, 0
          %v2436 = vsel %vm1262, %v2399, 0
          %v2439 = vsel %vm1262, %v2400, 0
          %v2442 = vsel %vm1262, %v2401, 0
          %v2445 = vsel %vm1262, %v2402, 0
          %v2448 = vsel %vm1262, %v2403, 0
          %v2451 = vsel %vm1262, %v2404, 0
          %2453 = vmatpush.msra.mxu0 0.0
          %2454 = vmatpush.msra.mxu0 0.0
          %2455 = vmatpush.msra.mxu0 0.0
          %2456 = vmatpush.msra.mxu0 0.0
          %2457 = vmatpush.msra.mxu0 0.0
          %2458 = vmatpush.msra.mxu0 0.0
          %2459 = vmatpush.msra.mxu0 0.0
          %2460 = vmatpush.msra.mxu0 %v287
          %2461 = vmatpush.msra.mxu0 %v286
          %2462 = vmatpush.msra.mxu0 %v285
          %2463 = vmatpush.msra.mxu0 %v284
          %2464 = vmatpush.msra.mxu0 %v283
          %2465 = vmatpush.msra.mxu0 %v282
          %2466 = vmatpush.msra.mxu0 %v281
          %2467 = vmatpush.msra.mxu0 %v280
          %2468 = vmatpush.msra.mxu0 %v279
          %2469 = vmatmul.f32.gmra.mxu0 %v2406
          %v2470 = vpop.f32.mrf.mxu0
          %v2471 = vadd.f32 %v1261, %v2470
          %2472 = vmatmul.f32.gmra.mxu0 %v2409
          %v2473 = vpop.f32.mrf.mxu0
          %v2474 = vadd.f32 %v1261, %v2473
          %2475 = vmatmul.f32.gmra.mxu0 %v2412
          %v2476 = vpop.f32.mrf.mxu0
          %v2477 = vadd.f32 %v1261, %v2476
          %2478 = vmatmul.f32.gmra.mxu0 %v2415
          %v2479 = vpop.f32.mrf.mxu0
          %v2480 = vadd.f32 %v1261, %v2479
          %2481 = vmatmul.f32.gmra.mxu0 %v2418
          %v2482 = vpop.f32.mrf.mxu0
          %v2483 = vadd.f32 %v1261, %v2482
          %2484 = vmatmul.f32.gmra.mxu0 %v2421
          %v2485 = vpop.f32.mrf.mxu0
          %2486 = vmatmul.f32.gmra.mxu0 %v2424
          %v2487 = vpop.f32.mrf.mxu0
          %2488 = vmatmul.f32.gmra.mxu0 %v2427
          %v2489 = vpop.f32.mrf.mxu0
          %2490 = vmatmul.f32.gmra.mxu0 %v2430
          %v2491 = vpop.f32.mrf.mxu0
          %v2492 = vadd.f32 %v1261, %v2491
          %2493 = vmatmul.f32.gmra.mxu0 %v2433
          %v2494 = vpop.f32.mrf.mxu0
          %v2495 = vadd.f32 %v1261, %v2494
          %2496 = vmatmul.f32.gmra.mxu0 %v2436
          %v2497 = vpop.f32.mrf.mxu0
          %v2498 = vadd.f32 %v1261, %v2497
          %2499 = vmatmul.f32.gmra.mxu0 %v2439
          %v2500 = vpop.f32.mrf.mxu0
          %v2501 = vadd.f32 %v1261, %v2500
          %2502 = vmatmul.f32.gmra.mxu0 %v2442
          %v2503 = vpop.f32.mrf.mxu0
          %v2504 = vadd.f32 %v1261, %v2503
          %2505 = vmatmul.f32.gmra.mxu0 %v2445
          %v2506 = vpop.f32.mrf.mxu0
          %2507 = vmatmul.f32.gmra.mxu0 %v2448
          %v2508 = vpop.f32.mrf.mxu0
          %2509 = vmatmul.f32.gmra.mxu0 %v2451
          %v2510 = vpop.f32.mrf.mxu0
          %2511 = vdwg.mxu0
          %v2512 = vmax.f32 %v2471, 0.0
          %v2513 = vmax.f32 %v2474, 0.0
          %v2514 = vmax.f32 %v2477, 0.0
          %v2515 = vmax.f32 %v2480, 0.0
          %v2516 = vmax.f32 %v2483, 0.0
          %v2517 = vmax.f32 %v2492, 0.0
          %v2518 = vmax.f32 %v2495, 0.0
          %v2519 = vmax.f32 %v2498, 0.0
          %v2520 = vmax.f32 %v2501, 0.0
          %v2521 = vmax.f32 %v2504, 0.0
          %v2522 = vrot.slane %v2512, 1
          %v2523 = vrot.slane %v2513, 1
          %v2524 = vrot.slane %v2514, 1
          %v2525 = vrot.slane %v2515, 1
          %v2526 = vrot.slane %v2516, 1
          %v2527 = vrot.slane %v2517, 1
          %v2528 = vrot.slane %v2518, 1
          %v2529 = vrot.slane %v2519, 1
          %v2530 = vrot.slane %v2520, 1
          %v2531 = vrot.slane %v2521, 1
          %v2532 = vsel %vm332, %v2530, %v2531
          %v2533 = vsel %vm332, %v2529, %v2530
          %v2534 = vsel %vm332, %v2528, %v2529
          %v2535 = vsel %vm332, %v2527, %v2528
          %v2536 = vsel %vm332, %v2525, %v2526
          %v2537 = vsel %vm332, %v2524, %v2525
          %v2538 = vsel %vm332, %v2523, %v2524
          %v2539 = vsel %vm332, %v2522, %v2523
          %v2540 = vmax.f32 %v2512, %v2539
          %v2541 = vmax.f32 %v2513, %v2538
          %v2542 = vmax.f32 %v2514, %v2537
          %v2543 = vmax.f32 %v2515, %v2536
          %v2544 = vmax.f32 %v2517, %v2535
          %v2545 = vmax.f32 %v2518, %v2534
          %v2546 = vmax.f32 %v2519, %v2533
          %v2547 = vmax.f32 %v2520, %v2532
          %v2548 = vmax.f32 %v2540, %v2541
          %v2549 = vmax.f32 %v2541, %v2542
          %v2550 = vmax.f32 %v2542, %v2543
          %v2551 = vmax.f32 %v2544, %v2545
          %v2552 = vmax.f32 %v2545, %v2546
          %v2553 = vmax.f32 %v2546, %v2547
          %v2554 = vrot.slane %v2548, 1
          %v2555 = vrot.slane %v2549, 1
          %v2556 = vrot.slane %v2550, 1
          %v2557 = vrot.slane %v2551, 1
          %v2558 = vrot.slane %v2552, 1
          %v2559 = vrot.slane %v2553, 1
          %v2560 = vsel %vm332, %v2558, %v2559
          %v2561 = vsel %vm332, %v2557, %v2558
          %v2562 = vsel %vm332, %v2555, %v2556
          %v2563 = vsel %vm332, %v2554, %v2555
          %2568 = vrot.lane.b32.xlu0 %v2563, 16
          %v2569 = vpop.permute.xlu0 %2568
          %2570 = vrot.lane.b32.xlu0 %v2562, 16
          %v2571 = vpop.permute.xlu0 %2570
          %2572 = vrot.lane.b32.xlu0 %v2561, 16
          %v2573 = vpop.permute.xlu0 %2572
          %2574 = vrot.lane.b32.xlu0 %v2560, 16
          %v2575 = vpop.permute.xlu0 %2574
          %v2580 = vsel %vm1098, %v2548, %v2569
          %v2581 = vsel %vm1098, %v2549, %v2571
          %v2582 = vsel %vm1098, %v2551, %v2573
          %v2583 = vsel %vm1098, %v2552, %v2575
          %2586 = vrot.lane.b32.xlu0 %v2581, 32
          %v2587 = vpop.permute.xlu0 %2586
          %2588 = vrot.lane.b32.xlu0 %v2583, 32
          %v2589 = vpop.permute.xlu0 %2588
          %v2592 = vsel %vm1450, %v2580, %v2587
          %v2593 = vsel %vm1450, %v2582, %v2589
          %v2595 = vrot.slane %v2593, 7
          %v2597 = vsel %vm1456, %v2592, %v2595
          %s2598 = sadd.s32 %s296, 256
          %s2599 = scalar_lea.vmem %s266, %s2598
          %v2600 = vld [vmem:[%s2599] sm:$0xff]
          %v2601 = vld [vmem:[%s2599 + $0x8] sm:$0xff]
          %v2602 = vld [vmem:[%s2599 + $0x10] sm:$0xff]
          %v2603 = vld [vmem:[%s2599 + $0x18] sm:$0xff]
          %v2604 = vld [vmem:[%s2599 + $0x20] sm:$0xff]
          %v2605 = vld [vmem:[%s2599 + $0x28] sm:$0xff]
          %v2606 = vld [vmem:[%s2599 + $0x30] sm:$0xff]
          %v2607 = vld [vmem:[%s2599 + $0x38] sm:$0xff]
          %v2608 = vld [vmem:[%s2599 + $0x40] sm:$0xff]
          %v2609 = vld [vmem:[%s2599 + $0x48] sm:$0xff]
          %v2610 = vld [vmem:[%s2599 + $0x50] sm:$0xff]
          %v2611 = vld [vmem:[%s2599 + $0x58] sm:$0xff]
          %v2612 = vld [vmem:[%s2599 + $0x60] sm:$0xff]
          %v2613 = vld [vmem:[%s2599 + $0x68] sm:$0xff]
          %v2614 = vld [vmem:[%s2599 + $0x70] sm:$0xff]
          %v2615 = vld [vmem:[%s2599 + $0x78] sm:$0xff]
          %v2616 = vrot.slane %v2600, 1
          %v2617 = vrot.slane %v2601, 1
          %v2618 = vrot.slane %v2602, 1
          %v2619 = vrot.slane %v2603, 1
          %v2620 = vrot.slane %v2604, 1
          %v2621 = vrot.slane %v2605, 1
          %v2622 = vrot.slane %v2606, 1
          %v2623 = vrot.slane %v2607, 1
          %v2624 = vrot.slane %v2608, 1
          %v2625 = vrot.slane %v2609, 1
          %v2626 = vrot.slane %v2610, 1
          %v2627 = vrot.slane %v2611, 1
          %v2628 = vrot.slane %v2612, 1
          %v2629 = vrot.slane %v2613, 1
          %v2630 = vrot.slane %v2614, 1
          %v2631 = vrot.slane %v2615, 1
          %v2632 = vsel %vm332, %v2630, %v2631
          %v2633 = vsel %vm332, %v2629, %v2630
          %v2634 = vsel %vm332, %v2628, %v2629
          %v2635 = vsel %vm332, %v2627, %v2628
          %v2636 = vsel %vm332, %v2626, %v2627
          %v2637 = vsel %vm332, %v2625, %v2626
          %v2638 = vsel %vm332, %v2624, %v2625
          %v2639 = vsel %vm332, %v2623, %v2624
          %v2640 = vsel %vm332, %v2622, %v2623
          %v2641 = vsel %vm332, %v2621, %v2622
          %v2642 = vsel %vm332, %v2620, %v2621
          %v2643 = vsel %vm332, %v2619, %v2620
          %v2644 = vsel %vm332, %v2618, %v2619
          %v2645 = vsel %vm332, %v2617, %v2618
          %v2646 = vsel %vm332, %v2616, %v2617
          %v2647 = vsel %vm332, %v2631, %v2616
          %v2648 = vrot.slane %v2600, 2
          %v2649 = vrot.slane %v2601, 2
          %v2650 = vrot.slane %v2602, 2
          %v2651 = vrot.slane %v2603, 2
          %v2652 = vrot.slane %v2604, 2
          %v2653 = vrot.slane %v2605, 2
          %v2654 = vrot.slane %v2606, 2
          %v2655 = vrot.slane %v2607, 2
          %v2656 = vrot.slane %v2608, 2
          %v2657 = vrot.slane %v2609, 2
          %v2658 = vrot.slane %v2610, 2
          %v2659 = vrot.slane %v2611, 2
          %v2660 = vrot.slane %v2612, 2
          %v2661 = vrot.slane %v2613, 2
          %v2662 = vrot.slane %v2614, 2
          %v2663 = vrot.slane %v2615, 2
          %v2664 = vsel %vm365, %v2662, %v2663
          %v2665 = vsel %vm365, %v2661, %v2662
          %v2666 = vsel %vm365, %v2660, %v2661
          %v2667 = vsel %vm365, %v2659, %v2660
          %v2668 = vsel %vm365, %v2658, %v2659
          %v2669 = vsel %vm365, %v2657, %v2658
          %v2670 = vsel %vm365, %v2656, %v2657
          %v2671 = vsel %vm365, %v2655, %v2656
          %v2672 = vsel %vm365, %v2654, %v2655
          %v2673 = vsel %vm365, %v2653, %v2654
          %v2674 = vsel %vm365, %v2652, %v2653
          %v2675 = vsel %vm365, %v2651, %v2652
          %v2676 = vsel %vm365, %v2650, %v2651
          %v2677 = vsel %vm365, %v2649, %v2650
          %v2678 = vsel %vm365, %v2648, %v2649
          %v2679 = vsel %vm365, %v2663, %v2648
          %2696 = vrot.lane.b32.xlu0 %v2646, 3
          %v2697 = vpop.permute.xlu0 %2696
          %2698 = vrot.lane.b32.xlu0 %v2645, 3
          %v2699 = vpop.permute.xlu0 %2698
          %2700 = vrot.lane.b32.xlu0 %v2644, 3
          %v2701 = vpop.permute.xlu0 %2700
          %2702 = vrot.lane.b32.xlu0 %v2643, 3
          %v2703 = vpop.permute.xlu0 %2702
          %2704 = vrot.lane.b32.xlu0 %v2642, 3
          %v2705 = vpop.permute.xlu0 %2704
          %2706 = vrot.lane.b32.xlu0 %v2641, 3
          %v2707 = vpop.permute.xlu0 %2706
          %2708 = vrot.lane.b32.xlu0 %v2640, 3
          %v2709 = vpop.permute.xlu0 %2708
          %2710 = vrot.lane.b32.xlu0 %v2639, 3
          %v2711 = vpop.permute.xlu0 %2710
          %2712 = vrot.lane.b32.xlu0 %v2638, 3
          %v2713 = vpop.permute.xlu0 %2712
          %2714 = vrot.lane.b32.xlu0 %v2637, 3
          %v2715 = vpop.permute.xlu0 %2714
          %2716 = vrot.lane.b32.xlu0 %v2636, 3
          %v2717 = vpop.permute.xlu0 %2716
          %2718 = vrot.lane.b32.xlu0 %v2635, 3
          %v2719 = vpop.permute.xlu0 %2718
          %2720 = vrot.lane.b32.xlu0 %v2634, 3
          %v2721 = vpop.permute.xlu0 %2720
          %2722 = vrot.lane.b32.xlu0 %v2633, 3
          %v2723 = vpop.permute.xlu0 %2722
          %2724 = vrot.lane.b32.xlu0 %v2632, 3
          %v2725 = vpop.permute.xlu0 %2724
          %2726 = vrot.lane.b32.xlu0 %v2647, 3
          %v2727 = vpop.permute.xlu0 %2726
          %2760 = vrot.lane.b32.xlu0 %v2678, 6
          %v2761 = vpop.permute.xlu0 %2760
          %2762 = vrot.lane.b32.xlu0 %v2677, 6
          %v2763 = vpop.permute.xlu0 %2762
          %2764 = vrot.lane.b32.xlu0 %v2676, 6
          %v2765 = vpop.permute.xlu0 %2764
          %2766 = vrot.lane.b32.xlu0 %v2675, 6
          %v2767 = vpop.permute.xlu0 %2766
          %2768 = vrot.lane.b32.xlu0 %v2674, 6
          %v2769 = vpop.permute.xlu0 %2768
          %2770 = vrot.lane.b32.xlu0 %v2673, 6
          %v2771 = vpop.permute.xlu0 %2770
          %2772 = vrot.lane.b32.xlu0 %v2672, 6
          %v2773 = vpop.permute.xlu0 %2772
          %2774 = vrot.lane.b32.xlu0 %v2671, 6
          %v2775 = vpop.permute.xlu0 %2774
          %2776 = vrot.lane.b32.xlu0 %v2670, 6
          %v2777 = vpop.permute.xlu0 %2776
          %2778 = vrot.lane.b32.xlu0 %v2669, 6
          %v2779 = vpop.permute.xlu0 %2778
          %2780 = vrot.lane.b32.xlu0 %v2668, 6
          %v2781 = vpop.permute.xlu0 %2780
          %2782 = vrot.lane.b32.xlu0 %v2667, 6
          %v2783 = vpop.permute.xlu0 %2782
          %2784 = vrot.lane.b32.xlu0 %v2666, 6
          %v2785 = vpop.permute.xlu0 %2784
          %2786 = vrot.lane.b32.xlu0 %v2665, 6
          %v2787 = vpop.permute.xlu0 %2786
          %2788 = vrot.lane.b32.xlu0 %v2664, 6
          %v2789 = vpop.permute.xlu0 %2788
          %2790 = vrot.lane.b32.xlu0 %v2679, 6
          %v2791 = vpop.permute.xlu0 %2790
          %v2808 = vsel %vm510, %v2600, %v2697
          %v2809 = vsel %vm510, %v2601, %v2699
          %v2810 = vsel %vm510, %v2602, %v2701
          %v2811 = vsel %vm510, %v2603, %v2703
          %v2812 = vsel %vm510, %v2604, %v2705
          %v2813 = vsel %vm510, %v2605, %v2707
          %v2814 = vsel %vm510, %v2606, %v2709
          %v2815 = vsel %vm510, %v2607, %v2711
          %v2816 = vsel %vm510, %v2608, %v2713
          %v2817 = vsel %vm510, %v2609, %v2715
          %v2818 = vsel %vm510, %v2610, %v2717
          %v2819 = vsel %vm510, %v2611, %v2719
          %v2820 = vsel %vm510, %v2612, %v2721
          %v2821 = vsel %vm510, %v2613, %v2723
          %v2822 = vsel %vm510, %v2614, %v2725
          %v2823 = vsel %vm510, %v2615, %v2727
          %v2824 = vsel %vm527, %v2808, %v2761
          %v2825 = vsel %vm527, %v2809, %v2763
          %v2826 = vsel %vm527, %v2810, %v2765
          %v2827 = vsel %vm527, %v2811, %v2767
          %v2828 = vsel %vm527, %v2812, %v2769
          %v2829 = vsel %vm527, %v2813, %v2771
          %v2830 = vsel %vm527, %v2814, %v2773
          %v2831 = vsel %vm527, %v2815, %v2775
          %v2832 = vsel %vm527, %v2816, %v2777
          %v2833 = vsel %vm527, %v2817, %v2779
          %v2834 = vsel %vm527, %v2818, %v2781
          %v2835 = vsel %vm527, %v2819, %v2783
          %v2836 = vsel %vm527, %v2820, %v2785
          %v2837 = vsel %vm527, %v2821, %v2787
          %v2838 = vsel %vm527, %v2822, %v2789
          %v2839 = vsel %vm527, %v2823, %v2791
          %2856 = vrot.lane.b32.xlu0 %v2825, 9
          %v2857 = vpop.permute.xlu0 %2856
          %2858 = vrot.lane.b32.xlu0 %v2826, 9
          %v2859 = vpop.permute.xlu0 %2858
          %2860 = vrot.lane.b32.xlu0 %v2827, 9
          %v2861 = vpop.permute.xlu0 %2860
          %2862 = vrot.lane.b32.xlu0 %v2828, 9
          %v2863 = vpop.permute.xlu0 %2862
          %2864 = vrot.lane.b32.xlu0 %v2829, 9
          %v2865 = vpop.permute.xlu0 %2864
          %2866 = vrot.lane.b32.xlu0 %v2830, 9
          %v2867 = vpop.permute.xlu0 %2866
          %2868 = vrot.lane.b32.xlu0 %v2831, 9
          %v2869 = vpop.permute.xlu0 %2868
          %2870 = vrot.lane.b32.xlu0 %v2832, 9
          %v2871 = vpop.permute.xlu0 %2870
          %2872 = vrot.lane.b32.xlu0 %v2833, 9
          %v2873 = vpop.permute.xlu0 %2872
          %2874 = vrot.lane.b32.xlu0 %v2834, 9
          %v2875 = vpop.permute.xlu0 %2874
          %2876 = vrot.lane.b32.xlu0 %v2835, 9
          %v2877 = vpop.permute.xlu0 %2876
          %2878 = vrot.lane.b32.xlu0 %v2836, 9
          %v2879 = vpop.permute.xlu0 %2878
          %2880 = vrot.lane.b32.xlu0 %v2837, 9
          %v2881 = vpop.permute.xlu0 %2880
          %2882 = vrot.lane.b32.xlu0 %v2838, 9
          %v2883 = vpop.permute.xlu0 %2882
          %2884 = vrot.lane.b32.xlu0 %v2839, 9
          %v2885 = vpop.permute.xlu0 %2884
          %2886 = vrot.lane.b32.xlu0 %v2824, 9
          %v2887 = vpop.permute.xlu0 %2886
          %2904 = vrot.lane.b32.xlu0 %v2826, 18
          %v2905 = vpop.permute.xlu0 %2904
          %2906 = vrot.lane.b32.xlu0 %v2827, 18
          %v2907 = vpop.permute.xlu0 %2906
          %2908 = vrot.lane.b32.xlu0 %v2828, 18
          %v2909 = vpop.permute.xlu0 %2908
          %2910 = vrot.lane.b32.xlu0 %v2829, 18
          %v2911 = vpop.permute.xlu0 %2910
          %2912 = vrot.lane.b32.xlu0 %v2830, 18
          %v2913 = vpop.permute.xlu0 %2912
          %2914 = vrot.lane.b32.xlu0 %v2831, 18
          %v2915 = vpop.permute.xlu0 %2914
          %2916 = vrot.lane.b32.xlu0 %v2832, 18
          %v2917 = vpop.permute.xlu0 %2916
          %2918 = vrot.lane.b32.xlu0 %v2833, 18
          %v2919 = vpop.permute.xlu0 %2918
          %2920 = vrot.lane.b32.xlu0 %v2834, 18
          %v2921 = vpop.permute.xlu0 %2920
          %2922 = vrot.lane.b32.xlu0 %v2835, 18
          %v2923 = vpop.permute.xlu0 %2922
          %2924 = vrot.lane.b32.xlu0 %v2836, 18
          %v2925 = vpop.permute.xlu0 %2924
          %2926 = vrot.lane.b32.xlu0 %v2837, 18
          %v2927 = vpop.permute.xlu0 %2926
          %2928 = vrot.lane.b32.xlu0 %v2838, 18
          %v2929 = vpop.permute.xlu0 %2928
          %2930 = vrot.lane.b32.xlu0 %v2839, 18
          %v2931 = vpop.permute.xlu0 %2930
          %2932 = vrot.lane.b32.xlu0 %v2824, 18
          %v2933 = vpop.permute.xlu0 %2932
          %2934 = vrot.lane.b32.xlu0 %v2825, 18
          %v2935 = vpop.permute.xlu0 %2934
          %v2952 = vsel %vm656, %v2824, %v2857
          %v2953 = vsel %vm656, %v2825, %v2859
          %v2954 = vsel %vm656, %v2826, %v2861
          %v2955 = vsel %vm656, %v2827, %v2863
          %v2956 = vsel %vm656, %v2828, %v2865
          %v2957 = vsel %vm656, %v2829, %v2867
          %v2958 = vsel %vm656, %v2830, %v2869
          %v2959 = vsel %vm656, %v2831, %v2871
          %v2960 = vsel %vm656, %v2832, %v2873
          %v2961 = vsel %vm656, %v2833, %v2875
          %v2962 = vsel %vm656, %v2834, %v2877
          %v2963 = vsel %vm656, %v2835, %v2879
          %v2964 = vsel %vm656, %v2836, %v2881
          %v2965 = vsel %vm656, %v2837, %v2883
          %v2966 = vsel %vm656, %v2838, %v2885
          %v2967 = vsel %vm656, %v2839, %v2887
          %v2968 = vsel %vm673, %v2952, %v2905
          %v2969 = vsel %vm673, %v2953, %v2907
          %v2970 = vsel %vm673, %v2954, %v2909
          %v2971 = vsel %vm673, %v2955, %v2911
          %v2972 = vsel %vm673, %v2956, %v2913
          %v2973 = vsel %vm673, %v2957, %v2915
          %v2974 = vsel %vm673, %v2958, %v2917
          %v2975 = vsel %vm673, %v2959, %v2919
          %v2976 = vsel %vm673, %v2960, %v2921
          %v2977 = vsel %vm673, %v2961, %v2923
          %v2978 = vsel %vm673, %v2962, %v2925
          %v2979 = vsel %vm673, %v2963, %v2927
          %v2980 = vsel %vm673, %v2964, %v2929
          %v2981 = vsel %vm673, %v2965, %v2931
          %v2982 = vsel %vm673, %v2966, %v2933
          %v2983 = vsel %vm673, %v2967, %v2935
          %v2985 = vsel %vm691, %v2968, 0
          %v2988 = vsel %vm691, %v2969, 0
          %v2991 = vsel %vm691, %v2970, 0
          %v2994 = vsel %vm691, %v2971, 0
          %v2997 = vsel %vm691, %v2972, 0
          %v3000 = vsel %vm691, %v2973, 0
          %v3003 = vsel %vm691, %v2974, 0
          %v3006 = vsel %vm691, %v2975, 0
          %v3009 = vsel %vm691, %v2976, 0
          %v3012 = vsel %vm691, %v2977, 0
          %v3015 = vsel %vm691, %v2978, 0
          %v3018 = vsel %vm691, %v2979, 0
          %v3021 = vsel %vm691, %v2980, 0
          %v3024 = vsel %vm691, %v2981, 0
          %v3027 = vsel %vm691, %v2982, 0
          %v3030 = vsel %vm691, %v2983, 0
          %3032 = vmatpush.msra.mxu0 0.0
          %3033 = vmatpush.msra.mxu0 0.0
          %3034 = vmatpush.msra.mxu0 0.0
          %3035 = vmatpush.msra.mxu0 0.0
          %3036 = vmatpush.msra.mxu0 0.0
          %3037 = vmatpush.msra.mxu0 0.0
          %3038 = vmatpush.msra.mxu0 0.0
          %3039 = vmatpush.msra.mxu0 0.0
          %3040 = vmatpush.msra.mxu0 0.0
          %3041 = vmatpush.msra.mxu0 0.0
          %3042 = vmatpush.msra.mxu0 0.0
          %3043 = vmatpush.msra.mxu0 0.0
          %3044 = vmatpush.msra.mxu0 %v742
          %3045 = vmatpush.msra.mxu0 %v277
          %3046 = vmatpush.msra.mxu0 %v276
          %3047 = vmatpush.msra.mxu0 %v275
          %3048 = vmatmul.f32.gmra.mxu0 %v2985
          %v3049 = vpop.f32.mrf.mxu0
          %v3050 = vadd.f32 %v690, %v3049
          %3051 = vmatmul.f32.gmra.mxu0 %v2988
          %v3052 = vpop.f32.mrf.mxu0
          %v3053 = vadd.f32 %v690, %v3052
          %3054 = vmatmul.f32.gmra.mxu0 %v2991
          %v3055 = vpop.f32.mrf.mxu0
          %v3056 = vadd.f32 %v690, %v3055
          %3057 = vmatmul.f32.gmra.mxu0 %v2994
          %v3058 = vpop.f32.mrf.mxu0
          %v3059 = vadd.f32 %v690, %v3058
          %3060 = vmatmul.f32.gmra.mxu0 %v2997
          %v3061 = vpop.f32.mrf.mxu0
          %v3062 = vadd.f32 %v690, %v3061
          %3063 = vmatmul.f32.gmra.mxu0 %v3000
          %v3064 = vpop.f32.mrf.mxu0
          %v3065 = vadd.f32 %v690, %v3064
          %3066 = vmatmul.f32.gmra.mxu0 %v3003
          %v3067 = vpop.f32.mrf.mxu0
          %v3068 = vadd.f32 %v690, %v3067
          %3069 = vmatmul.f32.gmra.mxu0 %v3006
          %v3070 = vpop.f32.mrf.mxu0
          %v3071 = vadd.f32 %v690, %v3070
          %3072 = vmatmul.f32.gmra.mxu0 %v3009
          %v3073 = vpop.f32.mrf.mxu0
          %v3074 = vadd.f32 %v690, %v3073
          %3075 = vmatmul.f32.gmra.mxu0 %v3012
          %v3076 = vpop.f32.mrf.mxu0
          %v3077 = vadd.f32 %v690, %v3076
          %3078 = vmatmul.f32.gmra.mxu0 %v3015
          %v3079 = vpop.f32.mrf.mxu0
          %v3080 = vadd.f32 %v690, %v3079
          %3081 = vmatmul.f32.gmra.mxu0 %v3018
          %v3082 = vpop.f32.mrf.mxu0
          %v3083 = vadd.f32 %v690, %v3082
          %3084 = vmatmul.f32.gmra.mxu0 %v3021
          %v3085 = vpop.f32.mrf.mxu0
          %v3086 = vadd.f32 %v690, %v3085
          %3087 = vmatmul.f32.gmra.mxu0 %v3024
          %v3088 = vpop.f32.mrf.mxu0
          %v3089 = vadd.f32 %v690, %v3088
          %3090 = vmatmul.f32.gmra.mxu0 %v3027
          %v3091 = vpop.f32.mrf.mxu0
          %v3092 = vadd.f32 %v690, %v3091
          %3093 = vmatmul.f32.gmra.mxu0 %v3030
          %v3094 = vpop.f32.mrf.mxu0
          %v3095 = vadd.f32 %v690, %v3094
          %3096 = vdwg.mxu0
          %v3097 = vmax.f32 %v3050, 0.0
          %v3098 = vmax.f32 %v3053, 0.0
          %v3099 = vmax.f32 %v3056, 0.0
          %v3100 = vmax.f32 %v3059, 0.0
          %v3101 = vmax.f32 %v3062, 0.0
          %v3102 = vmax.f32 %v3065, 0.0
          %v3103 = vmax.f32 %v3068, 0.0
          %v3104 = vmax.f32 %v3071, 0.0
          %v3105 = vmax.f32 %v3074, 0.0
          %v3106 = vmax.f32 %v3077, 0.0
          %v3107 = vmax.f32 %v3080, 0.0
          %v3108 = vmax.f32 %v3083, 0.0
          %v3109 = vmax.f32 %v3086, 0.0
          %v3110 = vmax.f32 %v3089, 0.0
          %v3111 = vmax.f32 %v3092, 0.0
          %v3112 = vmax.f32 %v3095, 0.0
          %v3113 = vrot.slane %v3097, 1
          %v3114 = vrot.slane %v3098, 1
          %v3115 = vrot.slane %v3099, 1
          %v3116 = vrot.slane %v3100, 1
          %v3117 = vrot.slane %v3101, 1
          %v3118 = vrot.slane %v3102, 1
          %v3119 = vrot.slane %v3103, 1
          %v3120 = vrot.slane %v3104, 1
          %v3121 = vrot.slane %v3105, 1
          %v3122 = vrot.slane %v3106, 1
          %v3123 = vrot.slane %v3107, 1
          %v3124 = vrot.slane %v3108, 1
          %v3125 = vrot.slane %v3109, 1
          %v3126 = vrot.slane %v3110, 1
          %v3127 = vrot.slane %v3111, 1
          %v3128 = vrot.slane %v3112, 1
          %v3129 = vsel %vm332, %v3127, %v3128
          %v3130 = vsel %vm332, %v3126, %v3127
          %v3131 = vsel %vm332, %v3125, %v3126
          %v3132 = vsel %vm332, %v3124, %v3125
          %v3133 = vsel %vm332, %v3123, %v3124
          %v3134 = vsel %vm332, %v3122, %v3123
          %v3135 = vsel %vm332, %v3121, %v3122
          %v3136 = vsel %vm332, %v3120, %v3121
          %v3137 = vsel %vm332, %v3119, %v3120
          %v3138 = vsel %vm332, %v3118, %v3119
          %v3139 = vsel %vm332, %v3117, %v3118
          %v3140 = vsel %vm332, %v3116, %v3117
          %v3141 = vsel %vm332, %v3115, %v3116
          %v3142 = vsel %vm332, %v3114, %v3115
          %v3143 = vsel %vm332, %v3113, %v3114
          %v3144 = vsel %vm332, %v3128, %v3113
          %v3145 = vmax.f32 %v3097, %v3143
          %v3146 = vmax.f32 %v3098, %v3142
          %v3147 = vmax.f32 %v3099, %v3141
          %v3148 = vmax.f32 %v3100, %v3140
          %v3149 = vmax.f32 %v3101, %v3139
          %v3150 = vmax.f32 %v3102, %v3138
          %v3151 = vmax.f32 %v3103, %v3137
          %v3152 = vmax.f32 %v3104, %v3136
          %v3153 = vmax.f32 %v3105, %v3135
          %v3154 = vmax.f32 %v3106, %v3134
          %v3155 = vmax.f32 %v3107, %v3133
          %v3156 = vmax.f32 %v3108, %v3132
          %v3157 = vmax.f32 %v3109, %v3131
          %v3158 = vmax.f32 %v3110, %v3130
          %v3159 = vmax.f32 %v3111, %v3129
          %v3160 = vmax.f32 %v3112, %v3144
          %v3161 = vmax.f32 %v3145, %v3146
          %v3162 = vmax.f32 %v3146, %v3147
          %v3163 = vmax.f32 %v3147, %v3148
          %v3164 = vmax.f32 %v3148, %v3149
          %v3165 = vmax.f32 %v3149, %v3150
          %v3166 = vmax.f32 %v3150, %v3151
          %v3167 = vmax.f32 %v3151, %v3152
          %v3168 = vmax.f32 %v3152, %v3153
          %v3169 = vmax.f32 %v3153, %v3154
          %v3170 = vmax.f32 %v3154, %v3155
          %v3171 = vmax.f32 %v3155, %v3156
          %v3172 = vmax.f32 %v3156, %v3157
          %v3173 = vmax.f32 %v3157, %v3158
          %v3174 = vmax.f32 %v3158, %v3159
          %v3175 = vmax.f32 %v3159, %v3160
          %v3176 = vmax.f32 %v3160, %v3145
          %v3177 = vrot.slane %v3161, 1
          %v3178 = vrot.slane %v3162, 1
          %v3179 = vrot.slane %v3163, 1
          %v3180 = vrot.slane %v3164, 1
          %v3181 = vrot.slane %v3165, 1
          %v3182 = vrot.slane %v3166, 1
          %v3183 = vrot.slane %v3167, 1
          %v3184 = vrot.slane %v3168, 1
          %v3185 = vrot.slane %v3169, 1
          %v3186 = vrot.slane %v3170, 1
          %v3187 = vrot.slane %v3171, 1
          %v3188 = vrot.slane %v3172, 1
          %v3189 = vrot.slane %v3173, 1
          %v3190 = vrot.slane %v3174, 1
          %v3191 = vrot.slane %v3175, 1
          %v3192 = vrot.slane %v3176, 1
          %v3193 = vsel %vm332, %v3191, %v3192
          %v3194 = vsel %vm332, %v3190, %v3191
          %v3195 = vsel %vm332, %v3189, %v3190
          %v3196 = vsel %vm332, %v3188, %v3189
          %v3197 = vsel %vm332, %v3187, %v3188
          %v3198 = vsel %vm332, %v3186, %v3187
          %v3199 = vsel %vm332, %v3185, %v3186
          %v3200 = vsel %vm332, %v3184, %v3185
          %v3201 = vsel %vm332, %v3183, %v3184
          %v3202 = vsel %vm332, %v3182, %v3183
          %v3203 = vsel %vm332, %v3181, %v3182
          %v3204 = vsel %vm332, %v3180, %v3181
          %v3205 = vsel %vm332, %v3179, %v3180
          %v3206 = vsel %vm332, %v3178, %v3179
          %v3207 = vsel %vm332, %v3177, %v3178
          %v3208 = vsel %vm332, %v3192, %v3177
          %v3209 = vrot.slane %v3161, 2
          %v3210 = vrot.slane %v3162, 2
          %v3211 = vrot.slane %v3163, 2
          %v3212 = vrot.slane %v3164, 2
          %v3213 = vrot.slane %v3165, 2
          %v3214 = vrot.slane %v3166, 2
          %v3215 = vrot.slane %v3167, 2
          %v3216 = vrot.slane %v3168, 2
          %v3217 = vrot.slane %v3169, 2
          %v3218 = vrot.slane %v3170, 2
          %v3219 = vrot.slane %v3171, 2
          %v3220 = vrot.slane %v3172, 2
          %v3221 = vrot.slane %v3173, 2
          %v3222 = vrot.slane %v3174, 2
          %v3223 = vrot.slane %v3175, 2
          %v3224 = vrot.slane %v3176, 2
          %v3225 = vsel %vm365, %v3223, %v3224
          %v3226 = vsel %vm365, %v3222, %v3223
          %v3227 = vsel %vm365, %v3221, %v3222
          %v3228 = vsel %vm365, %v3220, %v3221
          %v3229 = vsel %vm365, %v3219, %v3220
          %v3230 = vsel %vm365, %v3218, %v3219
          %v3231 = vsel %vm365, %v3217, %v3218
          %v3232 = vsel %vm365, %v3216, %v3217
          %v3233 = vsel %vm365, %v3215, %v3216
          %v3234 = vsel %vm365, %v3214, %v3215
          %v3235 = vsel %vm365, %v3213, %v3214
          %v3236 = vsel %vm365, %v3212, %v3213
          %v3237 = vsel %vm365, %v3211, %v3212
          %v3238 = vsel %vm365, %v3210, %v3211
          %v3239 = vsel %vm365, %v3209, %v3210
          %v3240 = vsel %vm365, %v3224, %v3209
          %3257 = vrot.lane.b32.xlu0 %v3207, 8
          %v3258 = vpop.permute.xlu0 %3257
          %3259 = vrot.lane.b32.xlu0 %v3206, 8
          %v3260 = vpop.permute.xlu0 %3259
          %3261 = vrot.lane.b32.xlu0 %v3205, 8
          %v3262 = vpop.permute.xlu0 %3261
          %3263 = vrot.lane.b32.xlu0 %v3204, 8
          %v3264 = vpop.permute.xlu0 %3263
          %3265 = vrot.lane.b32.xlu0 %v3203, 8
          %v3266 = vpop.permute.xlu0 %3265
          %3267 = vrot.lane.b32.xlu0 %v3202, 8
          %v3268 = vpop.permute.xlu0 %3267
          %3269 = vrot.lane.b32.xlu0 %v3201, 8
          %v3270 = vpop.permute.xlu0 %3269
          %3271 = vrot.lane.b32.xlu0 %v3200, 8
          %v3272 = vpop.permute.xlu0 %3271
          %3273 = vrot.lane.b32.xlu0 %v3199, 8
          %v3274 = vpop.permute.xlu0 %3273
          %3275 = vrot.lane.b32.xlu0 %v3198, 8
          %v3276 = vpop.permute.xlu0 %3275
          %3277 = vrot.lane.b32.xlu0 %v3197, 8
          %v3278 = vpop.permute.xlu0 %3277
          %3279 = vrot.lane.b32.xlu0 %v3196, 8
          %v3280 = vpop.permute.xlu0 %3279
          %3281 = vrot.lane.b32.xlu0 %v3195, 8
          %v3282 = vpop.permute.xlu0 %3281
          %3283 = vrot.lane.b32.xlu0 %v3194, 8
          %v3284 = vpop.permute.xlu0 %3283
          %3285 = vrot.lane.b32.xlu0 %v3193, 8
          %v3286 = vpop.permute.xlu0 %3285
          %3287 = vrot.lane.b32.xlu0 %v3208, 8
          %v3288 = vpop.permute.xlu0 %3287
          %3321 = vrot.lane.b32.xlu0 %v3239, 16
          %v3322 = vpop.permute.xlu0 %3321
          %3323 = vrot.lane.b32.xlu0 %v3238, 16
          %v3324 = vpop.permute.xlu0 %3323
          %3325 = vrot.lane.b32.xlu0 %v3237, 16
          %v3326 = vpop.permute.xlu0 %3325
          %3327 = vrot.lane.b32.xlu0 %v3236, 16
          %v3328 = vpop.permute.xlu0 %3327
          %3329 = vrot.lane.b32.xlu0 %v3235, 16
          %v3330 = vpop.permute.xlu0 %3329
          %3331 = vrot.lane.b32.xlu0 %v3234, 16
          %v3332 = vpop.permute.xlu0 %3331
          %3333 = vrot.lane.b32.xlu0 %v3233, 16
          %v3334 = vpop.permute.xlu0 %3333
          %3335 = vrot.lane.b32.xlu0 %v3232, 16
          %v3336 = vpop.permute.xlu0 %3335
          %3337 = vrot.lane.b32.xlu0 %v3231, 16
          %v3338 = vpop.permute.xlu0 %3337
          %3339 = vrot.lane.b32.xlu0 %v3230, 16
          %v3340 = vpop.permute.xlu0 %3339
          %3341 = vrot.lane.b32.xlu0 %v3229, 16
          %v3342 = vpop.permute.xlu0 %3341
          %3343 = vrot.lane.b32.xlu0 %v3228, 16
          %v3344 = vpop.permute.xlu0 %3343
          %3345 = vrot.lane.b32.xlu0 %v3227, 16
          %v3346 = vpop.permute.xlu0 %3345
          %3347 = vrot.lane.b32.xlu0 %v3226, 16
          %v3348 = vpop.permute.xlu0 %3347
          %3349 = vrot.lane.b32.xlu0 %v3225, 16
          %v3350 = vpop.permute.xlu0 %3349
          %3351 = vrot.lane.b32.xlu0 %v3240, 16
          %v3352 = vpop.permute.xlu0 %3351
          %v3369 = vsel %vm1081, %v3161, %v3258
          %v3370 = vsel %vm1081, %v3162, %v3260
          %v3371 = vsel %vm1081, %v3163, %v3262
          %v3372 = vsel %vm1081, %v3164, %v3264
          %v3373 = vsel %vm1081, %v3165, %v3266
          %v3374 = vsel %vm1081, %v3166, %v3268
          %v3375 = vsel %vm1081, %v3167, %v3270
          %v3376 = vsel %vm1081, %v3168, %v3272
          %v3377 = vsel %vm1081, %v3169, %v3274
          %v3378 = vsel %vm1081, %v3170, %v3276
          %v3379 = vsel %vm1081, %v3171, %v3278
          %v3380 = vsel %vm1081, %v3172, %v3280
          %v3381 = vsel %vm1081, %v3173, %v3282
          %v3382 = vsel %vm1081, %v3174, %v3284
          %v3383 = vsel %vm1081, %v3175, %v3286
          %v3384 = vsel %vm1081, %v3176, %v3288
          %v3385 = vsel %vm1098, %v3369, %v3322
          %v3386 = vsel %vm1098, %v3370, %v3324
          %v3387 = vsel %vm1098, %v3371, %v3326
          %v3388 = vsel %vm1098, %v3372, %v3328
          %v3389 = vsel %vm1098, %v3373, %v3330
          %v3390 = vsel %vm1098, %v3374, %v3332
          %v3391 = vsel %vm1098, %v3375, %v3334
          %v3392 = vsel %vm1098, %v3376, %v3336
          %v3393 = vsel %vm1098, %v3377, %v3338
          %v3394 = vsel %vm1098, %v3378, %v3340
          %v3395 = vsel %vm1098, %v3379, %v3342
          %v3396 = vsel %vm1098, %v3380, %v3344
          %v3397 = vsel %vm1098, %v3381, %v3346
          %v3398 = vsel %vm1098, %v3382, %v3348
          %v3399 = vsel %vm1098, %v3383, %v3350
          %v3400 = vsel %vm1098, %v3384, %v3352
          %3417 = vrot.lane.b32.xlu0 %v3386, 24
          %v3418 = vpop.permute.xlu0 %3417
          %3419 = vrot.lane.b32.xlu0 %v3387, 24
          %v3420 = vpop.permute.xlu0 %3419
          %3421 = vrot.lane.b32.xlu0 %v3388, 24
          %v3422 = vpop.permute.xlu0 %3421
          %3423 = vrot.lane.b32.xlu0 %v3389, 24
          %v3424 = vpop.permute.xlu0 %3423
          %3425 = vrot.lane.b32.xlu0 %v3390, 24
          %v3426 = vpop.permute.xlu0 %3425
          %3427 = vrot.lane.b32.xlu0 %v3391, 24
          %v3428 = vpop.permute.xlu0 %3427
          %3429 = vrot.lane.b32.xlu0 %v3392, 24
          %v3430 = vpop.permute.xlu0 %3429
          %3431 = vrot.lane.b32.xlu0 %v3393, 24
          %v3432 = vpop.permute.xlu0 %3431
          %3433 = vrot.lane.b32.xlu0 %v3394, 24
          %v3434 = vpop.permute.xlu0 %3433
          %3435 = vrot.lane.b32.xlu0 %v3395, 24
          %v3436 = vpop.permute.xlu0 %3435
          %3437 = vrot.lane.b32.xlu0 %v3396, 24
          %v3438 = vpop.permute.xlu0 %3437
          %3439 = vrot.lane.b32.xlu0 %v3397, 24
          %v3440 = vpop.permute.xlu0 %3439
          %3441 = vrot.lane.b32.xlu0 %v3398, 24
          %v3442 = vpop.permute.xlu0 %3441
          %3443 = vrot.lane.b32.xlu0 %v3399, 24
          %v3444 = vpop.permute.xlu0 %3443
          %3445 = vrot.lane.b32.xlu0 %v3400, 24
          %v3446 = vpop.permute.xlu0 %3445
          %3447 = vrot.lane.b32.xlu0 %v3385, 24
          %v3448 = vpop.permute.xlu0 %3447
          %3465 = vrot.lane.b32.xlu0 %v3387, 48
          %v3466 = vpop.permute.xlu0 %3465
          %3467 = vrot.lane.b32.xlu0 %v3388, 48
          %v3468 = vpop.permute.xlu0 %3467
          %3469 = vrot.lane.b32.xlu0 %v3389, 48
          %v3470 = vpop.permute.xlu0 %3469
          %3471 = vrot.lane.b32.xlu0 %v3390, 48
          %v3472 = vpop.permute.xlu0 %3471
          %3473 = vrot.lane.b32.xlu0 %v3391, 48
          %v3474 = vpop.permute.xlu0 %3473
          %3475 = vrot.lane.b32.xlu0 %v3392, 48
          %v3476 = vpop.permute.xlu0 %3475
          %3477 = vrot.lane.b32.xlu0 %v3393, 48
          %v3478 = vpop.permute.xlu0 %3477
          %3479 = vrot.lane.b32.xlu0 %v3394, 48
          %v3480 = vpop.permute.xlu0 %3479
          %3481 = vrot.lane.b32.xlu0 %v3395, 48
          %v3482 = vpop.permute.xlu0 %3481
          %3483 = vrot.lane.b32.xlu0 %v3396, 48
          %v3484 = vpop.permute.xlu0 %3483
          %3485 = vrot.lane.b32.xlu0 %v3397, 48
          %v3486 = vpop.permute.xlu0 %3485
          %3487 = vrot.lane.b32.xlu0 %v3398, 48
          %v3488 = vpop.permute.xlu0 %3487
          %3489 = vrot.lane.b32.xlu0 %v3399, 48
          %v3490 = vpop.permute.xlu0 %3489
          %3491 = vrot.lane.b32.xlu0 %v3400, 48
          %v3492 = vpop.permute.xlu0 %3491
          %3493 = vrot.lane.b32.xlu0 %v3385, 48
          %v3494 = vpop.permute.xlu0 %3493
          %3495 = vrot.lane.b32.xlu0 %v3386, 48
          %v3496 = vpop.permute.xlu0 %3495
          %v3513 = vsel %vm1227, %v3385, %v3418
          %v3514 = vsel %vm1227, %v3386, %v3420
          %v3515 = vsel %vm1227, %v3387, %v3422
          %v3516 = vsel %vm1227, %v3388, %v3424
          %v3517 = vsel %vm1227, %v3389, %v3426
          %v3518 = vsel %vm1227, %v3390, %v3428
          %v3519 = vsel %vm1227, %v3391, %v3430
          %v3520 = vsel %vm1227, %v3392, %v3432
          %v3521 = vsel %vm1227, %v3393, %v3434
          %v3522 = vsel %vm1227, %v3394, %v3436
          %v3523 = vsel %vm1227, %v3395, %v3438
          %v3524 = vsel %vm1227, %v3396, %v3440
          %v3525 = vsel %vm1227, %v3397, %v3442
          %v3526 = vsel %vm1227, %v3398, %v3444
          %v3527 = vsel %vm1227, %v3399, %v3446
          %v3528 = vsel %vm1227, %v3400, %v3448
          %v3529 = vsel %vm1244, %v3513, %v3466
          %v3530 = vsel %vm1244, %v3514, %v3468
          %v3531 = vsel %vm1244, %v3515, %v3470
          %v3532 = vsel %vm1244, %v3516, %v3472
          %v3533 = vsel %vm1244, %v3517, %v3474
          %v3534 = vsel %vm1244, %v3518, %v3476
          %v3535 = vsel %vm1244, %v3519, %v3478
          %v3536 = vsel %vm1244, %v3520, %v3480
          %v3537 = vsel %vm1244, %v3521, %v3482
          %v3538 = vsel %vm1244, %v3522, %v3484
          %v3539 = vsel %vm1244, %v3523, %v3486
          %v3540 = vsel %vm1244, %v3524, %v3488
          %v3541 = vsel %vm1244, %v3525, %v3490
          %v3542 = vsel %vm1244, %v3526, %v3492
          %v3543 = vsel %vm1244, %v3527, %v3494
          %v3544 = vsel %vm1244, %v3528, %v3496
          %v3546 = vsel %vm1262, %v3529, 0
          %v3549 = vsel %vm1262, %v3530, 0
          %v3552 = vsel %vm1262, %v3531, 0
          %v3555 = vsel %vm1262, %v3532, 0
          %v3558 = vsel %vm1262, %v3533, 0
          %v3561 = vsel %vm1262, %v3534, 0
          %v3564 = vsel %vm1262, %v3535, 0
          %v3567 = vsel %vm1262, %v3536, 0
          %v3570 = vsel %vm1262, %v3537, 0
          %v3573 = vsel %vm1262, %v3538, 0
          %v3576 = vsel %vm1262, %v3539, 0
          %v3579 = vsel %vm1262, %v3540, 0
          %v3582 = vsel %vm1262, %v3541, 0
          %v3585 = vsel %vm1262, %v3542, 0
          %v3588 = vsel %vm1262, %v3543, 0
          %v3591 = vsel %vm1262, %v3544, 0
          %3593 = vmatpush.msra.mxu0 0.0
          %3594 = vmatpush.msra.mxu0 0.0
          %3595 = vmatpush.msra.mxu0 0.0
          %3596 = vmatpush.msra.mxu0 0.0
          %3597 = vmatpush.msra.mxu0 0.0
          %3598 = vmatpush.msra.mxu0 0.0
          %3599 = vmatpush.msra.mxu0 0.0
          %3600 = vmatpush.msra.mxu0 %v287
          %3601 = vmatpush.msra.mxu0 %v286
          %3602 = vmatpush.msra.mxu0 %v285
          %3603 = vmatpush.msra.mxu0 %v284
          %3604 = vmatpush.msra.mxu0 %v283
          %3605 = vmatpush.msra.mxu0 %v282
          %3606 = vmatpush.msra.mxu0 %v281
          %3607 = vmatpush.msra.mxu0 %v280
          %3608 = vmatpush.msra.mxu0 %v279
          %3609 = vmatmul.f32.gmra.mxu0 %v3546
          %v3610 = vpop.f32.mrf.mxu0
          %v3611 = vadd.f32 %v1261, %v3610
          %3612 = vmatmul.f32.gmra.mxu0 %v3549
          %v3613 = vpop.f32.mrf.mxu0
          %v3614 = vadd.f32 %v1261, %v3613
          %3615 = vmatmul.f32.gmra.mxu0 %v3552
          %v3616 = vpop.f32.mrf.mxu0
          %v3617 = vadd.f32 %v1261, %v3616
          %3618 = vmatmul.f32.gmra.mxu0 %v3555
          %v3619 = vpop.f32.mrf.mxu0
          %v3620 = vadd.f32 %v1261, %v3619
          %3621 = vmatmul.f32.gmra.mxu0 %v3558
          %v3622 = vpop.f32.mrf.mxu0
          %v3623 = vadd.f32 %v1261, %v3622
          %3624 = vmatmul.f32.gmra.mxu0 %v3561
          %v3625 = vpop.f32.mrf.mxu0
          %3626 = vmatmul.f32.gmra.mxu0 %v3564
          %v3627 = vpop.f32.mrf.mxu0
          %3628 = vmatmul.f32.gmra.mxu0 %v3567
          %v3629 = vpop.f32.mrf.mxu0
          %3630 = vmatmul.f32.gmra.mxu0 %v3570
          %v3631 = vpop.f32.mrf.mxu0
          %v3632 = vadd.f32 %v1261, %v3631
          %3633 = vmatmul.f32.gmra.mxu0 %v3573
          %v3634 = vpop.f32.mrf.mxu0
          %v3635 = vadd.f32 %v1261, %v3634
          %3636 = vmatmul.f32.gmra.mxu0 %v3576
          %v3637 = vpop.f32.mrf.mxu0
          %v3638 = vadd.f32 %v1261, %v3637
          %3639 = vmatmul.f32.gmra.mxu0 %v3579
          %v3640 = vpop.f32.mrf.mxu0
          %v3641 = vadd.f32 %v1261, %v3640
          %3642 = vmatmul.f32.gmra.mxu0 %v3582
          %v3643 = vpop.f32.mrf.mxu0
          %v3644 = vadd.f32 %v1261, %v3643
          %3645 = vmatmul.f32.gmra.mxu0 %v3585
          %v3646 = vpop.f32.mrf.mxu0
          %3647 = vmatmul.f32.gmra.mxu0 %v3588
          %v3648 = vpop.f32.mrf.mxu0
          %3649 = vmatmul.f32.gmra.mxu0 %v3591
          %v3650 = vpop.f32.mrf.mxu0
          %3651 = vdwg.mxu0
          %v3652 = vmax.f32 %v3611, 0.0
          %v3653 = vmax.f32 %v3614, 0.0
          %v3654 = vmax.f32 %v3617, 0.0
          %v3655 = vmax.f32 %v3620, 0.0
          %v3656 = vmax.f32 %v3623, 0.0
          %v3657 = vmax.f32 %v3632, 0.0
          %v3658 = vmax.f32 %v3635, 0.0
          %v3659 = vmax.f32 %v3638, 0.0
          %v3660 = vmax.f32 %v3641, 0.0
          %v3661 = vmax.f32 %v3644, 0.0
          %v3662 = vrot.slane %v3652, 1
          %v3663 = vrot.slane %v3653, 1
          %v3664 = vrot.slane %v3654, 1
          %v3665 = vrot.slane %v3655, 1
          %v3666 = vrot.slane %v3656, 1
          %v3667 = vrot.slane %v3657, 1
          %v3668 = vrot.slane %v3658, 1
          %v3669 = vrot.slane %v3659, 1
          %v3670 = vrot.slane %v3660, 1
          %v3671 = vrot.slane %v3661, 1
          %v3672 = vsel %vm332, %v3670, %v3671
          %v3673 = vsel %vm332, %v3669, %v3670
          %v3674 = vsel %vm332, %v3668, %v3669
          %v3675 = vsel %vm332, %v3667, %v3668
          %v3676 = vsel %vm332, %v3665, %v3666
          %v3677 = vsel %vm332, %v3664, %v3665
          %v3678 = vsel %vm332, %v3663, %v3664
          %v3679 = vsel %vm332, %v3662, %v3663
          %v3680 = vmax.f32 %v3652, %v3679
          %v3681 = vmax.f32 %v3653, %v3678
          %v3682 = vmax.f32 %v3654, %v3677
          %v3683 = vmax.f32 %v3655, %v3676
          %v3684 = vmax.f32 %v3657, %v3675
          %v3685 = vmax.f32 %v3658, %v3674
          %v3686 = vmax.f32 %v3659, %v3673
          %v3687 = vmax.f32 %v3660, %v3672
          %v3688 = vmax.f32 %v3680, %v3681
          %v3689 = vmax.f32 %v3681, %v3682
          %v3690 = vmax.f32 %v3682, %v3683
          %v3691 = vmax.f32 %v3684, %v3685
          %v3692 = vmax.f32 %v3685, %v3686
          %v3693 = vmax.f32 %v3686, %v3687
          %v3694 = vrot.slane %v3688, 1
          %v3695 = vrot.slane %v3689, 1
          %v3696 = vrot.slane %v3690, 1
          %v3697 = vrot.slane %v3691, 1
          %v3698 = vrot.slane %v3692, 1
          %v3699 = vrot.slane %v3693, 1
          %v3700 = vsel %vm332, %v3698, %v3699
          %v3701 = vsel %vm332, %v3697, %v3698
          %v3702 = vsel %vm332, %v3695, %v3696
          %v3703 = vsel %vm332, %v3694, %v3695
          %3708 = vrot.lane.b32.xlu0 %v3703, 16
          %v3709 = vpop.permute.xlu0 %3708
          %3710 = vrot.lane.b32.xlu0 %v3702, 16
          %v3711 = vpop.permute.xlu0 %3710
          %3712 = vrot.lane.b32.xlu0 %v3701, 16
          %v3713 = vpop.permute.xlu0 %3712
          %3714 = vrot.lane.b32.xlu0 %v3700, 16
          %v3715 = vpop.permute.xlu0 %3714
          %v3720 = vsel %vm1098, %v3688, %v3709
          %v3721 = vsel %vm1098, %v3689, %v3711
          %v3722 = vsel %vm1098, %v3691, %v3713
          %v3723 = vsel %vm1098, %v3692, %v3715
          %3726 = vrot.lane.b32.xlu0 %v3721, 32
          %v3727 = vpop.permute.xlu0 %3726
          %3728 = vrot.lane.b32.xlu0 %v3723, 32
          %v3729 = vpop.permute.xlu0 %3728
          %v3732 = vsel %vm1450, %v3720, %v3727
          %v3733 = vsel %vm1450, %v3722, %v3729
          %v3735 = vrot.slane %v3733, 7
          %v3737 = vsel %vm1456, %v3732, %v3735
          %s3738 = sadd.s32 %s296, 384
          %s3739 = scalar_lea.vmem %s266, %s3738
          %v3740 = vld [vmem:[%s3739] sm:$0xff]
          %v3741 = vld [vmem:[%s3739 + $0x8] sm:$0xff]
          %v3742 = vld [vmem:[%s3739 + $0x10] sm:$0xff]
          %v3743 = vld [vmem:[%s3739 + $0x18] sm:$0xff]
          %v3744 = vld [vmem:[%s3739 + $0x20] sm:$0xff]
          %v3745 = vld [vmem:[%s3739 + $0x28] sm:$0xff]
          %v3746 = vld [vmem:[%s3739 + $0x30] sm:$0xff]
          %v3747 = vld [vmem:[%s3739 + $0x38] sm:$0xff]
          %v3748 = vld [vmem:[%s3739 + $0x40] sm:$0xff]
          %v3749 = vld [vmem:[%s3739 + $0x48] sm:$0xff]
          %v3750 = vld [vmem:[%s3739 + $0x50] sm:$0xff]
          %v3751 = vld [vmem:[%s3739 + $0x58] sm:$0xff]
          %v3752 = vld [vmem:[%s3739 + $0x60] sm:$0xff]
          %v3753 = vld [vmem:[%s3739 + $0x68] sm:$0xff]
          %v3754 = vld [vmem:[%s3739 + $0x70] sm:$0xff]
          %v3755 = vld [vmem:[%s3739 + $0x78] sm:$0xff]
          %v3756 = vrot.slane %v3740, 1
          %v3757 = vrot.slane %v3741, 1
          %v3758 = vrot.slane %v3742, 1
          %v3759 = vrot.slane %v3743, 1
          %v3760 = vrot.slane %v3744, 1
          %v3761 = vrot.slane %v3745, 1
          %v3762 = vrot.slane %v3746, 1
          %v3763 = vrot.slane %v3747, 1
          %v3764 = vrot.slane %v3748, 1
          %v3765 = vrot.slane %v3749, 1
          %v3766 = vrot.slane %v3750, 1
          %v3767 = vrot.slane %v3751, 1
          %v3768 = vrot.slane %v3752, 1
          %v3769 = vrot.slane %v3753, 1
          %v3770 = vrot.slane %v3754, 1
          %v3771 = vrot.slane %v3755, 1
          %v3772 = vsel %vm332, %v3770, %v3771
          %v3773 = vsel %vm332, %v3769, %v3770
          %v3774 = vsel %vm332, %v3768, %v3769
          %v3775 = vsel %vm332, %v3767, %v3768
          %v3776 = vsel %vm332, %v3766, %v3767
          %v3777 = vsel %vm332, %v3765, %v3766
          %v3778 = vsel %vm332, %v3764, %v3765
          %v3779 = vsel %vm332, %v3763, %v3764
          %v3780 = vsel %vm332, %v3762, %v3763
          %v3781 = vsel %vm332, %v3761, %v3762
          %v3782 = vsel %vm332, %v3760, %v3761
          %v3783 = vsel %vm332, %v3759, %v3760
          %v3784 = vsel %vm332, %v3758, %v3759
          %v3785 = vsel %vm332, %v3757, %v3758
          %v3786 = vsel %vm332, %v3756, %v3757
          %v3787 = vsel %vm332, %v3771, %v3756
          %v3788 = vrot.slane %v3740, 2
          %v3789 = vrot.slane %v3741, 2
          %v3790 = vrot.slane %v3742, 2
          %v3791 = vrot.slane %v3743, 2
          %v3792 = vrot.slane %v3744, 2
          %v3793 = vrot.slane %v3745, 2
          %v3794 = vrot.slane %v3746, 2
          %v3795 = vrot.slane %v3747, 2
          %v3796 = vrot.slane %v3748, 2
          %v3797 = vrot.slane %v3749, 2
          %v3798 = vrot.slane %v3750, 2
          %v3799 = vrot.slane %v3751, 2
          %v3800 = vrot.slane %v3752, 2
          %v3801 = vrot.slane %v3753, 2
          %v3802 = vrot.slane %v3754, 2
          %v3803 = vrot.slane %v3755, 2
          %v3804 = vsel %vm365, %v3802, %v3803
          %v3805 = vsel %vm365, %v3801, %v3802
          %v3806 = vsel %vm365, %v3800, %v3801
          %v3807 = vsel %vm365, %v3799, %v3800
          %v3808 = vsel %vm365, %v3798, %v3799
          %v3809 = vsel %vm365, %v3797, %v3798
          %v3810 = vsel %vm365, %v3796, %v3797
          %v3811 = vsel %vm365, %v3795, %v3796
          %v3812 = vsel %vm365, %v3794, %v3795
          %v3813 = vsel %vm365, %v3793, %v3794
          %v3814 = vsel %vm365, %v3792, %v3793
          %v3815 = vsel %vm365, %v3791, %v3792
          %v3816 = vsel %vm365, %v3790, %v3791
          %v3817 = vsel %vm365, %v3789, %v3790
          %v3818 = vsel %vm365, %v3788, %v3789
          %v3819 = vsel %vm365, %v3803, %v3788
          %3836 = vrot.lane.b32.xlu0 %v3786, 3
          %v3837 = vpop.permute.xlu0 %3836
          %3838 = vrot.lane.b32.xlu0 %v3785, 3
          %v3839 = vpop.permute.xlu0 %3838
          %3840 = vrot.lane.b32.xlu0 %v3784, 3
          %v3841 = vpop.permute.xlu0 %3840
          %3842 = vrot.lane.b32.xlu0 %v3783, 3
          %v3843 = vpop.permute.xlu0 %3842
          %3844 = vrot.lane.b32.xlu0 %v3782, 3
          %v3845 = vpop.permute.xlu0 %3844
          %3846 = vrot.lane.b32.xlu0 %v3781, 3
          %v3847 = vpop.permute.xlu0 %3846
          %3848 = vrot.lane.b32.xlu0 %v3780, 3
          %v3849 = vpop.permute.xlu0 %3848
          %3850 = vrot.lane.b32.xlu0 %v3779, 3
          %v3851 = vpop.permute.xlu0 %3850
          %3852 = vrot.lane.b32.xlu0 %v3778, 3
          %v3853 = vpop.permute.xlu0 %3852
          %3854 = vrot.lane.b32.xlu0 %v3777, 3
          %v3855 = vpop.permute.xlu0 %3854
          %3856 = vrot.lane.b32.xlu0 %v3776, 3
          %v3857 = vpop.permute.xlu0 %3856
          %3858 = vrot.lane.b32.xlu0 %v3775, 3
          %v3859 = vpop.permute.xlu0 %3858
          %3860 = vrot.lane.b32.xlu0 %v3774, 3
          %v3861 = vpop.permute.xlu0 %3860
          %3862 = vrot.lane.b32.xlu0 %v3773, 3
          %v3863 = vpop.permute.xlu0 %3862
          %3864 = vrot.lane.b32.xlu0 %v3772, 3
          %v3865 = vpop.permute.xlu0 %3864
          %3866 = vrot.lane.b32.xlu0 %v3787, 3
          %v3867 = vpop.permute.xlu0 %3866
          %3900 = vrot.lane.b32.xlu0 %v3818, 6
          %v3901 = vpop.permute.xlu0 %3900
          %3902 = vrot.lane.b32.xlu0 %v3817, 6
          %v3903 = vpop.permute.xlu0 %3902
          %3904 = vrot.lane.b32.xlu0 %v3816, 6
          %v3905 = vpop.permute.xlu0 %3904
          %3906 = vrot.lane.b32.xlu0 %v3815, 6
          %v3907 = vpop.permute.xlu0 %3906
          %3908 = vrot.lane.b32.xlu0 %v3814, 6
          %v3909 = vpop.permute.xlu0 %3908
          %3910 = vrot.lane.b32.xlu0 %v3813, 6
          %v3911 = vpop.permute.xlu0 %3910
          %3912 = vrot.lane.b32.xlu0 %v3812, 6
          %v3913 = vpop.permute.xlu0 %3912
          %3914 = vrot.lane.b32.xlu0 %v3811, 6
          %v3915 = vpop.permute.xlu0 %3914
          %3916 = vrot.lane.b32.xlu0 %v3810, 6
          %v3917 = vpop.permute.xlu0 %3916
          %3918 = vrot.lane.b32.xlu0 %v3809, 6
          %v3919 = vpop.permute.xlu0 %3918
          %3920 = vrot.lane.b32.xlu0 %v3808, 6
          %v3921 = vpop.permute.xlu0 %3920
          %3922 = vrot.lane.b32.xlu0 %v3807, 6
          %v3923 = vpop.permute.xlu0 %3922
          %3924 = vrot.lane.b32.xlu0 %v3806, 6
          %v3925 = vpop.permute.xlu0 %3924
          %3926 = vrot.lane.b32.xlu0 %v3805, 6
          %v3927 = vpop.permute.xlu0 %3926
          %3928 = vrot.lane.b32.xlu0 %v3804, 6
          %v3929 = vpop.permute.xlu0 %3928
          %3930 = vrot.lane.b32.xlu0 %v3819, 6
          %v3931 = vpop.permute.xlu0 %3930
          %v3948 = vsel %vm510, %v3740, %v3837
          %v3949 = vsel %vm510, %v3741, %v3839
          %v3950 = vsel %vm510, %v3742, %v3841
          %v3951 = vsel %vm510, %v3743, %v3843
          %v3952 = vsel %vm510, %v3744, %v3845
          %v3953 = vsel %vm510, %v3745, %v3847
          %v3954 = vsel %vm510, %v3746, %v3849
          %v3955 = vsel %vm510, %v3747, %v3851
          %v3956 = vsel %vm510, %v3748, %v3853
          %v3957 = vsel %vm510, %v3749, %v3855
          %v3958 = vsel %vm510, %v3750, %v3857
          %v3959 = vsel %vm510, %v3751, %v3859
          %v3960 = vsel %vm510, %v3752, %v3861
          %v3961 = vsel %vm510, %v3753, %v3863
          %v3962 = vsel %vm510, %v3754, %v3865
          %v3963 = vsel %vm510, %v3755, %v3867
          %v3964 = vsel %vm527, %v3948, %v3901
          %v3965 = vsel %vm527, %v3949, %v3903
          %v3966 = vsel %vm527, %v3950, %v3905
          %v3967 = vsel %vm527, %v3951, %v3907
          %v3968 = vsel %vm527, %v3952, %v3909
          %v3969 = vsel %vm527, %v3953, %v3911
          %v3970 = vsel %vm527, %v3954, %v3913
          %v3971 = vsel %vm527, %v3955, %v3915
          %v3972 = vsel %vm527, %v3956, %v3917
          %v3973 = vsel %vm527, %v3957, %v3919
          %v3974 = vsel %vm527, %v3958, %v3921
          %v3975 = vsel %vm527, %v3959, %v3923
          %v3976 = vsel %vm527, %v3960, %v3925
          %v3977 = vsel %vm527, %v3961, %v3927
          %v3978 = vsel %vm527, %v3962, %v3929
          %v3979 = vsel %vm527, %v3963, %v3931
          %3996 = vrot.lane.b32.xlu0 %v3965, 9
          %v3997 = vpop.permute.xlu0 %3996
          %3998 = vrot.lane.b32.xlu0 %v3966, 9
          %v3999 = vpop.permute.xlu0 %3998
          %4000 = vrot.lane.b32.xlu0 %v3967, 9
          %v4001 = vpop.permute.xlu0 %4000
          %4002 = vrot.lane.b32.xlu0 %v3968, 9
          %v4003 = vpop.permute.xlu0 %4002
          %4004 = vrot.lane.b32.xlu0 %v3969, 9
          %v4005 = vpop.permute.xlu0 %4004
          %4006 = vrot.lane.b32.xlu0 %v3970, 9
          %v4007 = vpop.permute.xlu0 %4006
          %4008 = vrot.lane.b32.xlu0 %v3971, 9
          %v4009 = vpop.permute.xlu0 %4008
          %4010 = vrot.lane.b32.xlu0 %v3972, 9
          %v4011 = vpop.permute.xlu0 %4010
          %4012 = vrot.lane.b32.xlu0 %v3973, 9
          %v4013 = vpop.permute.xlu0 %4012
          %4014 = vrot.lane.b32.xlu0 %v3974, 9
          %v4015 = vpop.permute.xlu0 %4014
          %4016 = vrot.lane.b32.xlu0 %v3975, 9
          %v4017 = vpop.permute.xlu0 %4016
          %4018 = vrot.lane.b32.xlu0 %v3976, 9
          %v4019 = vpop.permute.xlu0 %4018
          %4020 = vrot.lane.b32.xlu0 %v3977, 9
          %v4021 = vpop.permute.xlu0 %4020
          %4022 = vrot.lane.b32.xlu0 %v3978, 9
          %v4023 = vpop.permute.xlu0 %4022
          %4024 = vrot.lane.b32.xlu0 %v3979, 9
          %v4025 = vpop.permute.xlu0 %4024
          %4026 = vrot.lane.b32.xlu0 %v3964, 9
          %v4027 = vpop.permute.xlu0 %4026
          %4044 = vrot.lane.b32.xlu0 %v3966, 18
          %v4045 = vpop.permute.xlu0 %4044
          %4046 = vrot.lane.b32.xlu0 %v3967, 18
          %v4047 = vpop.permute.xlu0 %4046
          %4048 = vrot.lane.b32.xlu0 %v3968, 18
          %v4049 = vpop.permute.xlu0 %4048
          %4050 = vrot.lane.b32.xlu0 %v3969, 18
          %v4051 = vpop.permute.xlu0 %4050
          %4052 = vrot.lane.b32.xlu0 %v3970, 18
          %v4053 = vpop.permute.xlu0 %4052
          %4054 = vrot.lane.b32.xlu0 %v3971, 18
          %v4055 = vpop.permute.xlu0 %4054
          %4056 = vrot.lane.b32.xlu0 %v3972, 18
          %v4057 = vpop.permute.xlu0 %4056
          %4058 = vrot.lane.b32.xlu0 %v3973, 18
          %v4059 = vpop.permute.xlu0 %4058
          %4060 = vrot.lane.b32.xlu0 %v3974, 18
          %v4061 = vpop.permute.xlu0 %4060
          %4062 = vrot.lane.b32.xlu0 %v3975, 18
          %v4063 = vpop.permute.xlu0 %4062
          %4064 = vrot.lane.b32.xlu0 %v3976, 18
          %v4065 = vpop.permute.xlu0 %4064
          %4066 = vrot.lane.b32.xlu0 %v3977, 18
          %v4067 = vpop.permute.xlu0 %4066
          %4068 = vrot.lane.b32.xlu0 %v3978, 18
          %v4069 = vpop.permute.xlu0 %4068
          %4070 = vrot.lane.b32.xlu0 %v3979, 18
          %v4071 = vpop.permute.xlu0 %4070
          %4072 = vrot.lane.b32.xlu0 %v3964, 18
          %v4073 = vpop.permute.xlu0 %4072
          %4074 = vrot.lane.b32.xlu0 %v3965, 18
          %v4075 = vpop.permute.xlu0 %4074
          %v4092 = vsel %vm656, %v3964, %v3997
          %v4093 = vsel %vm656, %v3965, %v3999
          %v4094 = vsel %vm656, %v3966, %v4001
          %v4095 = vsel %vm656, %v3967, %v4003
          %v4096 = vsel %vm656, %v3968, %v4005
          %v4097 = vsel %vm656, %v3969, %v4007
          %v4098 = vsel %vm656, %v3970, %v4009
          %v4099 = vsel %vm656, %v3971, %v4011
          %v4100 = vsel %vm656, %v3972, %v4013
          %v4101 = vsel %vm656, %v3973, %v4015
          %v4102 = vsel %vm656, %v3974, %v4017
          %v4103 = vsel %vm656, %v3975, %v4019
          %v4104 = vsel %vm656, %v3976, %v4021
          %v4105 = vsel %vm656, %v3977, %v4023
          %v4106 = vsel %vm656, %v3978, %v4025
          %v4107 = vsel %vm656, %v3979, %v4027
          %v4108 = vsel %vm673, %v4092, %v4045
          %v4109 = vsel %vm673, %v4093, %v4047
          %v4110 = vsel %vm673, %v4094, %v4049
          %v4111 = vsel %vm673, %v4095, %v4051
          %v4112 = vsel %vm673, %v4096, %v4053
          %v4113 = vsel %vm673, %v4097, %v4055
          %v4114 = vsel %vm673, %v4098, %v4057
          %v4115 = vsel %vm673, %v4099, %v4059
          %v4116 = vsel %vm673, %v4100, %v4061
          %v4117 = vsel %vm673, %v4101, %v4063
          %v4118 = vsel %vm673, %v4102, %v4065
          %v4119 = vsel %vm673, %v4103, %v4067
          %v4120 = vsel %vm673, %v4104, %v4069
          %v4121 = vsel %vm673, %v4105, %v4071
          %v4122 = vsel %vm673, %v4106, %v4073
          %v4123 = vsel %vm673, %v4107, %v4075
          %v4125 = vsel %vm691, %v4108, 0
          %v4128 = vsel %vm691, %v4109, 0
          %v4131 = vsel %vm691, %v4110, 0
          %v4134 = vsel %vm691, %v4111, 0
          %v4137 = vsel %vm691, %v4112, 0
          %v4140 = vsel %vm691, %v4113, 0
          %v4143 = vsel %vm691, %v4114, 0
          %v4146 = vsel %vm691, %v4115, 0
          %v4149 = vsel %vm691, %v4116, 0
          %v4152 = vsel %vm691, %v4117, 0
          %v4155 = vsel %vm691, %v4118, 0
          %v4158 = vsel %vm691, %v4119, 0
          %v4161 = vsel %vm691, %v4120, 0
          %v4164 = vsel %vm691, %v4121, 0
          %v4167 = vsel %vm691, %v4122, 0
          %v4170 = vsel %vm691, %v4123, 0
          %4172 = vmatpush.msra.mxu0 0.0
          %4173 = vmatpush.msra.mxu0 0.0
          %4174 = vmatpush.msra.mxu0 0.0
          %4175 = vmatpush.msra.mxu0 0.0
          %4176 = vmatpush.msra.mxu0 0.0
          %4177 = vmatpush.msra.mxu0 0.0
          %4178 = vmatpush.msra.mxu0 0.0
          %4179 = vmatpush.msra.mxu0 0.0
          %4180 = vmatpush.msra.mxu0 0.0
          %4181 = vmatpush.msra.mxu0 0.0
          %4182 = vmatpush.msra.mxu0 0.0
          %4183 = vmatpush.msra.mxu0 0.0
          %4184 = vmatpush.msra.mxu0 %v742
          %4185 = vmatpush.msra.mxu0 %v277
          %4186 = vmatpush.msra.mxu0 %v276
          %4187 = vmatpush.msra.mxu0 %v275
          %4188 = vmatmul.f32.gmra.mxu0 %v4125
          %v4189 = vpop.f32.mrf.mxu0
          %v4190 = vadd.f32 %v690, %v4189
          %4191 = vmatmul.f32.gmra.mxu0 %v4128
          %v4192 = vpop.f32.mrf.mxu0
          %v4193 = vadd.f32 %v690, %v4192
          %4194 = vmatmul.f32.gmra.mxu0 %v4131
          %v4195 = vpop.f32.mrf.mxu0
          %v4196 = vadd.f32 %v690, %v4195
          %4197 = vmatmul.f32.gmra.mxu0 %v4134
          %v4198 = vpop.f32.mrf.mxu0
          %v4199 = vadd.f32 %v690, %v4198
          %4200 = vmatmul.f32.gmra.mxu0 %v4137
          %v4201 = vpop.f32.mrf.mxu0
          %v4202 = vadd.f32 %v690, %v4201
          %4203 = vmatmul.f32.gmra.mxu0 %v4140
          %v4204 = vpop.f32.mrf.mxu0
          %v4205 = vadd.f32 %v690, %v4204
          %4206 = vmatmul.f32.gmra.mxu0 %v4143
          %v4207 = vpop.f32.mrf.mxu0
          %v4208 = vadd.f32 %v690, %v4207
          %4209 = vmatmul.f32.gmra.mxu0 %v4146
          %v4210 = vpop.f32.mrf.mxu0
          %v4211 = vadd.f32 %v690, %v4210
          %4212 = vmatmul.f32.gmra.mxu0 %v4149
          %v4213 = vpop.f32.mrf.mxu0
          %v4214 = vadd.f32 %v690, %v4213
          %4215 = vmatmul.f32.gmra.mxu0 %v4152
          %v4216 = vpop.f32.mrf.mxu0
          %v4217 = vadd.f32 %v690, %v4216
          %4218 = vmatmul.f32.gmra.mxu0 %v4155
          %v4219 = vpop.f32.mrf.mxu0
          %v4220 = vadd.f32 %v690, %v4219
          %4221 = vmatmul.f32.gmra.mxu0 %v4158
          %v4222 = vpop.f32.mrf.mxu0
          %v4223 = vadd.f32 %v690, %v4222
          %4224 = vmatmul.f32.gmra.mxu0 %v4161
          %v4225 = vpop.f32.mrf.mxu0
          %v4226 = vadd.f32 %v690, %v4225
          %4227 = vmatmul.f32.gmra.mxu0 %v4164
          %v4228 = vpop.f32.mrf.mxu0
          %v4229 = vadd.f32 %v690, %v4228
          %4230 = vmatmul.f32.gmra.mxu0 %v4167
          %v4231 = vpop.f32.mrf.mxu0
          %v4232 = vadd.f32 %v690, %v4231
          %4233 = vmatmul.f32.gmra.mxu0 %v4170
          %v4234 = vpop.f32.mrf.mxu0
          %v4235 = vadd.f32 %v690, %v4234
          %4236 = vdwg.mxu0
          %v4237 = vmax.f32 %v4190, 0.0
          %v4238 = vmax.f32 %v4193, 0.0
          %v4239 = vmax.f32 %v4196, 0.0
          %v4240 = vmax.f32 %v4199, 0.0
          %v4241 = vmax.f32 %v4202, 0.0
          %v4242 = vmax.f32 %v4205, 0.0
          %v4243 = vmax.f32 %v4208, 0.0
          %v4244 = vmax.f32 %v4211, 0.0
          %v4245 = vmax.f32 %v4214, 0.0
          %v4246 = vmax.f32 %v4217, 0.0
          %v4247 = vmax.f32 %v4220, 0.0
          %v4248 = vmax.f32 %v4223, 0.0
          %v4249 = vmax.f32 %v4226, 0.0
          %v4250 = vmax.f32 %v4229, 0.0
          %v4251 = vmax.f32 %v4232, 0.0
          %v4252 = vmax.f32 %v4235, 0.0
          %v4253 = vrot.slane %v4237, 1
          %v4254 = vrot.slane %v4238, 1
          %v4255 = vrot.slane %v4239, 1
          %v4256 = vrot.slane %v4240, 1
          %v4257 = vrot.slane %v4241, 1
          %v4258 = vrot.slane %v4242, 1
          %v4259 = vrot.slane %v4243, 1
          %v4260 = vrot.slane %v4244, 1
          %v4261 = vrot.slane %v4245, 1
          %v4262 = vrot.slane %v4246, 1
          %v4263 = vrot.slane %v4247, 1
          %v4264 = vrot.slane %v4248, 1
          %v4265 = vrot.slane %v4249, 1
          %v4266 = vrot.slane %v4250, 1
          %v4267 = vrot.slane %v4251, 1
          %v4268 = vrot.slane %v4252, 1
          %v4269 = vsel %vm332, %v4267, %v4268
          %v4270 = vsel %vm332, %v4266, %v4267
          %v4271 = vsel %vm332, %v4265, %v4266
          %v4272 = vsel %vm332, %v4264, %v4265
          %v4273 = vsel %vm332, %v4263, %v4264
          %v4274 = vsel %vm332, %v4262, %v4263
          %v4275 = vsel %vm332, %v4261, %v4262
          %v4276 = vsel %vm332, %v4260, %v4261
          %v4277 = vsel %vm332, %v4259, %v4260
          %v4278 = vsel %vm332, %v4258, %v4259
          %v4279 = vsel %vm332, %v4257, %v4258
          %v4280 = vsel %vm332, %v4256, %v4257
          %v4281 = vsel %vm332, %v4255, %v4256
          %v4282 = vsel %vm332, %v4254, %v4255
          %v4283 = vsel %vm332, %v4253, %v4254
          %v4284 = vsel %vm332, %v4268, %v4253
          %v4285 = vmax.f32 %v4237, %v4283
          %v4286 = vmax.f32 %v4238, %v4282
          %v4287 = vmax.f32 %v4239, %v4281
          %v4288 = vmax.f32 %v4240, %v4280
          %v4289 = vmax.f32 %v4241, %v4279
          %v4290 = vmax.f32 %v4242, %v4278
          %v4291 = vmax.f32 %v4243, %v4277
          %v4292 = vmax.f32 %v4244, %v4276
          %v4293 = vmax.f32 %v4245, %v4275
          %v4294 = vmax.f32 %v4246, %v4274
          %v4295 = vmax.f32 %v4247, %v4273
          %v4296 = vmax.f32 %v4248, %v4272
          %v4297 = vmax.f32 %v4249, %v4271
          %v4298 = vmax.f32 %v4250, %v4270
          %v4299 = vmax.f32 %v4251, %v4269
          %v4300 = vmax.f32 %v4252, %v4284
          %v4301 = vmax.f32 %v4285, %v4286
          %v4302 = vmax.f32 %v4286, %v4287
          %v4303 = vmax.f32 %v4287, %v4288
          %v4304 = vmax.f32 %v4288, %v4289
          %v4305 = vmax.f32 %v4289, %v4290
          %v4306 = vmax.f32 %v4290, %v4291
          %v4307 = vmax.f32 %v4291, %v4292
          %v4308 = vmax.f32 %v4292, %v4293
          %v4309 = vmax.f32 %v4293, %v4294
          %v4310 = vmax.f32 %v4294, %v4295
          %v4311 = vmax.f32 %v4295, %v4296
          %v4312 = vmax.f32 %v4296, %v4297
          %v4313 = vmax.f32 %v4297, %v4298
          %v4314 = vmax.f32 %v4298, %v4299
          %v4315 = vmax.f32 %v4299, %v4300
          %v4316 = vmax.f32 %v4300, %v4285
          %v4317 = vrot.slane %v4301, 1
          %v4318 = vrot.slane %v4302, 1
          %v4319 = vrot.slane %v4303, 1
          %v4320 = vrot.slane %v4304, 1
          %v4321 = vrot.slane %v4305, 1
          %v4322 = vrot.slane %v4306, 1
          %v4323 = vrot.slane %v4307, 1
          %v4324 = vrot.slane %v4308, 1
          %v4325 = vrot.slane %v4309, 1
          %v4326 = vrot.slane %v4310, 1
          %v4327 = vrot.slane %v4311, 1
          %v4328 = vrot.slane %v4312, 1
          %v4329 = vrot.slane %v4313, 1
          %v4330 = vrot.slane %v4314, 1
          %v4331 = vrot.slane %v4315, 1
          %v4332 = vrot.slane %v4316, 1
          %v4333 = vsel %vm332, %v4331, %v4332
          %v4334 = vsel %vm332, %v4330, %v4331
          %v4335 = vsel %vm332, %v4329, %v4330
          %v4336 = vsel %vm332, %v4328, %v4329
          %v4337 = vsel %vm332, %v4327, %v4328
          %v4338 = vsel %vm332, %v4326, %v4327
          %v4339 = vsel %vm332, %v4325, %v4326
          %v4340 = vsel %vm332, %v4324, %v4325
          %v4341 = vsel %vm332, %v4323, %v4324
          %v4342 = vsel %vm332, %v4322, %v4323
          %v4343 = vsel %vm332, %v4321, %v4322
          %v4344 = vsel %vm332, %v4320, %v4321
          %v4345 = vsel %vm332, %v4319, %v4320
          %v4346 = vsel %vm332, %v4318, %v4319
          %v4347 = vsel %vm332, %v4317, %v4318
          %v4348 = vsel %vm332, %v4332, %v4317
          %v4349 = vrot.slane %v4301, 2
          %v4350 = vrot.slane %v4302, 2
          %v4351 = vrot.slane %v4303, 2
          %v4352 = vrot.slane %v4304, 2
          %v4353 = vrot.slane %v4305, 2
          %v4354 = vrot.slane %v4306, 2
          %v4355 = vrot.slane %v4307, 2
          %v4356 = vrot.slane %v4308, 2
          %v4357 = vrot.slane %v4309, 2
          %v4358 = vrot.slane %v4310, 2
          %v4359 = vrot.slane %v4311, 2
          %v4360 = vrot.slane %v4312, 2
          %v4361 = vrot.slane %v4313, 2
          %v4362 = vrot.slane %v4314, 2
          %v4363 = vrot.slane %v4315, 2
          %v4364 = vrot.slane %v4316, 2
          %v4365 = vsel %vm365, %v4363, %v4364
          %v4366 = vsel %vm365, %v4362, %v4363
          %v4367 = vsel %vm365, %v4361, %v4362
          %v4368 = vsel %vm365, %v4360, %v4361
          %v4369 = vsel %vm365, %v4359, %v4360
          %v4370 = vsel %vm365, %v4358, %v4359
          %v4371 = vsel %vm365, %v4357, %v4358
          %v4372 = vsel %vm365, %v4356, %v4357
          %v4373 = vsel %vm365, %v4355, %v4356
          %v4374 = vsel %vm365, %v4354, %v4355
          %v4375 = vsel %vm365, %v4353, %v4354
          %v4376 = vsel %vm365, %v4352, %v4353
          %v4377 = vsel %vm365, %v4351, %v4352
          %v4378 = vsel %vm365, %v4350, %v4351
          %v4379 = vsel %vm365, %v4349, %v4350
          %v4380 = vsel %vm365, %v4364, %v4349
          %4397 = vrot.lane.b32.xlu0 %v4347, 8
          %v4398 = vpop.permute.xlu0 %4397
          %4399 = vrot.lane.b32.xlu0 %v4346, 8
          %v4400 = vpop.permute.xlu0 %4399
          %4401 = vrot.lane.b32.xlu0 %v4345, 8
          %v4402 = vpop.permute.xlu0 %4401
          %4403 = vrot.lane.b32.xlu0 %v4344, 8
          %v4404 = vpop.permute.xlu0 %4403
          %4405 = vrot.lane.b32.xlu0 %v4343, 8
          %v4406 = vpop.permute.xlu0 %4405
          %4407 = vrot.lane.b32.xlu0 %v4342, 8
          %v4408 = vpop.permute.xlu0 %4407
          %4409 = vrot.lane.b32.xlu0 %v4341, 8
          %v4410 = vpop.permute.xlu0 %4409
          %4411 = vrot.lane.b32.xlu0 %v4340, 8
          %v4412 = vpop.permute.xlu0 %4411
          %4413 = vrot.lane.b32.xlu0 %v4339, 8
          %v4414 = vpop.permute.xlu0 %4413
          %4415 = vrot.lane.b32.xlu0 %v4338, 8
          %v4416 = vpop.permute.xlu0 %4415
          %4417 = vrot.lane.b32.xlu0 %v4337, 8
          %v4418 = vpop.permute.xlu0 %4417
          %4419 = vrot.lane.b32.xlu0 %v4336, 8
          %v4420 = vpop.permute.xlu0 %4419
          %4421 = vrot.lane.b32.xlu0 %v4335, 8
          %v4422 = vpop.permute.xlu0 %4421
          %4423 = vrot.lane.b32.xlu0 %v4334, 8
          %v4424 = vpop.permute.xlu0 %4423
          %4425 = vrot.lane.b32.xlu0 %v4333, 8
          %v4426 = vpop.permute.xlu0 %4425
          %4427 = vrot.lane.b32.xlu0 %v4348, 8
          %v4428 = vpop.permute.xlu0 %4427
          %4461 = vrot.lane.b32.xlu0 %v4379, 16
          %v4462 = vpop.permute.xlu0 %4461
          %4463 = vrot.lane.b32.xlu0 %v4378, 16
          %v4464 = vpop.permute.xlu0 %4463
          %4465 = vrot.lane.b32.xlu0 %v4377, 16
          %v4466 = vpop.permute.xlu0 %4465
          %4467 = vrot.lane.b32.xlu0 %v4376, 16
          %v4468 = vpop.permute.xlu0 %4467
          %4469 = vrot.lane.b32.xlu0 %v4375, 16
          %v4470 = vpop.permute.xlu0 %4469
          %4471 = vrot.lane.b32.xlu0 %v4374, 16
          %v4472 = vpop.permute.xlu0 %4471
          %4473 = vrot.lane.b32.xlu0 %v4373, 16
          %v4474 = vpop.permute.xlu0 %4473
          %4475 = vrot.lane.b32.xlu0 %v4372, 16
          %v4476 = vpop.permute.xlu0 %4475
          %4477 = vrot.lane.b32.xlu0 %v4371, 16
          %v4478 = vpop.permute.xlu0 %4477
          %4479 = vrot.lane.b32.xlu0 %v4370, 16
          %v4480 = vpop.permute.xlu0 %4479
          %4481 = vrot.lane.b32.xlu0 %v4369, 16
          %v4482 = vpop.permute.xlu0 %4481
          %4483 = vrot.lane.b32.xlu0 %v4368, 16
          %v4484 = vpop.permute.xlu0 %4483
          %4485 = vrot.lane.b32.xlu0 %v4367, 16
          %v4486 = vpop.permute.xlu0 %4485
          %4487 = vrot.lane.b32.xlu0 %v4366, 16
          %v4488 = vpop.permute.xlu0 %4487
          %4489 = vrot.lane.b32.xlu0 %v4365, 16
          %v4490 = vpop.permute.xlu0 %4489
          %4491 = vrot.lane.b32.xlu0 %v4380, 16
          %v4492 = vpop.permute.xlu0 %4491
          %v4509 = vsel %vm1081, %v4301, %v4398
          %v4510 = vsel %vm1081, %v4302, %v4400
          %v4511 = vsel %vm1081, %v4303, %v4402
          %v4512 = vsel %vm1081, %v4304, %v4404
          %v4513 = vsel %vm1081, %v4305, %v4406
          %v4514 = vsel %vm1081, %v4306, %v4408
          %v4515 = vsel %vm1081, %v4307, %v4410
          %v4516 = vsel %vm1081, %v4308, %v4412
          %v4517 = vsel %vm1081, %v4309, %v4414
          %v4518 = vsel %vm1081, %v4310, %v4416
          %v4519 = vsel %vm1081, %v4311, %v4418
          %v4520 = vsel %vm1081, %v4312, %v4420
          %v4521 = vsel %vm1081, %v4313, %v4422
          %v4522 = vsel %vm1081, %v4314, %v4424
          %v4523 = vsel %vm1081, %v4315, %v4426
          %v4524 = vsel %vm1081, %v4316, %v4428
          %v4525 = vsel %vm1098, %v4509, %v4462
          %v4526 = vsel %vm1098, %v4510, %v4464
          %v4527 = vsel %vm1098, %v4511, %v4466
          %v4528 = vsel %vm1098, %v4512, %v4468
          %v4529 = vsel %vm1098, %v4513, %v4470
          %v4530 = vsel %vm1098, %v4514, %v4472
          %v4531 = vsel %vm1098, %v4515, %v4474
          %v4532 = vsel %vm1098, %v4516, %v4476
          %v4533 = vsel %vm1098, %v4517, %v4478
          %v4534 = vsel %vm1098, %v4518, %v4480
          %v4535 = vsel %vm1098, %v4519, %v4482
          %v4536 = vsel %vm1098, %v4520, %v4484
          %v4537 = vsel %vm1098, %v4521, %v4486
          %v4538 = vsel %vm1098, %v4522, %v4488
          %v4539 = vsel %vm1098, %v4523, %v4490
          %v4540 = vsel %vm1098, %v4524, %v4492
          %4557 = vrot.lane.b32.xlu0 %v4526, 24
          %v4558 = vpop.permute.xlu0 %4557
          %4559 = vrot.lane.b32.xlu0 %v4527, 24
          %v4560 = vpop.permute.xlu0 %4559
          %4561 = vrot.lane.b32.xlu0 %v4528, 24
          %v4562 = vpop.permute.xlu0 %4561
          %4563 = vrot.lane.b32.xlu0 %v4529, 24
          %v4564 = vpop.permute.xlu0 %4563
          %4565 = vrot.lane.b32.xlu0 %v4530, 24
          %v4566 = vpop.permute.xlu0 %4565
          %4567 = vrot.lane.b32.xlu0 %v4531, 24
          %v4568 = vpop.permute.xlu0 %4567
          %4569 = vrot.lane.b32.xlu0 %v4532, 24
          %v4570 = vpop.permute.xlu0 %4569
          %4571 = vrot.lane.b32.xlu0 %v4533, 24
          %v4572 = vpop.permute.xlu0 %4571
          %4573 = vrot.lane.b32.xlu0 %v4534, 24
          %v4574 = vpop.permute.xlu0 %4573
          %4575 = vrot.lane.b32.xlu0 %v4535, 24
          %v4576 = vpop.permute.xlu0 %4575
          %4577 = vrot.lane.b32.xlu0 %v4536, 24
          %v4578 = vpop.permute.xlu0 %4577
          %4579 = vrot.lane.b32.xlu0 %v4537, 24
          %v4580 = vpop.permute.xlu0 %4579
          %4581 = vrot.lane.b32.xlu0 %v4538, 24
          %v4582 = vpop.permute.xlu0 %4581
          %4583 = vrot.lane.b32.xlu0 %v4539, 24
          %v4584 = vpop.permute.xlu0 %4583
          %4585 = vrot.lane.b32.xlu0 %v4540, 24
          %v4586 = vpop.permute.xlu0 %4585
          %4587 = vrot.lane.b32.xlu0 %v4525, 24
          %v4588 = vpop.permute.xlu0 %4587
          %4605 = vrot.lane.b32.xlu0 %v4527, 48
          %v4606 = vpop.permute.xlu0 %4605
          %4607 = vrot.lane.b32.xlu0 %v4528, 48
          %v4608 = vpop.permute.xlu0 %4607
          %4609 = vrot.lane.b32.xlu0 %v4529, 48
          %v4610 = vpop.permute.xlu0 %4609
          %4611 = vrot.lane.b32.xlu0 %v4530, 48
          %v4612 = vpop.permute.xlu0 %4611
          %4613 = vrot.lane.b32.xlu0 %v4531, 48
          %v4614 = vpop.permute.xlu0 %4613
          %4615 = vrot.lane.b32.xlu0 %v4532, 48
          %v4616 = vpop.permute.xlu0 %4615
          %4617 = vrot.lane.b32.xlu0 %v4533, 48
          %v4618 = vpop.permute.xlu0 %4617
          %4619 = vrot.lane.b32.xlu0 %v4534, 48
          %v4620 = vpop.permute.xlu0 %4619
          %4621 = vrot.lane.b32.xlu0 %v4535, 48
          %v4622 = vpop.permute.xlu0 %4621
          %4623 = vrot.lane.b32.xlu0 %v4536, 48
          %v4624 = vpop.permute.xlu0 %4623
          %4625 = vrot.lane.b32.xlu0 %v4537, 48
          %v4626 = vpop.permute.xlu0 %4625
          %4627 = vrot.lane.b32.xlu0 %v4538, 48
          %v4628 = vpop.permute.xlu0 %4627
          %4629 = vrot.lane.b32.xlu0 %v4539, 48
          %v4630 = vpop.permute.xlu0 %4629
          %4631 = vrot.lane.b32.xlu0 %v4540, 48
          %v4632 = vpop.permute.xlu0 %4631
          %4633 = vrot.lane.b32.xlu0 %v4525, 48
          %v4634 = vpop.permute.xlu0 %4633
          %4635 = vrot.lane.b32.xlu0 %v4526, 48
          %v4636 = vpop.permute.xlu0 %4635
          %v4653 = vsel %vm1227, %v4525, %v4558
          %v4654 = vsel %vm1227, %v4526, %v4560
          %v4655 = vsel %vm1227, %v4527, %v4562
          %v4656 = vsel %vm1227, %v4528, %v4564
          %v4657 = vsel %vm1227, %v4529, %v4566
          %v4658 = vsel %vm1227, %v4530, %v4568
          %v4659 = vsel %vm1227, %v4531, %v4570
          %v4660 = vsel %vm1227, %v4532, %v4572
          %v4661 = vsel %vm1227, %v4533, %v4574
          %v4662 = vsel %vm1227, %v4534, %v4576
          %v4663 = vsel %vm1227, %v4535, %v4578
          %v4664 = vsel %vm1227, %v4536, %v4580
          %v4665 = vsel %vm1227, %v4537, %v4582
          %v4666 = vsel %vm1227, %v4538, %v4584
          %v4667 = vsel %vm1227, %v4539, %v4586
          %v4668 = vsel %vm1227, %v4540, %v4588
          %v4669 = vsel %vm1244, %v4653, %v4606
          %v4670 = vsel %vm1244, %v4654, %v4608
          %v4671 = vsel %vm1244, %v4655, %v4610
          %v4672 = vsel %vm1244, %v4656, %v4612
          %v4673 = vsel %vm1244, %v4657, %v4614
          %v4674 = vsel %vm1244, %v4658, %v4616
          %v4675 = vsel %vm1244, %v4659, %v4618
          %v4676 = vsel %vm1244, %v4660, %v4620
          %v4677 = vsel %vm1244, %v4661, %v4622
          %v4678 = vsel %vm1244, %v4662, %v4624
          %v4679 = vsel %vm1244, %v4663, %v4626
          %v4680 = vsel %vm1244, %v4664, %v4628
          %v4681 = vsel %vm1244, %v4665, %v4630
          %v4682 = vsel %vm1244, %v4666, %v4632
          %v4683 = vsel %vm1244, %v4667, %v4634
          %v4684 = vsel %vm1244, %v4668, %v4636
          %v4686 = vsel %vm1262, %v4669, 0
          %v4689 = vsel %vm1262, %v4670, 0
          %v4692 = vsel %vm1262, %v4671, 0
          %v4695 = vsel %vm1262, %v4672, 0
          %v4698 = vsel %vm1262, %v4673, 0
          %v4701 = vsel %vm1262, %v4674, 0
          %v4704 = vsel %vm1262, %v4675, 0
          %v4707 = vsel %vm1262, %v4676, 0
          %v4710 = vsel %vm1262, %v4677, 0
          %v4713 = vsel %vm1262, %v4678, 0
          %v4716 = vsel %vm1262, %v4679, 0
          %v4719 = vsel %vm1262, %v4680, 0
          %v4722 = vsel %vm1262, %v4681, 0
          %v4725 = vsel %vm1262, %v4682, 0
          %v4728 = vsel %vm1262, %v4683, 0
          %v4731 = vsel %vm1262, %v4684, 0
          %4733 = vmatpush.msra.mxu0 0.0
          %4734 = vmatpush.msra.mxu0 0.0
          %4735 = vmatpush.msra.mxu0 0.0
          %4736 = vmatpush.msra.mxu0 0.0
          %4737 = vmatpush.msra.mxu0 0.0
          %4738 = vmatpush.msra.mxu0 0.0
          %4739 = vmatpush.msra.mxu0 0.0
          %4740 = vmatpush.msra.mxu0 %v287
          %4741 = vmatpush.msra.mxu0 %v286
          %4742 = vmatpush.msra.mxu0 %v285
          %4743 = vmatpush.msra.mxu0 %v284
          %4744 = vmatpush.msra.mxu0 %v283
          %4745 = vmatpush.msra.mxu0 %v282
          %4746 = vmatpush.msra.mxu0 %v281
          %4747 = vmatpush.msra.mxu0 %v280
          %4748 = vmatpush.msra.mxu0 %v279
          %4749 = vmatmul.f32.gmra.mxu0 %v4686
          %v4750 = vpop.f32.mrf.mxu0
          %v4751 = vadd.f32 %v1261, %v4750
          %4752 = vmatmul.f32.gmra.mxu0 %v4689
          %v4753 = vpop.f32.mrf.mxu0
          %v4754 = vadd.f32 %v1261, %v4753
          %4755 = vmatmul.f32.gmra.mxu0 %v4692
          %v4756 = vpop.f32.mrf.mxu0
          %v4757 = vadd.f32 %v1261, %v4756
          %4758 = vmatmul.f32.gmra.mxu0 %v4695
          %v4759 = vpop.f32.mrf.mxu0
          %v4760 = vadd.f32 %v1261, %v4759
          %4761 = vmatmul.f32.gmra.mxu0 %v4698
          %v4762 = vpop.f32.mrf.mxu0
          %v4763 = vadd.f32 %v1261, %v4762
          %4764 = vmatmul.f32.gmra.mxu0 %v4701
          %v4765 = vpop.f32.mrf.mxu0
          %4766 = vmatmul.f32.gmra.mxu0 %v4704
          %v4767 = vpop.f32.mrf.mxu0
          %4768 = vmatmul.f32.gmra.mxu0 %v4707
          %v4769 = vpop.f32.mrf.mxu0
          %4770 = vmatmul.f32.gmra.mxu0 %v4710
          %v4771 = vpop.f32.mrf.mxu0
          %v4772 = vadd.f32 %v1261, %v4771
          %4773 = vmatmul.f32.gmra.mxu0 %v4713
          %v4774 = vpop.f32.mrf.mxu0
          %v4775 = vadd.f32 %v1261, %v4774
          %4776 = vmatmul.f32.gmra.mxu0 %v4716
          %v4777 = vpop.f32.mrf.mxu0
          %v4778 = vadd.f32 %v1261, %v4777
          %4779 = vmatmul.f32.gmra.mxu0 %v4719
          %v4780 = vpop.f32.mrf.mxu0
          %v4781 = vadd.f32 %v1261, %v4780
          %4782 = vmatmul.f32.gmra.mxu0 %v4722
          %v4783 = vpop.f32.mrf.mxu0
          %v4784 = vadd.f32 %v1261, %v4783
          %4785 = vmatmul.f32.gmra.mxu0 %v4725
          %v4786 = vpop.f32.mrf.mxu0
          %4787 = vmatmul.f32.gmra.mxu0 %v4728
          %v4788 = vpop.f32.mrf.mxu0
          %4789 = vmatmul.f32.gmra.mxu0 %v4731
          %v4790 = vpop.f32.mrf.mxu0
          %4791 = vdwg.mxu0
          %v4792 = vmax.f32 %v4751, 0.0
          %v4793 = vmax.f32 %v4754, 0.0
          %v4794 = vmax.f32 %v4757, 0.0
          %v4795 = vmax.f32 %v4760, 0.0
          %v4796 = vmax.f32 %v4763, 0.0
          %v4797 = vmax.f32 %v4772, 0.0
          %v4798 = vmax.f32 %v4775, 0.0
          %v4799 = vmax.f32 %v4778, 0.0
          %v4800 = vmax.f32 %v4781, 0.0
          %v4801 = vmax.f32 %v4784, 0.0
          %v4802 = vrot.slane %v4792, 1
          %v4803 = vrot.slane %v4793, 1
          %v4804 = vrot.slane %v4794, 1
          %v4805 = vrot.slane %v4795, 1
          %v4806 = vrot.slane %v4796, 1
          %v4807 = vrot.slane %v4797, 1
          %v4808 = vrot.slane %v4798, 1
          %v4809 = vrot.slane %v4799, 1
          %v4810 = vrot.slane %v4800, 1
          %v4811 = vrot.slane %v4801, 1
          %v4812 = vsel %vm332, %v4810, %v4811
          %v4813 = vsel %vm332, %v4809, %v4810
          %v4814 = vsel %vm332, %v4808, %v4809
          %v4815 = vsel %vm332, %v4807, %v4808
          %v4816 = vsel %vm332, %v4805, %v4806
          %v4817 = vsel %vm332, %v4804, %v4805
          %v4818 = vsel %vm332, %v4803, %v4804
          %v4819 = vsel %vm332, %v4802, %v4803
          %v4820 = vmax.f32 %v4792, %v4819
          %v4821 = vmax.f32 %v4793, %v4818
          %v4822 = vmax.f32 %v4794, %v4817
          %v4823 = vmax.f32 %v4795, %v4816
          %v4824 = vmax.f32 %v4797, %v4815
          %v4825 = vmax.f32 %v4798, %v4814
          %v4826 = vmax.f32 %v4799, %v4813
          %v4827 = vmax.f32 %v4800, %v4812
          %v4828 = vmax.f32 %v4820, %v4821
          %v4829 = vmax.f32 %v4821, %v4822
          %v4830 = vmax.f32 %v4822, %v4823
          %v4831 = vmax.f32 %v4824, %v4825
          %v4832 = vmax.f32 %v4825, %v4826
          %v4833 = vmax.f32 %v4826, %v4827
          %v4834 = vrot.slane %v4828, 1
          %v4835 = vrot.slane %v4829, 1
          %v4836 = vrot.slane %v4830, 1
          %v4837 = vrot.slane %v4831, 1
          %v4838 = vrot.slane %v4832, 1
          %v4839 = vrot.slane %v4833, 1
          %v4840 = vsel %vm332, %v4838, %v4839
          %v4841 = vsel %vm332, %v4837, %v4838
          %v4842 = vsel %vm332, %v4835, %v4836
          %v4843 = vsel %vm332, %v4834, %v4835
          %4848 = vrot.lane.b32.xlu0 %v4843, 16
          %v4849 = vpop.permute.xlu0 %4848
          %4850 = vrot.lane.b32.xlu0 %v4842, 16
          %v4851 = vpop.permute.xlu0 %4850
          %4852 = vrot.lane.b32.xlu0 %v4841, 16
          %v4853 = vpop.permute.xlu0 %4852
          %4854 = vrot.lane.b32.xlu0 %v4840, 16
          %v4855 = vpop.permute.xlu0 %4854
          %v4860 = vsel %vm1098, %v4828, %v4849
          %v4861 = vsel %vm1098, %v4829, %v4851
          %v4862 = vsel %vm1098, %v4831, %v4853
          %v4863 = vsel %vm1098, %v4832, %v4855
          %4866 = vrot.lane.b32.xlu0 %v4861, 32
          %v4867 = vpop.permute.xlu0 %4866
          %4868 = vrot.lane.b32.xlu0 %v4863, 32
          %v4869 = vpop.permute.xlu0 %4868
          %v4872 = vsel %vm1450, %v4860, %v4867
          %v4873 = vsel %vm1450, %v4862, %v4869
          %v4875 = vrot.slane %v4873, 7
          %v4877 = vsel %vm1456, %v4872, %v4875
          %v4879 = vrot.slane %v2597, 6
          %v4882 = vrot.slane %v3737, 4
          %v4885 = vrot.slane %v4877, 2
          %vm4887 = vcmask 1041408
          %v4888 = vsel %vm4887, %v1457, %v4879
          %vm4889 = vcmask 1043456
          %v4890 = vsel %vm4889, %v4888, %v4882
          %vm4891 = vcmask 1045504
          %v4892 = vsel %vm4891, %v4890, %v4885
          %vm4893 = vcmask 523264
          %v4894 = vsel %vm4893, %v4892, 0.0
          %s4895 = smul.u32 %s291, 8
          %s4896 = scalar_lea.vmem [#allocation2], %s4895
          %4897 = vst [vmem:[%s4896] sm:$0xff] %v4894
        $region49: #{tpu_custom_call.1} parent=43 // loop_footer
          %s295 = sadd.s32 1, %s291
        $region50: #{tpu_custom_call.1} parent=43 // loop_footer_branch
          %290 = sbr.rel target = $region46
        $region51: #{tpu_custom_call.1} parent=43 // loop_exit
          _
        %v4898 = vld [vmem:[#allocation2] sm:$0xff]
        %v4899 = vld [vmem:[#allocation2 + $0x8] sm:$0xff]
        %v4900 = vld [vmem:[%s5 + $0x2] sm:$0x1]
        %v4901 = vld [vmem:[%s5 + $0x3] sm:$0x1]
        %v4902 = vld [vmem:[%s5 + $0x4] sm:$0x1]
        %v4903 = vld [vmem:[%s5 + $0x5] sm:$0x1]
        %v4904 = vld [vmem:[%s4] sm:$0xff]
        %v4905 = vld [vmem:[%s4 + $0x8] sm:$0xff]
        %v4906 = vld [vmem:[%s4 + $0x10] sm:$0xff]
        %v4907 = vld [vmem:[%s4 + $0x18] sm:$0xff]
        %v4908 = vld [vmem:[%s4 + $0x20] sm:$0xff]
        %v4909 = vld [vmem:[%s4 + $0x28] sm:$0xff]
        %v4910 = vld [vmem:[%s4 + $0x30] sm:$0xff]
        %v4911 = vld [vmem:[%s4 + $0x38] sm:$0xff]
        %v4912 = vld [vmem:[%s4 + $0x40] sm:$0xff]
        %v4913 = vld [vmem:[%s4 + $0x48] sm:$0xff]
        %v4914 = vld [vmem:[%s4 + $0x50] sm:$0xff]
        %v4915 = vld [vmem:[%s4 + $0x58] sm:$0xff]
        %v4916 = vld [vmem:[%s4 + $0x60] sm:$0xff]
        %v4917 = vld [vmem:[%s4 + $0x68] sm:$0xff]
        %v4918 = vld [vmem:[%s4 + $0x70] sm:$0xff]
        %v4919 = vld [vmem:[%s4 + $0x78] sm:$0xff]
        %v4920 = vld [vmem:[%s272] sm:$0xff]
        %v4921 = vld [vmem:[%s272 + $0x8] sm:$0xff]
        %4923 = vset.pattern.permute.xlu0 0
        %4924 = vperm.xlu0 %4923, %v4920
        %v4925 = vpop.permute.xlu0 %4924
        %4928 = vset.pattern.permute.xlu0 0
        %4929 = vperm.xlu0 %4928, %v4921
        %v4930 = vpop.permute.xlu0 %4929
        %v4932 = vperm.slane %v4900, 0
        %v4933 = vmul.f32 %v4925, %v4932
        %v4934 = vmul.f32 %v4930, %v4932
        %4935 = vmatpush.msra.mxu0 %v4919
        %4936 = vmatpush.msra.mxu0 %v4918
        %4937 = vmatpush.msra.mxu0 %v4917
        %4938 = vmatpush.msra.mxu0 %v4916
        %4939 = vmatpush.msra.mxu0 %v4915
        %4940 = vmatpush.msra.mxu0 %v4914
        %4941 = vmatpush.msra.mxu0 %v4913
        %4942 = vmatpush.msra.mxu0 %v4912
        %4943 = vmatpush.msra.mxu0 %v4911
        %4944 = vmatpush.msra.mxu0 %v4910
        %4945 = vmatpush.msra.mxu0 %v4909
        %4946 = vmatpush.msra.mxu0 %v4908
        %4947 = vmatpush.msra.mxu0 %v4907
        %4948 = vmatpush.msra.mxu0 %v4906
        %4949 = vmatpush.msra.mxu0 %v4905
        %4950 = vmatpush.msra.mxu0 %v4904
        %4951 = vmatmul.f32.gmra.mxu0 %v4898
        %v4952 = vpop.f32.mrf.mxu0
        %v4953 = vadd.f32 %v4933, %v4952
        %4954 = vmatmul.f32.gmra.mxu0 %v4899
        %v4955 = vpop.f32.mrf.mxu0
        %v4956 = vadd.f32 %v4934, %v4955
        %4957 = vdwg.mxu0
        %v4958 = vperm.slane %v4901, 0
        %v4959 = vadd.f32 %v4953, %v4958
        %v4960 = vadd.f32 %v4956, %v4958
        %v4961 = vmax.f32 %v4959, 0.0
        %v4962 = vmax.f32 %v4960, 0.0
        %v4963 = vld [vmem:[%s4 + $0x80] sm:$0xff]
        %v4964 = vld [vmem:[%s4 + $0x88] sm:$0xff]
        %v4965 = vld [vmem:[%s4 + $0x90] sm:$0xff]
        %v4966 = vld [vmem:[%s4 + $0x98] sm:$0xff]
        %v4967 = vld [vmem:[%s4 + $0xa0] sm:$0xff]
        %v4968 = vld [vmem:[%s4 + $0xa8] sm:$0xff]
        %v4969 = vld [vmem:[%s4 + $0xb0] sm:$0xff]
        %v4970 = vld [vmem:[%s4 + $0xb8] sm:$0xff]
        %v4971 = vld [vmem:[%s4 + $0xc0] sm:$0xff]
        %v4972 = vld [vmem:[%s4 + $0xc8] sm:$0xff]
        %v4973 = vld [vmem:[%s4 + $0xd0] sm:$0xff]
        %v4974 = vld [vmem:[%s4 + $0xd8] sm:$0xff]
        %v4975 = vld [vmem:[%s4 + $0xe0] sm:$0xff]
        %v4976 = vld [vmem:[%s4 + $0xe8] sm:$0xff]
        %v4977 = vld [vmem:[%s4 + $0xf0] sm:$0xff]
        %v4978 = vld [vmem:[%s4 + $0xf8] sm:$0xff]
        %v4979 = vperm.slane %v4902, 0
        %4980 = vmatpush.msra.mxu0 %v4978
        %4981 = vmatpush.msra.mxu0 %v4977
        %4982 = vmatpush.msra.mxu0 %v4976
        %4983 = vmatpush.msra.mxu0 %v4975
        %4984 = vmatpush.msra.mxu0 %v4974
        %4985 = vmatpush.msra.mxu0 %v4973
        %4986 = vmatpush.msra.mxu0 %v4972
        %4987 = vmatpush.msra.mxu0 %v4971
        %4988 = vmatpush.msra.mxu0 %v4970
        %4989 = vmatpush.msra.mxu0 %v4969
        %4990 = vmatpush.msra.mxu0 %v4968
        %4991 = vmatpush.msra.mxu0 %v4967
        %4992 = vmatpush.msra.mxu0 %v4966
        %4993 = vmatpush.msra.mxu0 %v4965
        %4994 = vmatpush.msra.mxu0 %v4964
        %4995 = vmatpush.msra.mxu0 %v4963
        %4996 = vmatmul.f32.gmra.mxu0 %v4961
        %v4997 = vpop.f32.mrf.mxu0
        %v4998 = vadd.f32 %v4979, %v4997
        %4999 = vmatmul.f32.gmra.mxu0 %v4962
        %v5000 = vpop.f32.mrf.mxu0
        %v5001 = vadd.f32 %v4979, %v5000
        %5002 = vdwg.mxu0
        %v5003 = vmax.f32 %v4998, 0.0
        %v5004 = vmax.f32 %v5001, 0.0
        %v5005 = vld [vmem:[%s4 + $0x100] sm:$0xff]
        %v5006 = vld [vmem:[%s4 + $0x108] sm:$0xff]
        %v5007 = vld [vmem:[%s4 + $0x110] sm:$0xff]
        %v5008 = vld [vmem:[%s4 + $0x118] sm:$0xff]
        %v5009 = vld [vmem:[%s4 + $0x120] sm:$0xff]
        %v5010 = vld [vmem:[%s4 + $0x128] sm:$0xff]
        %v5011 = vld [vmem:[%s4 + $0x130] sm:$0xff]
        %v5012 = vld [vmem:[%s4 + $0x138] sm:$0xff]
        %v5013 = vld [vmem:[%s4 + $0x140] sm:$0xff]
        %v5014 = vld [vmem:[%s4 + $0x148] sm:$0xff]
        %v5015 = vld [vmem:[%s4 + $0x150] sm:$0xff]
        %v5016 = vld [vmem:[%s4 + $0x158] sm:$0xff]
        %v5017 = vld [vmem:[%s4 + $0x160] sm:$0xff]
        %v5018 = vld [vmem:[%s4 + $0x168] sm:$0xff]
        %v5019 = vld [vmem:[%s4 + $0x170] sm:$0xff]
        %v5020 = vld [vmem:[%s4 + $0x178] sm:$0xff]
        %v5021 = vperm.slane %v4903, 0
        %5022 = vmatpush.msra.mxu0 %v5020
        %5023 = vmatpush.msra.mxu0 %v5019
        %5024 = vmatpush.msra.mxu0 %v5018
        %5025 = vmatpush.msra.mxu0 %v5017
        %5026 = vmatpush.msra.mxu0 %v5016
        %5027 = vmatpush.msra.mxu0 %v5015
        %5028 = vmatpush.msra.mxu0 %v5014
        %5029 = vmatpush.msra.mxu0 %v5013
        %5030 = vmatpush.msra.mxu0 %v5012
        %5031 = vmatpush.msra.mxu0 %v5011
        %5032 = vmatpush.msra.mxu0 %v5010
        %5033 = vmatpush.msra.mxu0 %v5009
        %5034 = vmatpush.msra.mxu0 %v5008
        %5035 = vmatpush.msra.mxu0 %v5007
        %5036 = vmatpush.msra.mxu0 %v5006
        %5037 = vmatpush.msra.mxu0 %v5005
        %5038 = vmatmul.f32.gmra.mxu0 %v5003
        %v5039 = vpop.f32.mrf.mxu0
        %v5040 = vadd.f32 %v5021, %v5039
        %5041 = vmatmul.f32.gmra.mxu0 %v5004
        %v5042 = vpop.f32.mrf.mxu0
        %v5043 = vadd.f32 %v5021, %v5042
        %5044 = vdwg.mxu0
        %5045 = vst [vmem:[%s261] sm:$0xff] %v5040
        %5046 = vst [vmem:[%s261 + $0x8] sm:$0xff] %v5043
        %s5047 = sand.u32 %s164, 1
        %s5048 = scalar_lea.sflag [#allocation4], %s5047
        %s5049 = sand.u32 %s164, 1
        %s5050 = smul.addr %s5049, 16
        %s5051 = scalar_lea.vmem [#allocation3], %s5050
        // Predicated region
        $region52: #{tpu_custom_call.1} parent=43 // pred_check
          %p5052 = pneg %p174
        $region53: #{tpu_custom_call.1} parent=43 // pred_check_branch
          %5054 = sbr.rel (%p5052) target = $region55
        $region54: #{tpu_custom_call.1} parent=43 // pred_region
          %s5055 = smul.u32 2, %s20
          %5057 = vsyncadd %s5048, 0
          %s5058 = smul.addr %s5055, 8
          %s5059 = scalar_lea.hbm %s6, %s5058
          %s5060 = sshll.u32 %s5051, 4
          %s5061 = int_to_ptr.vmem [resolvable:$true] %s5060
          %s5062 = sshll.u32 %s5059, 4
          %s5063 = int_to_ptr.hbm [resolvable:$true] %s5062
          %5068 = dma.vmem_to_hbm [thread:$0]  %s5061, 256, %s5063, %s5048, 128, 128, 8
        $region55: #{tpu_custom_call.1} parent=43 // pred_fallthru
          _
      $region44: #{tpu_custom_call.1} parent=5 // pred_fallthru
        _
      %p5069 = scmp.le.s32.totalorder 2, %s15
      // Predicated region
      $region56: #{tpu_custom_call.1} parent=5 // pred_check
        %p5070 = pneg %p5069
      $region57: #{tpu_custom_call.1} parent=5 // pred_check_branch
        %5072 = sbr.rel (%p5070) target = $region59
      $region58: #{tpu_custom_call.1} parent=5 // pred_region
        %s5073 = ssub.s32 %s15, 2
        // Predicated region
        $region60: #{tpu_custom_call.1} parent=58 // pred_check
          %p5074 = pneg %p180
        $region61: #{tpu_custom_call.1} parent=58 // pred_check_branch
          %5076 = sbr.rel (%p5074) target = $region63
        $region62: #{tpu_custom_call.1} parent=58 // pred_region
          %s5077 = sand.u32 %s165, 1
          %s5078 = scalar_lea.sflag [#allocation4], %s5077
          %s5079 = sand.u32 %s165, 1
          %s5080 = smul.addr %s5079, 16
          %s5081 = scalar_lea.vmem [#allocation3], %s5080
          %5083 = dma.done %s5078, 256
        $region63: #{tpu_custom_call.1} parent=58 // pred_fallthru
          _
      $region59: #{tpu_custom_call.1} parent=5 // pred_fallthru
        _
    $region6: #{tpu_custom_call.1} parent=1 // loop_footer
      %s19 = sadd.s32 1, %s15
    $region7: #{tpu_custom_call.1} parent=1 // loop_footer_branch
      %14 = sbr.rel target = $region3
    $region8: #{tpu_custom_call.1} parent=1 // loop_exit
      _
    %5084 = vsyncpa [#allocation4], 1
    %s5085 = scalar_lea.sflag [#allocation4], 1
    %5086 = vsyncpa %s5085, 1

</llo_original>
